<compile_context>
chip_gen: v7x
topology: tpu7x:2x2x1
jax: 0.10.0
libtpu: 0.0.40
codegen_flags: <defaults>
</compile_context>

<pallas_src>
import jax
import jax.numpy as jnp
import numpy as np
from jax.experimental import pallas as pl
from jax.experimental.pallas import tpu as pltpu

_LANES = 128                      # lane width (fixed by hardware)
_SUBLANES = 8                     # f32 sublanes per vreg
_PAD_GRAN = _LANES * _SUBLANES    # pad particle count to a multiple of 1024
_SUB_TILE = 512                   # sublane rows per grid step -> 65536 particles/step
                                  # VMEM/step: (3+9+9)*512*128*4B ~= 5.5 MB,
                                  # x2 (double buffer) ~= 11 MB (< 32 MB limit, fits v7x too)


def _stress_kernel(params_ref, sigma_ref, u_ref, out_ref):
    """Elementwise hot path: clamp/log/trace/tau and U diag(tau) U^T.

    params_ref: SMEM f32[2]          = [mu, la]
    sigma_ref:  VMEM f32[3, R, 128]  singular values, batch dense on (sublane, lane)
    u_ref:      VMEM f32[9, R, 128]  U flattened row-major (plane 3*i+k = U[:, i, k])
    out_ref:    VMEM f32[9, R, 128]  stress flattened row-major (plane 3*i+j)
    """
    mu = params_ref[0]
    la = params_ref[1]
    two_mu = 2.0 * mu

    # Per-component epsilon / tau as dense (R, 128) planes (log goes to the EUP,
    # everything else is pure VPU work on full vregs).
    e0 = jnp.log(jnp.maximum(sigma_ref[0], 1e-5))
    e1 = jnp.log(jnp.maximum(sigma_ref[1], 1e-5))
    e2 = jnp.log(jnp.maximum(sigma_ref[2], 1e-5))
    la_tr = la * (e0 + e1 + e2)
    tau = (two_mu * e0 + la_tr,
           two_mu * e1 + la_tr,
           two_mu * e2 + la_tr)

    u = [u_ref[r] for r in range(9)]          # nine dense (R, 128) planes
    # w[3*i+k] = tau[k] * U[:, i, k]; shared across j -> saves 9 muls / particle.
    w = [tau[k] * u[3 * i + k] for i in range(3) for k in range(3)]

    # stress[b, i, j] = sum_k tau[b, k] * U[b, i, k] * U[b, j, k]
    # Symmetric: compute the 6 unique entries, mirror the off-diagonal ones.
    # Every store is a full dense (R, 128) plane -> unmasked vst.
    for i in range(3):
        for j in range(i, 3):
            acc = (w[3 * i + 0] * u[3 * j + 0]
                   + w[3 * i + 1] * u[3 * j + 1]
                   + w[3 * i + 2] * u[3 * j + 2])
            out_ref[3 * i + j] = acc
            if i != j:
                out_ref[3 * j + i] = acc


@jax.jit
def sigma_elasticity(F, log_E, nu):
    """F: (N, 3, 3) float32 -> stress: (N, 3, 3) float32."""
    F = F.astype(jnp.float32)
    log_E = jnp.asarray(log_E, jnp.float32).reshape(-1)[0]
    nu = jnp.asarray(nu, jnp.float32).reshape(-1)[0]
    E = jnp.exp(log_E)
    mu = E / (2.0 * (1.0 + nu))
    la = E * nu / ((1.0 + nu) * (1.0 - 2.0 * nu))
    params = jnp.stack([mu, la]).astype(jnp.float32)   # (2,) scalars -> SMEM

    # TODO(synk): batched 3x3 SVD has no Pallas TPU lowering; computed in plain JAX (glue).
    U, sigma, _ = jnp.linalg.svd(F)

    N = F.shape[0]
    Np = ((N + _PAD_GRAN - 1) // _PAD_GRAN) * _PAD_GRAN  # pad to (8,128)-aligned tiles
    Nb = Np // _LANES                                    # 128-wide batch rows (multiple of 8)
    R = min(_SUB_TILE, Nb)                               # sublane tile per grid step

    # Component-major, batch-dense layout: n -> (n // 128, n % 128).
    # XLA fuses pad + transpose + reshape into a single copy around the kernel.
    sig_t = jnp.pad(sigma.astype(jnp.float32), ((0, Np - N), (0, 0)))
    sig_t = sig_t.T.reshape(3, Nb, _LANES)                                     # (3, Nb, 128)
    u_t = jnp.pad(U.reshape(N, 9).astype(jnp.float32), ((0, Np - N), (0, 0)))
    u_t = u_t.T.reshape(9, Nb, _LANES)                                         # (9, Nb, 128)

    out = pl.pallas_call(
        _stress_kernel,
        out_shape=jax.ShapeDtypeStruct((9, Nb, _LANES), jnp.float32),
        grid_spec=pltpu.PrefetchScalarGridSpec(
            num_scalar_prefetch=0,
            grid=(pl.cdiv(Nb, R),),
            in_specs=[
                pl.BlockSpec(memory_space=pltpu.SMEM),               # [mu, la] scalars
                pl.BlockSpec((3, R, _LANES), lambda b: (0, b, 0)),   # sigma slab
                pl.BlockSpec((9, R, _LANES), lambda b: (0, b, 0)),   # U slab
            ],
            out_specs=pl.BlockSpec((9, R, _LANES), lambda b: (0, b, 0)),
        ),
        compiler_params=pltpu.CompilerParams(
            dimension_semantics=("parallel",),        # megacore: TCs split the batch
            vmem_limit_bytes=32 * 1024 * 1024,        # keep 2x buffering on v5e too
        ),
        cost_estimate=pl.CostEstimate(                # advisory: mem-bound elementwise op
            flops=60 * Np,
            transcendentals=3 * Np,
            bytes_accessed=(3 + 9 + 9) * Np * 4,
        ),
    )(params, sig_t, u_t)

    # Padded tail slots are elementwise-local garbage-free (zeros -> log(1e-5)) and
    # are sliced off here.
    stress = out.reshape(9, Np).T[:N].reshape(N, 3, 3)
    return stress


def sigma_elasticity_reference(F, log_E, nu):
    """Pure-JAX reference matching the PyTorch module exactly."""
    E = jnp.exp(jnp.asarray(log_E, jnp.float32))
    nu = jnp.asarray(nu, jnp.float32)
    mu = E / (2.0 * (1.0 + nu))
    la = E * nu / ((1.0 + nu) * (1.0 - 2.0 * nu))
    U, sigma, _ = jnp.linalg.svd(F)
    sigma = jnp.maximum(sigma, 1e-5)
    eps = jnp.log(sigma)
    trace = jnp.sum(eps, axis=1, keepdims=True)
    tau = 2.0 * mu * eps + la * trace
    return U @ (tau[..., None] * jnp.swapaxes(U, 1, 2))


if __name__ == "__main__":
    key = jax.random.PRNGKey(0)

    # Parameters exactly as in __init__ (deterministic, no checkpoint).
    log_E = jnp.log(jnp.array([100000.0], dtype=jnp.float32))
    nu = jnp.array([0.2], dtype=jnp.float32)

    # Small batch of deformation gradients: near-identity 3x3 matrices.
    N = 16
    F = jnp.eye(3, dtype=jnp.float32)[None] + 0.1 * jax.random.normal(
        key, (N, 3, 3), dtype=jnp.float32)

    stress = jax.block_until_ready(sigma_elasticity(F, log_E, nu))
    ref = sigma_elasticity_reference(F, log_E, nu)
    np.testing.assert_allclose(np.asarray(stress), np.asarray(ref),
                               rtol=2e-3, atol=1e-1)

    # Second check: batch that is not a multiple of 128 (exercises pad + layout path).
    N2 = 300
    F2 = jnp.eye(3, dtype=jnp.float32)[None] + 0.05 * jax.random.normal(
        jax.random.PRNGKey(1), (N2, 3, 3), dtype=jnp.float32)
    stress2 = jax.block_until_ready(sigma_elasticity(F2, log_E, nu))
    ref2 = sigma_elasticity_reference(F2, log_E, nu)
    np.testing.assert_allclose(np.asarray(stress2), np.asarray(ref2),
                               rtol=2e-3, atol=1e-1)

    print("KERNEL_OK")
</pallas_src>

<mosaic_0001>
module attributes {stable_mosaic.version = 11 : i64} {
  func.func @_stress_kernel(%arg0: i32, %arg1: memref<2xf32, #tpu.memory_space<smem>>, %arg2: memref<3x8x128xf32, #tpu.memory_space<vmem>>, %arg3: memref<9x8x128xf32, #tpu.memory_space<vmem>>, %arg4: memref<9x8x128xf32, #tpu.memory_space<vmem>>) attributes {dimension_semantics = [#tpu.dimension_semantics<parallel>], iteration_bounds = array<i64: 1>, scalar_prefetch = 0 : i64, scratch_operands = 0 : i64, tpu.core_type = #tpu.core_type<tc>, window_params = [{transform_indices = @transform_0, window_bounds = array<i64: 2>}, {transform_indices = @transform_1, window_bounds = array<i64: 3, 8, 128>}, {transform_indices = @transform_2, window_bounds = array<i64: 9, 8, 128>}, {transform_indices = @transform_3, window_bounds = array<i64: 9, 8, 128>}]} {
    %c0 = arith.constant 0 : index
    %0 = memref.load %arg1[%c0] : memref<2xf32, #tpu.memory_space<smem>>
    %c1 = arith.constant 1 : index
    %1 = memref.load %arg1[%c1] : memref<2xf32, #tpu.memory_space<smem>>
    %cst = arith.constant 2.000000e+00 : f32
    %2 = arith.mulf %cst, %0 : f32
    %c0_0 = arith.constant 0 : index
    %c0_1 = arith.constant 0 : index
    %c0_2 = arith.constant 0 : index
    %3 = vector.load %arg2[%c0_0, %c0_1, %c0_2] : memref<3x8x128xf32, #tpu.memory_space<vmem>>, vector<1x8x128xf32>
    %4 = vector.shape_cast %3 : vector<1x8x128xf32> to vector<8x128xf32>
    %cst_3 = arith.constant 9.99999974E-6 : f32
    %5 = vector.broadcast %cst_3 : f32 to vector<8x128xf32>
    %6 = arith.maximumf %4, %5 : vector<8x128xf32>
    %7 = math.log %6 : vector<8x128xf32>
    %c1_4 = arith.constant 1 : index
    %c0_5 = arith.constant 0 : index
    %c0_6 = arith.constant 0 : index
    %8 = vector.load %arg2[%c1_4, %c0_5, %c0_6] : memref<3x8x128xf32, #tpu.memory_space<vmem>>, vector<1x8x128xf32>
    %9 = vector.shape_cast %8 : vector<1x8x128xf32> to vector<8x128xf32>
    %cst_7 = arith.constant 9.99999974E-6 : f32
    %10 = vector.broadcast %cst_7 : f32 to vector<8x128xf32>
    %11 = arith.maximumf %9, %10 : vector<8x128xf32>
    %12 = math.log %11 : vector<8x128xf32>
    %c2 = arith.constant 2 : index
    %c0_8 = arith.constant 0 : index
    %c0_9 = arith.constant 0 : index
    %13 = vector.load %arg2[%c2, %c0_8, %c0_9] : memref<3x8x128xf32, #tpu.memory_space<vmem>>, vector<1x8x128xf32>
    %14 = vector.shape_cast %13 : vector<1x8x128xf32> to vector<8x128xf32>
    %cst_10 = arith.constant 9.99999974E-6 : f32
    %15 = vector.broadcast %cst_10 : f32 to vector<8x128xf32>
    %16 = arith.maximumf %14, %15 : vector<8x128xf32>
    %17 = math.log %16 : vector<8x128xf32>
    %18 = arith.addf %7, %12 : vector<8x128xf32>
    %19 = arith.addf %18, %17 : vector<8x128xf32>
    %20 = vector.broadcast %1 : f32 to vector<8x128xf32>
    %21 = arith.mulf %20, %19 : vector<8x128xf32>
    %22 = vector.broadcast %2 : f32 to vector<8x128xf32>
    %23 = arith.mulf %22, %7 : vector<8x128xf32>
    %24 = arith.addf %23, %21 : vector<8x128xf32>
    %25 = vector.broadcast %2 : f32 to vector<8x128xf32>
    %26 = arith.mulf %25, %12 : vector<8x128xf32>
    %27 = arith.addf %26, %21 : vector<8x128xf32>
    %28 = vector.broadcast %2 : f32 to vector<8x128xf32>
    %29 = arith.mulf %28, %17 : vector<8x128xf32>
    %30 = arith.addf %29, %21 : vector<8x128xf32>
    %c0_11 = arith.constant 0 : index
    %c0_12 = arith.constant 0 : index
    %c0_13 = arith.constant 0 : index
    %31 = vector.load %arg3[%c0_11, %c0_12, %c0_13] : memref<9x8x128xf32, #tpu.memory_space<vmem>>, vector<1x8x128xf32>
    %32 = vector.shape_cast %31 : vector<1x8x128xf32> to vector<8x128xf32>
    %c1_14 = arith.constant 1 : index
    %c0_15 = arith.constant 0 : index
    %c0_16 = arith.constant 0 : index
    %33 = vector.load %arg3[%c1_14, %c0_15, %c0_16] : memref<9x8x128xf32, #tpu.memory_space<vmem>>, vector<1x8x128xf32>
    %34 = vector.shape_cast %33 : vector<1x8x128xf32> to vector<8x128xf32>
    %c2_17 = arith.constant 2 : index
    %c0_18 = arith.constant 0 : index
    %c0_19 = arith.constant 0 : index
    %35 = vector.load %arg3[%c2_17, %c0_18, %c0_19] : memref<9x8x128xf32, #tpu.memory_space<vmem>>, vector<1x8x128xf32>
    %36 = vector.shape_cast %35 : vector<1x8x128xf32> to vector<8x128xf32>
    %c3 = arith.constant 3 : index
    %c0_20 = arith.constant 0 : index
    %c0_21 = arith.constant 0 : index
    %37 = vector.load %arg3[%c3, %c0_20, %c0_21] : memref<9x8x128xf32, #tpu.memory_space<vmem>>, vector<1x8x128xf32>
    %38 = vector.shape_cast %37 : vector<1x8x128xf32> to vector<8x128xf32>
    %c4 = arith.constant 4 : index
    %c0_22 = arith.constant 0 : index
    %c0_23 = arith.constant 0 : index
    %39 = vector.load %arg3[%c4, %c0_22, %c0_23] : memref<9x8x128xf32, #tpu.memory_space<vmem>>, vector<1x8x128xf32>
    %40 = vector.shape_cast %39 : vector<1x8x128xf32> to vector<8x128xf32>
    %c5 = arith.constant 5 : index
    %c0_24 = arith.constant 0 : index
    %c0_25 = arith.constant 0 : index
    %41 = vector.load %arg3[%c5, %c0_24, %c0_25] : memref<9x8x128xf32, #tpu.memory_space<vmem>>, vector<1x8x128xf32>
    %42 = vector.shape_cast %41 : vector<1x8x128xf32> to vector<8x128xf32>
    %c6 = arith.constant 6 : index
    %c0_26 = arith.constant 0 : index
    %c0_27 = arith.constant 0 : index
    %43 = vector.load %arg3[%c6, %c0_26, %c0_27] : memref<9x8x128xf32, #tpu.memory_space<vmem>>, vector<1x8x128xf32>
    %44 = vector.shape_cast %43 : vector<1x8x128xf32> to vector<8x128xf32>
    %c7 = arith.constant 7 : index
    %c0_28 = arith.constant 0 : index
    %c0_29 = arith.constant 0 : index
    %45 = vector.load %arg3[%c7, %c0_28, %c0_29] : memref<9x8x128xf32, #tpu.memory_space<vmem>>, vector<1x8x128xf32>
    %46 = vector.shape_cast %45 : vector<1x8x128xf32> to vector<8x128xf32>
    %c8 = arith.constant 8 : index
    %c0_30 = arith.constant 0 : index
    %c0_31 = arith.constant 0 : index
    %47 = vector.load %arg3[%c8, %c0_30, %c0_31] : memref<9x8x128xf32, #tpu.memory_space<vmem>>, vector<1x8x128xf32>
    %48 = vector.shape_cast %47 : vector<1x8x128xf32> to vector<8x128xf32>
    %49 = arith.mulf %24, %32 : vector<8x128xf32>
    %50 = arith.mulf %27, %34 : vector<8x128xf32>
    %51 = arith.mulf %30, %36 : vector<8x128xf32>
    %52 = arith.mulf %24, %38 : vector<8x128xf32>
    %53 = arith.mulf %27, %40 : vector<8x128xf32>
    %54 = arith.mulf %30, %42 : vector<8x128xf32>
    %55 = arith.mulf %24, %44 : vector<8x128xf32>
    %56 = arith.mulf %27, %46 : vector<8x128xf32>
    %57 = arith.mulf %30, %48 : vector<8x128xf32>
    %58 = arith.mulf %49, %32 : vector<8x128xf32>
    %59 = arith.mulf %50, %34 : vector<8x128xf32>
    %60 = arith.addf %58, %59 : vector<8x128xf32>
    %61 = arith.mulf %51, %36 : vector<8x128xf32>
    %62 = arith.addf %60, %61 : vector<8x128xf32>
    %c0_32 = arith.constant 0 : index
    %c0_33 = arith.constant 0 : index
    %c0_34 = arith.constant 0 : index
    %63 = vector.load %arg4[%c0_32, %c0_33, %c0_34] : memref<9x8x128xf32, #tpu.memory_space<vmem>>, vector<1x8x128xf32>
    %64 = vector.shape_cast %63 : vector<1x8x128xf32> to vector<8x128xf32>
    %65 = vector.shape_cast %62 : vector<8x128xf32> to vector<1x8x128xf32>
    tpu.vector_store %arg4[%c0_32, %c0_33, %c0_34], %65 {strides = array<i32>} : memref<9x8x128xf32, #tpu.memory_space<vmem>>, vector<1x8x128xf32>,
    %66 = arith.mulf %49, %38 : vector<8x128xf32>
    %67 = arith.mulf %50, %40 : vector<8x128xf32>
    %68 = arith.addf %66, %67 : vector<8x128xf32>
    %69 = arith.mulf %51, %42 : vector<8x128xf32>
    %70 = arith.addf %68, %69 : vector<8x128xf32>
    %c1_35 = arith.constant 1 : index
    %c0_36 = arith.constant 0 : index
    %c0_37 = arith.constant 0 : index
    %71 = vector.load %arg4[%c1_35, %c0_36, %c0_37] : memref<9x8x128xf32, #tpu.memory_space<vmem>>, vector<1x8x128xf32>
    %72 = vector.shape_cast %71 : vector<1x8x128xf32> to vector<8x128xf32>
    %73 = vector.shape_cast %70 : vector<8x128xf32> to vector<1x8x128xf32>
    tpu.vector_store %arg4[%c1_35, %c0_36, %c0_37], %73 {strides = array<i32>} : memref<9x8x128xf32, #tpu.memory_space<vmem>>, vector<1x8x128xf32>,
    %c3_38 = arith.constant 3 : index
    %c0_39 = arith.constant 0 : index
    %c0_40 = arith.constant 0 : index
    %74 = vector.load %arg4[%c3_38, %c0_39, %c0_40] : memref<9x8x128xf32, #tpu.memory_space<vmem>>, vector<1x8x128xf32>
    %75 = vector.shape_cast %74 : vector<1x8x128xf32> to vector<8x128xf32>
    %76 = vector.shape_cast %70 : vector<8x128xf32> to vector<1x8x128xf32>
    tpu.vector_store %arg4[%c3_38, %c0_39, %c0_40], %76 {strides = array<i32>} : memref<9x8x128xf32, #tpu.memory_space<vmem>>, vector<1x8x128xf32>,
    %77 = arith.mulf %49, %44 : vector<8x128xf32>
    %78 = arith.mulf %50, %46 : vector<8x128xf32>
    %79 = arith.addf %77, %78 : vector<8x128xf32>
    %80 = arith.mulf %51, %48 : vector<8x128xf32>
    %81 = arith.addf %79, %80 : vector<8x128xf32>
    %c2_41 = arith.constant 2 : index
    %c0_42 = arith.constant 0 : index
    %c0_43 = arith.constant 0 : index
    %82 = vector.load %arg4[%c2_41, %c0_42, %c0_43] : memref<9x8x128xf32, #tpu.memory_space<vmem>>, vector<1x8x128xf32>
    %83 = vector.shape_cast %82 : vector<1x8x128xf32> to vector<8x128xf32>
    %84 = vector.shape_cast %81 : vector<8x128xf32> to vector<1x8x128xf32>
    tpu.vector_store %arg4[%c2_41, %c0_42, %c0_43], %84 {strides = array<i32>} : memref<9x8x128xf32, #tpu.memory_space<vmem>>, vector<1x8x128xf32>,
    %c6_44 = arith.constant 6 : index
    %c0_45 = arith.constant 0 : index
    %c0_46 = arith.constant 0 : index
    %85 = vector.load %arg4[%c6_44, %c0_45, %c0_46] : memref<9x8x128xf32, #tpu.memory_space<vmem>>, vector<1x8x128xf32>
    %86 = vector.shape_cast %85 : vector<1x8x128xf32> to vector<8x128xf32>
    %87 = vector.shape_cast %81 : vector<8x128xf32> to vector<1x8x128xf32>
    tpu.vector_store %arg4[%c6_44, %c0_45, %c0_46], %87 {strides = array<i32>} : memref<9x8x128xf32, #tpu.memory_space<vmem>>, vector<1x8x128xf32>,
    %88 = arith.mulf %52, %38 : vector<8x128xf32>
    %89 = arith.mulf %53, %40 : vector<8x128xf32>
    %90 = arith.addf %88, %89 : vector<8x128xf32>
    %91 = arith.mulf %54, %42 : vector<8x128xf32>
    %92 = arith.addf %90, %91 : vector<8x128xf32>
    %c4_47 = arith.constant 4 : index
    %c0_48 = arith.constant 0 : index
    %c0_49 = arith.constant 0 : index
    %93 = vector.load %arg4[%c4_47, %c0_48, %c0_49] : memref<9x8x128xf32, #tpu.memory_space<vmem>>, vector<1x8x128xf32>
    %94 = vector.shape_cast %93 : vector<1x8x128xf32> to vector<8x128xf32>
    %95 = vector.shape_cast %92 : vector<8x128xf32> to vector<1x8x128xf32>
    tpu.vector_store %arg4[%c4_47, %c0_48, %c0_49], %95 {strides = array<i32>} : memref<9x8x128xf32, #tpu.memory_space<vmem>>, vector<1x8x128xf32>,
    %96 = arith.mulf %52, %44 : vector<8x128xf32>
    %97 = arith.mulf %53, %46 : vector<8x128xf32>
    %98 = arith.addf %96, %97 : vector<8x128xf32>
    %99 = arith.mulf %54, %48 : vector<8x128xf32>
    %100 = arith.addf %98, %99 : vector<8x128xf32>
    %c5_50 = arith.constant 5 : index
    %c0_51 = arith.constant 0 : index
    %c0_52 = arith.constant 0 : index
    %101 = vector.load %arg4[%c5_50, %c0_51, %c0_52] : memref<9x8x128xf32, #tpu.memory_space<vmem>>, vector<1x8x128xf32>
    %102 = vector.shape_cast %101 : vector<1x8x128xf32> to vector<8x128xf32>
    %103 = vector.shape_cast %100 : vector<8x128xf32> to vector<1x8x128xf32>
    tpu.vector_store %arg4[%c5_50, %c0_51, %c0_52], %103 {strides = array<i32>} : memref<9x8x128xf32, #tpu.memory_space<vmem>>, vector<1x8x128xf32>,
    %c7_53 = arith.constant 7 : index
    %c0_54 = arith.constant 0 : index
    %c0_55 = arith.constant 0 : index
    %104 = vector.load %arg4[%c7_53, %c0_54, %c0_55] : memref<9x8x128xf32, #tpu.memory_space<vmem>>, vector<1x8x128xf32>
    %105 = vector.shape_cast %104 : vector<1x8x128xf32> to vector<8x128xf32>
    %106 = vector.shape_cast %100 : vector<8x128xf32> to vector<1x8x128xf32>
    tpu.vector_store %arg4[%c7_53, %c0_54, %c0_55], %106 {strides = array<i32>} : memref<9x8x128xf32, #tpu.memory_space<vmem>>, vector<1x8x128xf32>,
    %107 = arith.mulf %55, %44 : vector<8x128xf32>
    %108 = arith.mulf %56, %46 : vector<8x128xf32>
    %109 = arith.addf %107, %108 : vector<8x128xf32>
    %110 = arith.mulf %57, %48 : vector<8x128xf32>
    %111 = arith.addf %109, %110 : vector<8x128xf32>
    %c8_56 = arith.constant 8 : index
    %c0_57 = arith.constant 0 : index
    %c0_58 = arith.constant 0 : index
    %112 = vector.load %arg4[%c8_56, %c0_57, %c0_58] : memref<9x8x128xf32, #tpu.memory_space<vmem>>, vector<1x8x128xf32>
    %113 = vector.shape_cast %112 : vector<1x8x128xf32> to vector<8x128xf32>
    %114 = vector.shape_cast %111 : vector<8x128xf32> to vector<1x8x128xf32>
    tpu.vector_store %arg4[%c8_56, %c0_57, %c0_58], %114 {strides = array<i32>} : memref<9x8x128xf32, #tpu.memory_space<vmem>>, vector<1x8x128xf32>,
    return
  }
  func.func @transform_0(%arg0: i32) -> i32 {
    %c0_i32 = arith.constant 0 : i32
    %c0_i32_0 = arith.constant 0 : i32
    return %c0_i32 : i32
  }
  func.func @transform_1(%arg0: i32) -> (i32, i32, i32) {
    %c0_i32 = arith.constant 0 : i32
    %c0_i32_0 = arith.constant 0 : i32
    %c0_i32_1 = arith.constant 0 : i32
    return %c0_i32, %arg0, %c0_i32_0 : i32, i32, i32
  }
  func.func @transform_2(%arg0: i32) -> (i32, i32, i32) {
    %c0_i32 = arith.constant 0 : i32
    %c0_i32_0 = arith.constant 0 : i32
    %c0_i32_1 = arith.constant 0 : i32
    return %c0_i32, %arg0, %c0_i32_0 : i32, i32, i32
  }
  func.func @transform_3(%arg0: i32) -> (i32, i32, i32) {
    %c0_i32 = arith.constant 0 : i32
    %c0_i32_0 = arith.constant 0 : i32
    %c0_i32_1 = arith.constant 0 : i32
    return %c0_i32, %arg0, %c0_i32_0 : i32, i32, i32
  }
}

</mosaic_0001>

<llo_original>
// kernel: custom-call.57
$region0: #{custom-call.57}
  %s0 = inlined_call_operand.vmem [shape: f32[16,6,3], index: 0, kind: input, shape index: {}]
  %s1 = inlined_call_operand.vmem [shape: f32[16,6,3], index: 1, kind: output, shape index: {0}]
  %s2 = inlined_call_operand.vmem [shape: f32[16,3], index: 2, kind: output, shape index: {1}]
  %3 = xla_tuple %s1, %s2
  $region1: #{custom-call.57} parent=0
    #allocation0 [shape = 'u8[8192]{0}', space=vmem, size = 0x2000, scoped, tag = 'operand span for operand 0']
    #allocation1 [shape = 'u8[8192]{0}', space=vmem, size = 0x2000, scoped, tag = 'operand span for operand 1']
    #allocation2 [shape = 'u8[8192]{0}', space=vmem, size = 0x2000, scoped, tag = 'operand span for operand 2']
    loop: start=0, step=1, limit=18
    $region2: #{custom-call.57} parent=1 // loop_pre_header
      _
    $region3: #{custom-call.57} parent=1 // loop_header
      %s5 = sphi 0, %s9
      %p6 = scmp.ge.s32.totalorder %s5, 18
      %s12 = sphi 0, %s31
      %s13 = sphi 0, %s27
      %s14 = sphi 0, %s23
      %s15 = sphi 0, %s12
      %s16 = sphi 0, %s13
      %s17 = sphi 0, %s14
      %s18 = sphi 0, %s15
      %s19 = sphi 0, %s16
      %s20 = sphi 0, %s17
      %s46 = sphi 0, %s48
      %s49 = sphi 0, %s46
      %s50 = sphi 0, %s49
      %s66 = sphi 0, %s50
    $region4: #{custom-call.57} parent=1 // loop_header_branch
      %8 = sbr.rel (%p6) target = $region8
    $region5: #{custom-call.57} parent=1 // loop_body
      %s10 = ssub.s32 %s5, 1
      %s11 = ssub.s32 %s5, 2
      %s21 = sadd.s32 1, %s14
      %p22 = scmp.ge.s32.totalorder %s21, 1
      %s23 = scalar_select %p22, 0, %s21
      %s24 = sadd.s32 1, %s13
      %s25 = scalar_select %p22, %s24, %s13
      %p26 = scmp.ge.s32.totalorder %s25, 1
      %s27 = scalar_select %p26, 0, %s25
      %s28 = sadd.s32 1, %s12
      %s29 = scalar_select %p26, %s28, %s12
      %p30 = scmp.ge.s32.totalorder %s29, 16
      %s31 = scalar_select %p30, 0, %s29
      %p32 = scmp.lt.s32.totalorder %s12, 0
      %s33 = ssub.s32 0, %s12
      %s34 = scalar_select %p32, %s33, %s12
      %s35 = sshrl.u32 %s34, 3
      %s36 = ssub.s32 0, %s35
      %s37 = scalar_select %p32, %s36, %s35
      %p38 = scmp.lt.s32.totalorder %s31, 0
      %s39 = ssub.s32 0, %s31
      %s40 = scalar_select %p38, %s39, %s31
      %s41 = sshrl.u32 %s40, 3
      %s42 = ssub.s32 0, %s41
      %s43 = scalar_select %p38, %s42, %s41
      %s44 = ssub.s32 %s37, %s43
      %p45 = scmp.eq.s32.totalorder %s44, 0
      %s47 = sadd.s32 %s46, 1
      %s48 = scalar_select %p45, %s46, %s47
      %p51 = pneg %p45
      %p52 = scmp.eq.s32.totalorder %s5, 15
      %p53 = por %p51, %p52
      %p54 = scmp.ne.s32.totalorder %s46, %s49
      %p55 = scmp.eq.s32.totalorder %s5, 0
      %p56 = por %p54, %p55
      %p57 = scmp.ne.s32.totalorder %s46, %s49
      %p58 = scmp.eq.s32.totalorder %s10, 15
      %p59 = por %p57, %p58
      %p60 = scmp.ne.s32.totalorder %s49, %s50
      %p61 = scmp.eq.s32.totalorder %s10, 0
      %p62 = por %p60, %p61
      %p63 = scmp.ne.s32.totalorder %s49, %s50
      %p64 = scmp.eq.s32.totalorder %s11, 15
      %p65 = por %p63, %p64
      %p67 = scmp.ne.s32.totalorder %s50, %s66
      %p68 = scmp.eq.s32.totalorder %s11, 0
      %p69 = por %p67, %p68
      %p70 = scmp.le.s32.totalorder 1, %s5
      %p71 = scmp.lt.s32.totalorder %s5, 17
      %p72 = pnand %p70, %p71
      %p73 = pneg %p72
      // Predicated region
      $region9: #{custom-call.57} parent=5 // pred_check
        _
      $region10: #{custom-call.57} parent=5 // pred_check_branch
        %75 = sbr.rel (%p72) target = $region12
      $region11: #{custom-call.57} parent=5 // pred_region
        %s76 = ssub.s32 %s5, 1
      $region12: #{custom-call.57} parent=5 // pred_fallthru
        _
      %p77 = scmp.lt.s32.totalorder %s5, 16
      // Predicated region
      $region13: #{custom-call.57} parent=5 // pred_check
        %p78 = pneg %p77
      $region14: #{custom-call.57} parent=5 // pred_check_branch
        %80 = sbr.rel (%p78) target = $region16
      $region15: #{custom-call.57} parent=5 // pred_region
        %s81 = sand.u32 %s5, 1
        %s82 = sand.u32 %s5, 1
        %s83 = smul.addr %s82, 8
        %s84 = scalar_lea.vmem [#allocation0], %s83
        %s85 = sadd.s32 %s14, %s13
        %s86 = sadd.s32 %s85, %s12
        %s87 = smul.addr %s86, 8
        %s88 = scalar_lea.vmem %s0, %s87
        // Predicated region
        $region17: #{custom-call.57} parent=15 // pred_check
          _
        $region18: #{custom-call.57} parent=15 // pred_check_branch
          %90 = sbr.rel (0) target = $region20
        $region19: #{custom-call.57} parent=15 // pred_region
          // Predicated region
          $region21: #{custom-call.57} parent=19 // pred_check
            _
          $region22: #{custom-call.57} parent=19 // pred_check_branch
            %92 = sbr.rel (0) target = $region24
          $region23: #{custom-call.57} parent=19 // pred_region
            // Predicated region
            $region36: #{custom-call.57} parent=23 // pred_check
              _
            $region37: #{custom-call.57} parent=23 // pred_check_branch
              %107 = sbr.rel (0) target = $region39
            $region38: #{custom-call.57} parent=23 // pred_region
              loop: start=0, step=1, limit=1
              $region40: #{custom-call.57} parent=38 // loop_pre_header
                _
              $region41: #{custom-call.57} parent=38 // loop_header
                %s109 = sphi 0, %s113
                %p110 = scmp.ge.s32.totalorder %s109, 1
                %s114 = sphi %s88, %s88
                %s115 = sphi %s84, %s84
              $region42: #{custom-call.57} parent=38 // loop_header_branch
                %112 = sbr.rel (%p110) target = $region46
              $region43: #{custom-call.57} parent=38 // loop_body
                %v116 = vld [vmem:[%s114] sm:$0xff]
                %117 = vst [vmem:[%s115] sm:$0xff] %v116
              $region44: #{custom-call.57} parent=38 // loop_footer
                %s113 = sadd.s32 1, %s109
              $region45: #{custom-call.57} parent=38 // loop_footer_branch
                %108 = sbr.rel target = $region41
              $region46: #{custom-call.57} parent=38 // loop_exit
                _
            $region39: #{custom-call.57} parent=23 // pred_fallthru
              _
            // Predicated region
            $region47: #{custom-call.57} parent=23 // pred_check
              _
            $region48: #{custom-call.57} parent=23 // pred_check_branch
              %119 = sbr.rel target = $region50
            $region49: #{custom-call.57} parent=23 // pred_region
              _
            $region50: #{custom-call.57} parent=23 // pred_fallthru
              _
          $region24: #{custom-call.57} parent=19 // pred_fallthru
            _
          // Predicated region
          $region25: #{custom-call.57} parent=19 // pred_check
            _
          $region26: #{custom-call.57} parent=19 // pred_check_branch
            %94 = sbr.rel target = $region28
          $region27: #{custom-call.57} parent=19 // pred_region
            loop: start=0, step=1, limit=1
            $region29: #{custom-call.57} parent=27 // loop_pre_header
              _
            $region30: #{custom-call.57} parent=27 // loop_header
              %s97 = sphi 0, %s101
              %p98 = scmp.ge.s32.totalorder %s97, 1
              %s102 = sphi %s88, %s88
              %s103 = sphi %s84, %s84
            $region31: #{custom-call.57} parent=27 // loop_header_branch
              %100 = sbr.rel (%p98) target = $region35
            $region32: #{custom-call.57} parent=27 // loop_body
              %v104 = vld [vmem:[%s102] sm:$0xff]
              %105 = vst [vmem:[%s103] sm:$0xff] %v104
            $region33: #{custom-call.57} parent=27 // loop_footer
              %s101 = sadd.s32 1, %s97
            $region34: #{custom-call.57} parent=27 // loop_footer_branch
              %96 = sbr.rel target = $region30
            $region35: #{custom-call.57} parent=27 // loop_exit
              _
          $region28: #{custom-call.57} parent=19 // pred_fallthru
            _
        $region20: #{custom-call.57} parent=15 // pred_fallthru
          _
        %120 = vnop
      $region16: #{custom-call.57} parent=5 // pred_fallthru
        _
      %p121 = scmp.le.s32.totalorder 1, %s5
      %p122 = scmp.lt.s32.totalorder %s5, 17
      %p123 = pnand %p121, %p122
      %p124 = pneg %p123
      // Predicated region
      $region51: #{custom-call.57} parent=5 // pred_check
        _
      $region52: #{custom-call.57} parent=5 // pred_check_branch
        %126 = sbr.rel (%p123) target = $region54
      $region53: #{custom-call.57} parent=5 // pred_region
        #allocation3 [shape = 'f32[6,128]{1,0}', space=vmem, size = 0x1000, scoped, tag = 'scratch for Householder reflectors']
        %s127 = ssub.s32 %s5, 1
        %s128 = sand.u32 %s10, 1
        %s129 = sand.u32 %s10, 1
        %s130 = smul.addr %s129, 8
        %s131 = scalar_lea.vmem [#allocation0], %s130
        %s132 = sand.u32 %s10, 1
        %s133 = sand.u32 %s10, 1
        %s134 = smul.addr %s133, 8
        %s135 = scalar_lea.vmem [#allocation0], %s134
        %s136 = sand.u32 %s10, 1
        %s137 = sand.u32 %s10, 1
        %s138 = smul.addr %s137, 8
        %s139 = scalar_lea.vmem [#allocation1], %s138
        %p140 = pneg %p62
        %p141 = pneg %p59
        %s142 = sand.u32 %s49, 1
        %s143 = sand.u32 %s49, 1
        %s144 = smul.addr %s143, 8
        %s145 = scalar_lea.vmem [#allocation2], %s144
        %p146 = scmp.lt.s32.totalorder %s15, 0
        %s147 = ssub.s32 0, %s15
        %s148 = scalar_select %p146, %s147, %s15
        %s149 = sshrl.u32 %s148, 3
        %s150 = ssub.s32 0, %s149
        %s151 = scalar_select %p146, %s150, %s149
        %s152 = sand.u32 %s15, 7
        %s153 = scalar_lea.vmem %s145, %s152 [#allocation2]
        %v154 = vld [vmem:[%s131] sm:$0xff]
        %155 = vst [vmem:[%s139] sm:$0xff] %v154
        %156 = vst [vmem:[%s153] sm:$0x1] 0.0
        loop: start=0, step=1, limit=3
        $region55: #{custom-call.57} parent=53 // loop_pre_header
          _
        $region56: #{custom-call.57} parent=53 // loop_header
          %s158 = sphi 0, %s162
          %p159 = scmp.ge.s32.totalorder %s158, 3
        $region57: #{custom-call.57} parent=53 // loop_header_branch
          %161 = sbr.rel (%p159) target = $region61
        $region58: #{custom-call.57} parent=53 // loop_body
          %v163 = vld [vmem:[%s139] sm:$0xff]
          %v164 = vlaneseq
          %v165 = vshrl.u32 %v164, 7
          %v167 = vstv %s158
          %vm168 = vcmp.gt.s32.totalorder %v165, %v167
          %vm169 = vcmp.lt.s32.totalorder %v165, 6
          %vm170 = vmand %vm168, %vm169
          %v171 = vsel %vm170, %v163, 0.0
          %v172 = vmul.f32 %v171, %v171
          %v173 = vrot.slane %v172, 4
          %v174 = vadd.f32 %v172, %v173
          %v175 = vrot.slane %v174, 2
          %v176 = vadd.f32 %v174, %v175
          %v177 = vrot.slane %v176, 1
          %v178 = vadd.f32 %v176, %v177
          %v179 = vrsqrt.pop %v178
          %v180 = vmul.f32 %v178, %v179
          %vm181 = vcmp.eq.f32.partialorder %v178, inf
          %v182 = vsel %vm181, %v178, %v180
          %vm183 = vcmp.eq.f32.partialorder %v178, 0.0
          %v184 = vand.u32 %v178, 2147483648
          %v185 = vsel %vm183, %v184, %v182
          %vm186 = vcmp.eq.f32.partialorder %v178, 0.0
          %s187 = sshrl.u32 %s158, 3
          %s188 = sand.u32 %s158, 7
          %s189 = smul.addr %s187, 8
          %s190 = sadd.s32 %s188, %s189
          %s191 = scalar_lea.vmem %s139, %s190 [#allocation1]
          %v192 = vld [vmem:[%s191] ss:$0 sm:$0xff]
          %v193 = vand.u32 2147483647, %v192
          %v194 = vmax.f32 %v193, 0.0
          %v195 = vand.u32 2147483647, %v185
          %v196 = vmax.f32 %v194, %v195
          %v197 = vrcp.pop %v196
          %v198 = vmul.f32 %v193, %v197
          %v199 = vmul.f32 %v198, %v198
          %v200 = vrcp.pop %v196
          %v201 = vmul.f32 0.0, %v200
          %v202 = vmul.f32 %v201, %v201
          %v203 = vadd.f32 %v199, %v202
          %v204 = vrcp.pop %v196
          %v205 = vmul.f32 %v195, %v204
          %v206 = vmul.f32 %v205, %v205
          %v207 = vadd.f32 %v203, %v206
          %vm208 = vcmp.eq.f32.partialorder %v196, 0.0
          %v209 = vrsqrt.pop %v207
          %v210 = vmul.f32 %v207, %v209
          %vm211 = vcmp.eq.f32.partialorder %v207, inf
          %v212 = vsel %vm211, %v207, %v210
          %vm213 = vcmp.eq.f32.partialorder %v207, 0.0
          %v214 = vand.u32 %v207, 2147483648
          %v215 = vsel %vm213, %v214, %v212
          %v216 = vmul.f32 %v196, %v215
          %v217 = vsel %vm208, 0.0, %v216
          %vm218 = vcmp.lt.f32.partialorder %v192, 0.0
          %v219 = vxor.u32 %v217, 2147483648
          %v220 = vsel %vm218, %v217, %v219
          %v221 = vsub.f32 %v220, %v192
          %v222 = vrcp.pop %v220
          %v223 = vmul.f32 %v221, %v222
          %v224 = vsel %vm186, %v192, %v220
          %v225 = vsel %vm186, 0.0, %v223
          %v226 = vsub.f32 %v192, %v224
          %s227 = smov %s139
          %v228 = vlaneseq
          %v229 = vshrl.u32 %v228, 7
          %v230 = vmov %v229
          %v231 = vld [vmem:[%s227] sm:$0xff]
          %v233 = vstv %s158
          %vm234 = vcmp.gt.s32.totalorder %v230, %v233
          %vm235 = vcmp.lt.s32.totalorder %v230, 6
          %vm236 = vmand %vm234, %vm235
          %v237 = vsel %vm236, %v231, 0.0
          %v238 = vrcp.pop %v226
          %v239 = vmul.f32 %v237, %v238
          %v240 = vsel %vm186, 0.0, %v239
          %v241 = vstv %s158
          %v242 = vlaneseq
          %v243 = vand.u32 %v242, 127
          %vm244 = vcmp.eq.s32.totalorder %v243, %v241
          %v245 = vsel %vm244, %v240, 0.0
          %246 = vadd.xlane.f32.xlu0 %v245
          %v247 = vpop.xlane.xlu0 %246
          %248 = vst [vmem:[#allocation3] sm:$0xff] %v247
          %s249 = scalar_lea.vmem [#allocation3], %s158
          %250 = vst [vmem:[%s249] sm:$0x1] 1.0
          %v251 = vstv %s158
          %v252 = vlaneseq
          %v253 = vand.u32 %v252, 127
          %vm254 = vcmp.eq.s32.totalorder %v253, %v251
          %v255 = vsel %vm254, %v225, 0.0
          %256 = vadd.xlane.f32.xlu0 %v255
          %v257 = vpop.xlane.xlu0 %256
          %v258 = vstv %s158
          %v259 = vlaneseq
          %v260 = vand.u32 %v259, 127
          %vm261 = vcmp.eq.s32.totalorder %v260, %v258
          %v262 = vld [vmem:[%s153] ss:$0 sm:$0xff]
          %v263 = vsel %vm261, %v257, %v262
          %264 = vst [vmem:[%s153] sm:$0x1] %v263
          %s265 = smov %s139
          %s266 = smov [#allocation3]
          %v267 = vlaneseq
          %v268 = vshrl.u32 %v267, 7
          %v269 = vmov %v268
          %v271 = vld [vmem:[%s266] sm:$0xff]
          %v272 = vld [vmem:[%s265] sm:$0xff]
          %v273 = vmul.f32 %v271, %v272
          %vm274 = vcmp.lt.s32.totalorder %v269, 6
          %v275 = vsel %vm274, %v273, 0.0
          %v276 = vrot.slane %v275, 4
          %v277 = vadd.f32 %v275, %v276
          %v278 = vrot.slane %v277, 2
          %v279 = vadd.f32 %v277, %v278
          %v280 = vrot.slane %v279, 1
          %v281 = vadd.f32 %v279, %v280
          %s282 = smov %s265
          %s283 = smov %s266
          %v284 = vlaneseq
          %v285 = vshrl.u32 %v284, 7
          %v286 = vmov %v285
          %v287 = vmul.f32 %v281, %v257
          %v289 = vlaneseq
          %v290 = vand.u32 %v289, 127
          %v291 = vld [vmem:[%s283] sm:$0xff]
          %v292 = vmul.f32 %v291, %v287
          %v293 = vld [vmem:[%s282] sm:$0xff]
          %v294 = vstv %s158
          %vm295 = vcmp.gt.s32.totalorder %v290, %v294
          %v296 = vsub.f32 %v293, %v292
          %v297 = vsel %vm295, %v296, %v293
          %v298 = vstv %s158
          %v299 = vlaneseq
          %v300 = vand.u32 %v299, 127
          %vm301 = vcmp.eq.s32.totalorder %v300, %v298
          %v302 = vstv %s158
          %vm303 = vcmp.ge.s32.totalorder %v286, %v302
          %vm304 = vmand %vm301, %vm303
          %v305 = vsel %vm304, %v291, %v297
          %306 = vst [vmem:[%s282] sm:$0xff] %v305
          %s307 = scalar_lea.vmem %s282, %s158
          %v308 = vld [vmem:[%s307] ss:$0 sm:$0xff]
          %v309 = vstv %s158
          %v310 = vlaneseq
          %v311 = vand.u32 %v310, 127
          %vm312 = vcmp.eq.s32.totalorder %v311, %v309
          %v313 = vsel %vm312, %v224, %v308
          %314 = vst [vmem:[%s307] sm:$0x1] %v313
        $region59: #{custom-call.57} parent=53 // loop_footer
          %s162 = sadd.s32 1, %s158
        $region60: #{custom-call.57} parent=53 // loop_footer_branch
          %157 = sbr.rel target = $region56
        $region61: #{custom-call.57} parent=53 // loop_exit
          _
        %s315 = sand.u32 %s10, 1
        %s316 = sand.u32 %s10, 1
        %s317 = smul.addr %s316, 8
        %s318 = scalar_lea.vmem [#allocation1], %s317
        %s319 = sand.u32 %s49, 1
        %s320 = sand.u32 %s49, 1
        %s321 = smul.addr %s320, 8
        %s322 = scalar_lea.vmem [#allocation2], %s321
        %s323 = sadd.s32 %s17, %s16
        %s324 = sadd.s32 %s323, %s15
        %s325 = smul.addr %s324, 8
        %s326 = scalar_lea.vmem %s1, %s325
        // Predicated region
        $region62: #{custom-call.57} parent=53 // pred_check
          _
        $region63: #{custom-call.57} parent=53 // pred_check_branch
          %328 = sbr.rel (0) target = $region65
        $region64: #{custom-call.57} parent=53 // pred_region
          // Predicated region
          $region66: #{custom-call.57} parent=64 // pred_check
            _
          $region67: #{custom-call.57} parent=64 // pred_check_branch
            %330 = sbr.rel (0) target = $region69
          $region68: #{custom-call.57} parent=64 // pred_region
            // Predicated region
            $region81: #{custom-call.57} parent=68 // pred_check
              _
            $region82: #{custom-call.57} parent=68 // pred_check_branch
              %345 = sbr.rel (0) target = $region84
            $region83: #{custom-call.57} parent=68 // pred_region
              loop: start=0, step=1, limit=1
              $region85: #{custom-call.57} parent=83 // loop_pre_header
                _
              $region86: #{custom-call.57} parent=83 // loop_header
                %s347 = sphi 0, %s351
                %p348 = scmp.ge.s32.totalorder %s347, 1
                %s352 = sphi %s318, %s318
                %s353 = sphi %s326, %s326
              $region87: #{custom-call.57} parent=83 // loop_header_branch
                %350 = sbr.rel (%p348) target = $region91
              $region88: #{custom-call.57} parent=83 // loop_body
                %v354 = vld [vmem:[%s352] sm:$0xff]
                %355 = vst [vmem:[%s353] sm:$0xff] %v354
              $region89: #{custom-call.57} parent=83 // loop_footer
                %s351 = sadd.s32 1, %s347
              $region90: #{custom-call.57} parent=83 // loop_footer_branch
                %346 = sbr.rel target = $region86
              $region91: #{custom-call.57} parent=83 // loop_exit
                _
            $region84: #{custom-call.57} parent=68 // pred_fallthru
              _
            // Predicated region
            $region92: #{custom-call.57} parent=68 // pred_check
              _
            $region93: #{custom-call.57} parent=68 // pred_check_branch
              %357 = sbr.rel target = $region95
            $region94: #{custom-call.57} parent=68 // pred_region
              _
            $region95: #{custom-call.57} parent=68 // pred_fallthru
              _
          $region69: #{custom-call.57} parent=64 // pred_fallthru
            _
          // Predicated region
          $region70: #{custom-call.57} parent=64 // pred_check
            _
          $region71: #{custom-call.57} parent=64 // pred_check_branch
            %332 = sbr.rel target = $region73
          $region72: #{custom-call.57} parent=64 // pred_region
            loop: start=0, step=1, limit=1
            $region74: #{custom-call.57} parent=72 // loop_pre_header
              _
            $region75: #{custom-call.57} parent=72 // loop_header
              %s335 = sphi 0, %s339
              %p336 = scmp.ge.s32.totalorder %s335, 1
              %s340 = sphi %s318, %s318
              %s341 = sphi %s326, %s326
            $region76: #{custom-call.57} parent=72 // loop_header_branch
              %338 = sbr.rel (%p336) target = $region80
            $region77: #{custom-call.57} parent=72 // loop_body
              %v342 = vld [vmem:[%s340] sm:$0xff]
              %343 = vst [vmem:[%s341] sm:$0xff] %v342
            $region78: #{custom-call.57} parent=72 // loop_footer
              %s339 = sadd.s32 1, %s335
            $region79: #{custom-call.57} parent=72 // loop_footer_branch
              %334 = sbr.rel target = $region75
            $region80: #{custom-call.57} parent=72 // loop_exit
              _
          $region73: #{custom-call.57} parent=64 // pred_fallthru
            _
        $region65: #{custom-call.57} parent=53 // pred_fallthru
          _
        %358 = vnop
        // Predicated region
        $region96: #{custom-call.57} parent=53 // pred_check
          %p359 = pneg %p59
        $region97: #{custom-call.57} parent=53 // pred_check_branch
          %361 = sbr.rel (%p359) target = $region99
        $region98: #{custom-call.57} parent=53 // pred_region
          %p362 = scmp.lt.s32.totalorder %s15, 0
          %s363 = ssub.s32 0, %s15
          %s364 = scalar_select %p362, %s363, %s15
          %s365 = sshrl.u32 %s364, 3
          %s366 = ssub.s32 0, %s365
          %s367 = scalar_select %p362, %s366, %s365
          %s368 = smul.addr %s367, 8
          %s369 = scalar_lea.vmem %s2, %s368
          // Predicated region
          $region100: #{custom-call.57} parent=98 // pred_check
            _
          $region101: #{custom-call.57} parent=98 // pred_check_branch
            %371 = sbr.rel (0) target = $region103
          $region102: #{custom-call.57} parent=98 // pred_region
            // Predicated region
            $region104: #{custom-call.57} parent=102 // pred_check
              _
            $region105: #{custom-call.57} parent=102 // pred_check_branch
              %373 = sbr.rel (0) target = $region107
            $region106: #{custom-call.57} parent=102 // pred_region
              // Predicated region
              $region119: #{custom-call.57} parent=106 // pred_check
                _
              $region120: #{custom-call.57} parent=106 // pred_check_branch
                %388 = sbr.rel (0) target = $region122
              $region121: #{custom-call.57} parent=106 // pred_region
                loop: start=0, step=1, limit=1
                $region123: #{custom-call.57} parent=121 // loop_pre_header
                  _
                $region124: #{custom-call.57} parent=121 // loop_header
                  %s390 = sphi 0, %s394
                  %p391 = scmp.ge.s32.totalorder %s390, 1
                  %s395 = sphi %s322, %s322
                  %s396 = sphi %s369, %s369
                $region125: #{custom-call.57} parent=121 // loop_header_branch
                  %393 = sbr.rel (%p391) target = $region129
                $region126: #{custom-call.57} parent=121 // loop_body
                  %v397 = vld [vmem:[%s395] sm:$0xff]
                  %398 = vst [vmem:[%s396] sm:$0xff] %v397
                $region127: #{custom-call.57} parent=121 // loop_footer
                  %s394 = sadd.s32 1, %s390
                $region128: #{custom-call.57} parent=121 // loop_footer_branch
                  %389 = sbr.rel target = $region124
                $region129: #{custom-call.57} parent=121 // loop_exit
                  _
              $region122: #{custom-call.57} parent=106 // pred_fallthru
                _
              // Predicated region
              $region130: #{custom-call.57} parent=106 // pred_check
                _
              $region131: #{custom-call.57} parent=106 // pred_check_branch
                %400 = sbr.rel target = $region133
              $region132: #{custom-call.57} parent=106 // pred_region
                _
              $region133: #{custom-call.57} parent=106 // pred_fallthru
                _
            $region107: #{custom-call.57} parent=102 // pred_fallthru
              _
            // Predicated region
            $region108: #{custom-call.57} parent=102 // pred_check
              _
            $region109: #{custom-call.57} parent=102 // pred_check_branch
              %375 = sbr.rel target = $region111
            $region110: #{custom-call.57} parent=102 // pred_region
              loop: start=0, step=1, limit=1
              $region112: #{custom-call.57} parent=110 // loop_pre_header
                _
              $region113: #{custom-call.57} parent=110 // loop_header
                %s378 = sphi 0, %s382
                %p379 = scmp.ge.s32.totalorder %s378, 1
                %s383 = sphi %s322, %s322
                %s384 = sphi %s369, %s369
              $region114: #{custom-call.57} parent=110 // loop_header_branch
                %381 = sbr.rel (%p379) target = $region118
              $region115: #{custom-call.57} parent=110 // loop_body
                %v385 = vld [vmem:[%s383] sm:$0xff]
                %386 = vst [vmem:[%s384] sm:$0xff] %v385
              $region116: #{custom-call.57} parent=110 // loop_footer
                %s382 = sadd.s32 1, %s378
              $region117: #{custom-call.57} parent=110 // loop_footer_branch
                %377 = sbr.rel target = $region113
              $region118: #{custom-call.57} parent=110 // loop_exit
                _
            $region111: #{custom-call.57} parent=102 // pred_fallthru
              _
          $region103: #{custom-call.57} parent=98 // pred_fallthru
            _
          %401 = vnop
        $region99: #{custom-call.57} parent=53 // pred_fallthru
          _
      $region54: #{custom-call.57} parent=5 // pred_fallthru
        _
      %p402 = scmp.le.s32.totalorder 2, %s5
      // Predicated region
      $region134: #{custom-call.57} parent=5 // pred_check
        %p403 = pneg %p402
      $region135: #{custom-call.57} parent=5 // pred_check_branch
        %405 = sbr.rel (%p403) target = $region137
      $region136: #{custom-call.57} parent=5 // pred_region
        %s406 = ssub.s32 %s5, 2
        %s407 = sand.u32 %s11, 1
        %s408 = sand.u32 %s11, 1
        %s409 = smul.addr %s408, 8
        %s410 = scalar_lea.vmem [#allocation1], %s409
        // Predicated region
        $region138: #{custom-call.57} parent=136 // pred_check
          %p411 = pneg %p65
        $region139: #{custom-call.57} parent=136 // pred_check_branch
          %413 = sbr.rel (%p411) target = $region141
        $region140: #{custom-call.57} parent=136 // pred_region
          %s414 = sand.u32 %s50, 1
          %s415 = sand.u32 %s50, 1
          %s416 = smul.addr %s415, 8
          %s417 = scalar_lea.vmem [#allocation2], %s416
        $region141: #{custom-call.57} parent=136 // pred_fallthru
          _
      $region137: #{custom-call.57} parent=5 // pred_fallthru
        _
    $region6: #{custom-call.57} parent=1 // loop_footer
      %s9 = sadd.s32 1, %s5
    $region7: #{custom-call.57} parent=1 // loop_footer_branch
      %4 = sbr.rel target = $region3
    $region8: #{custom-call.57} parent=1 // loop_exit
      _

// kernel: custom-call.58
$region0: #{custom-call.58}
  %s0 = inlined_call_operand.vmem [shape: f32[16,3,3], index: 0, kind: input, shape index: {}]
  %s1 = inlined_call_operand.vmem [shape: f32[16,3,3], index: 1, kind: output, shape index: {}]
  $region1: #{custom-call.58} parent=0
    #allocation0 [shape = 'u8[4096]{0}', space=vmem, size = 0x1000, scoped, tag = 'operand span for operand 0']
    #allocation1 [shape = 'u8[4096]{0}', space=vmem, size = 0x1000, scoped, tag = 'packed  for operand 0']
    #allocation2 [shape = 'u8[4096]{0}', space=vmem, size = 0x1000, scoped, tag = 'operand span for operand 1']
    #allocation3 [shape = 'u8[4096]{0}', space=vmem, size = 0x1000, scoped, tag = 'packed  for operand 1']
    loop: start=0, step=1, limit=18
    $region2: #{custom-call.58} parent=1 // loop_pre_header
      _
    $region3: #{custom-call.58} parent=1 // loop_header
      %s3 = sphi 0, %s7
      %p4 = scmp.ge.s32.totalorder %s3, 18
    $region4: #{custom-call.58} parent=1 // loop_header_branch
      %6 = sbr.rel (%p4) target = $region8
    $region5: #{custom-call.58} parent=1 // loop_body
      %s8 = ssub.s32 %s3, 1
      %s9 = ssub.s32 %s3, 2
      %s10 = sadd.s32 %s3, 1
      %p11 = scmp.le.s32.totalorder 1, %s3
      %p12 = scmp.lt.s32.totalorder %s3, 17
      %p13 = pnand %p11, %p12
      %p14 = pneg %p13
      // Predicated region
      $region9: #{custom-call.58} parent=5 // pred_check
        _
      $region10: #{custom-call.58} parent=5 // pred_check_branch
        %16 = sbr.rel (%p13) target = $region12
      $region11: #{custom-call.58} parent=5 // pred_region
        %s17 = ssub.s32 %s3, 1
      $region12: #{custom-call.58} parent=5 // pred_fallthru
        _
      %p18 = scmp.lt.s32.totalorder %s3, 16
      // Predicated region
      $region13: #{custom-call.58} parent=5 // pred_check
        %p19 = pneg %p18
      $region14: #{custom-call.58} parent=5 // pred_check_branch
        %21 = sbr.rel (%p19) target = $region16
      $region15: #{custom-call.58} parent=5 // pred_region
        %s22 = sand.u32 %s3, 1
        %s23 = sand.u32 %s3, 1
        %s24 = smul.addr %s23, 4
        %s25 = scalar_lea.vmem [#allocation1], %s24
        %s26 = smul.addr %s3, 4
        %s27 = scalar_lea.vmem %s0, %s26
        // Predicated region
        $region17: #{custom-call.58} parent=15 // pred_check
          _
        $region18: #{custom-call.58} parent=15 // pred_check_branch
          %29 = sbr.rel (0) target = $region20
        $region19: #{custom-call.58} parent=15 // pred_region
          // Predicated region
          $region21: #{custom-call.58} parent=19 // pred_check
            _
          $region22: #{custom-call.58} parent=19 // pred_check_branch
            %31 = sbr.rel target = $region24
          $region23: #{custom-call.58} parent=19 // pred_region
            // Predicated region
            $region36: #{custom-call.58} parent=23 // pred_check
              _
            $region37: #{custom-call.58} parent=23 // pred_check_branch
              %46 = sbr.rel (0) target = $region39
            $region38: #{custom-call.58} parent=23 // pred_region
              loop: start=0, step=1, limit=1
              $region40: #{custom-call.58} parent=38 // loop_pre_header
                _
              $region41: #{custom-call.58} parent=38 // loop_header
                %s49 = sphi 0, %s53
                %p50 = scmp.ge.s32.totalorder %s49, 1
                %s54 = sphi %s27, %s27
                %s55 = sphi %s25, %s25
              $region42: #{custom-call.58} parent=38 // loop_header_branch
                %52 = sbr.rel (%p50) target = $region46
              $region43: #{custom-call.58} parent=38 // loop_body
                %v56 = vld [vmem:[%s54] sm:$0xf]
                %57 = vst [vmem:[%s55] sm:$0xf] %v56
              $region44: #{custom-call.58} parent=38 // loop_footer
                %s53 = sadd.s32 1, %s49
              $region45: #{custom-call.58} parent=38 // loop_footer_branch
                %48 = sbr.rel target = $region41
              $region46: #{custom-call.58} parent=38 // loop_exit
                _
            $region39: #{custom-call.58} parent=23 // pred_fallthru
              _
          $region24: #{custom-call.58} parent=19 // pred_fallthru
            _
          // Predicated region
          $region25: #{custom-call.58} parent=19 // pred_check
            _
          $region26: #{custom-call.58} parent=19 // pred_check_branch
            %33 = sbr.rel (0) target = $region28
          $region27: #{custom-call.58} parent=19 // pred_region
            loop: start=0, step=1, limit=1
            $region29: #{custom-call.58} parent=27 // loop_pre_header
              _
            $region30: #{custom-call.58} parent=27 // loop_header
              %s36 = sphi 0, %s40
              %p37 = scmp.ge.s32.totalorder %s36, 1
              %s41 = sphi %s27, %s27
              %s42 = sphi %s25, %s25
            $region31: #{custom-call.58} parent=27 // loop_header_branch
              %39 = sbr.rel (%p37) target = $region35
            $region32: #{custom-call.58} parent=27 // loop_body
              %v43 = vld [vmem:[%s41] sm:$0xf]
              %44 = vst [vmem:[%s42] sm:$0xf] %v43
            $region33: #{custom-call.58} parent=27 // loop_footer
              %s40 = sadd.s32 1, %s36
            $region34: #{custom-call.58} parent=27 // loop_footer_branch
              %35 = sbr.rel target = $region30
            $region35: #{custom-call.58} parent=27 // loop_exit
              _
          $region28: #{custom-call.58} parent=19 // pred_fallthru
            _
        $region20: #{custom-call.58} parent=15 // pred_fallthru
          _
        %58 = vnop
      $region16: #{custom-call.58} parent=5 // pred_fallthru
        _
      %p59 = scmp.le.s32.totalorder 1, %s3
      %p60 = scmp.lt.s32.totalorder %s3, 17
      %p61 = pnand %p59, %p60
      %p62 = pneg %p61
      // Predicated region
      $region47: #{custom-call.58} parent=5 // pred_check
        _
      $region48: #{custom-call.58} parent=5 // pred_check_branch
        %64 = sbr.rel (%p61) target = $region50
      $region49: #{custom-call.58} parent=5 // pred_region
        %s65 = ssub.s32 %s3, 1
        %s66 = sand.u32 %s8, 1
        %s67 = sand.u32 %s8, 1
        %s68 = smul.addr %s67, 4
        %s69 = scalar_lea.vmem [#allocation1], %s68
        %s70 = sand.u32 %s8, 1
        %s71 = sand.u32 %s8, 1
        %s72 = smul.addr %s71, 4
        %s73 = scalar_lea.vmem [#allocation1], %s72
        %s74 = sand.u32 %s8, 1
        %s75 = sand.u32 %s8, 1
        %s76 = smul.addr %s75, 4
        %s77 = scalar_lea.vmem [#allocation3], %s76
        %s79 = sshllo.u32 0, 4
        %v80 = vld [vmem:[%s73] sm:%s79]
        %81 = vst [vmem:[#allocation0] sm:%s79] %v80
        %v82 = vlaneseq
        %v83 = vand.u32 %v82, 127
        %v84 = vlaneseq
        %v85 = vshrl.u32 %v84, 7
        %vm87 = vcmp.eq.s32.totalorder %v83, %v85
        %v88 = vld [vmem:[#allocation0] sm:$0xff]
        %v89 = vlaneseq
        %v90 = vand.u32 %v89, 127
        %vm91 = vcmp.eq.s32.totalorder %v90, 0
        %v92 = vsel %vm91, %v88, 1.0
        %v93 = vsel %vm87, %v92, 0.0
        %s94 = scalar_lea.vmem [#allocation0], 1
        %v95 = vld [vmem:[%s94] ss:$0 sm:$0xff]
        %vm96 = vcmask 23552
        %v97 = vsel %vm96, %v95, 0.0
        %v98 = vlaneseq
        %v99 = vand.u32 %v98, 127
        %vm100 = vcmp.eq.s32.totalorder %v99, 1
        %v101 = vmul.f32 %v97, %v93
        %102 = vadd.xlane.f32.xlu0 %v101
        %v103 = vpop.xlane.xlu0 %102
        %v104 = vsel %vm100, %v103, %v93
        %s105 = scalar_lea.vmem [#allocation0], 2
        %v106 = vld [vmem:[%s105] ss:$0 sm:$0xff]
        %vm107 = vcmask 23552
        %v108 = vsel %vm107, %v106, 0.0
        %v109 = vlaneseq
        %v110 = vand.u32 %v109, 127
        %vm111 = vcmp.eq.s32.totalorder %v110, 2
        %v112 = vmul.f32 %v108, %v104
        %113 = vadd.xlane.f32.xlu0 %v112
        %v114 = vpop.xlane.xlu0 %113
        %v115 = vsel %vm111, %v114, %v104
        %116 = vst [vmem:[#allocation2] sm:$0xff] %v115
        %s118 = sshllo.u32 0, 4
        %v120 = vld [vmem:[#allocation2] sm:%s118]
        %s121 = sshllo.u32 0, 4
        %122 = vst [vmem:[%s77] sm:%s121] %v120
        %s123 = sand.u32 %s8, 1
        %s124 = sand.u32 %s8, 1
        %s125 = smul.addr %s124, 4
        %s126 = scalar_lea.vmem [#allocation3], %s125
        %s127 = smul.addr %s8, 4
        %s128 = scalar_lea.vmem %s1, %s127
        // Predicated region
        $region51: #{custom-call.58} parent=49 // pred_check
          _
        $region52: #{custom-call.58} parent=49 // pred_check_branch
          %130 = sbr.rel (0) target = $region54
        $region53: #{custom-call.58} parent=49 // pred_region
          // Predicated region
          $region55: #{custom-call.58} parent=53 // pred_check
            _
          $region56: #{custom-call.58} parent=53 // pred_check_branch
            %132 = sbr.rel target = $region58
          $region57: #{custom-call.58} parent=53 // pred_region
            // Predicated region
            $region70: #{custom-call.58} parent=57 // pred_check
              _
            $region71: #{custom-call.58} parent=57 // pred_check_branch
              %147 = sbr.rel (0) target = $region73
            $region72: #{custom-call.58} parent=57 // pred_region
              loop: start=0, step=1, limit=1
              $region74: #{custom-call.58} parent=72 // loop_pre_header
                _
              $region75: #{custom-call.58} parent=72 // loop_header
                %s150 = sphi 0, %s154
                %p151 = scmp.ge.s32.totalorder %s150, 1
                %s155 = sphi %s126, %s126
                %s156 = sphi %s128, %s128
              $region76: #{custom-call.58} parent=72 // loop_header_branch
                %153 = sbr.rel (%p151) target = $region80
              $region77: #{custom-call.58} parent=72 // loop_body
                %v157 = vld [vmem:[%s155] sm:$0xf]
                %158 = vst [vmem:[%s156] sm:$0xf] %v157
              $region78: #{custom-call.58} parent=72 // loop_footer
                %s154 = sadd.s32 1, %s150
              $region79: #{custom-call.58} parent=72 // loop_footer_branch
                %149 = sbr.rel target = $region75
              $region80: #{custom-call.58} parent=72 // loop_exit
                _
            $region73: #{custom-call.58} parent=57 // pred_fallthru
              _
          $region58: #{custom-call.58} parent=53 // pred_fallthru
            _
          // Predicated region
          $region59: #{custom-call.58} parent=53 // pred_check
            _
          $region60: #{custom-call.58} parent=53 // pred_check_branch
            %134 = sbr.rel (0) target = $region62
          $region61: #{custom-call.58} parent=53 // pred_region
            loop: start=0, step=1, limit=1
            $region63: #{custom-call.58} parent=61 // loop_pre_header
              _
            $region64: #{custom-call.58} parent=61 // loop_header
              %s137 = sphi 0, %s141
              %p138 = scmp.ge.s32.totalorder %s137, 1
              %s142 = sphi %s126, %s126
              %s143 = sphi %s128, %s128
            $region65: #{custom-call.58} parent=61 // loop_header_branch
              %140 = sbr.rel (%p138) target = $region69
            $region66: #{custom-call.58} parent=61 // loop_body
              %v144 = vld [vmem:[%s142] sm:$0xf]
              %145 = vst [vmem:[%s143] sm:$0xf] %v144
            $region67: #{custom-call.58} parent=61 // loop_footer
              %s141 = sadd.s32 1, %s137
            $region68: #{custom-call.58} parent=61 // loop_footer_branch
              %136 = sbr.rel target = $region64
            $region69: #{custom-call.58} parent=61 // loop_exit
              _
          $region62: #{custom-call.58} parent=53 // pred_fallthru
            _
        $region54: #{custom-call.58} parent=49 // pred_fallthru
          _
        %159 = vnop
      $region50: #{custom-call.58} parent=5 // pred_fallthru
        _
      %p160 = scmp.le.s32.totalorder 2, %s3
      // Predicated region
      $region81: #{custom-call.58} parent=5 // pred_check
        %p161 = pneg %p160
      $region82: #{custom-call.58} parent=5 // pred_check_branch
        %163 = sbr.rel (%p161) target = $region84
      $region83: #{custom-call.58} parent=5 // pred_region
        %s164 = ssub.s32 %s3, 2
        %s165 = sand.u32 %s9, 1
        %s166 = sand.u32 %s9, 1
        %s167 = smul.addr %s166, 4
        %s168 = scalar_lea.vmem [#allocation3], %s167
      $region84: #{custom-call.58} parent=5 // pred_fallthru
        _
    $region6: #{custom-call.58} parent=1 // loop_footer
      %s7 = sadd.s32 1, %s3
    $region7: #{custom-call.58} parent=1 // loop_footer_branch
      %2 = sbr.rel target = $region3
    $region8: #{custom-call.58} parent=1 // loop_exit
      _

// kernel: custom-call.50
$region0: #{custom-call.50}
  %s0 = inlined_call_operand.hbm [shape: pred[16], index: 0, kind: output, shape index: {}]

// kernel: custom-call.55
$region0: #{custom-call.55}
  %s0 = inlined_call_operand.vmem [shape: f32[16,3,3], index: 0, kind: input, shape index: {}]
  %s1 = inlined_call_operand.vmem [shape: f32[16,3,3], index: 1, kind: output, shape index: {}]
  $region1: #{custom-call.55} parent=0
    #allocation0 [shape = 'u8[4096]{0}', space=vmem, size = 0x1000, scoped, tag = 'operand span for operand 0']
    #allocation1 [shape = 'u8[4096]{0}', space=vmem, size = 0x1000, scoped, tag = 'packed  for operand 0']
    #allocation2 [shape = 'u8[4096]{0}', space=vmem, size = 0x1000, scoped, tag = 'operand span for operand 1']
    #allocation3 [shape = 'u8[4096]{0}', space=vmem, size = 0x1000, scoped, tag = 'packed  for operand 1']
    loop: start=0, step=1, limit=18
    $region2: #{custom-call.55} parent=1 // loop_pre_header
      _
    $region3: #{custom-call.55} parent=1 // loop_header
      %s3 = sphi 0, %s7
      %p4 = scmp.ge.s32.totalorder %s3, 18
      %s10 = sphi 0, %s29
      %s11 = sphi 0, %s25
      %s12 = sphi 0, %s21
      %s13 = sphi 0, %s10
      %s14 = sphi 0, %s11
      %s15 = sphi 0, %s12
      %s16 = sphi 0, %s13
      %s17 = sphi 0, %s14
      %s18 = sphi 0, %s15
    $region4: #{custom-call.55} parent=1 // loop_header_branch
      %6 = sbr.rel (%p4) target = $region8
    $region5: #{custom-call.55} parent=1 // loop_body
      %s8 = ssub.s32 %s3, 1
      %s9 = ssub.s32 %s3, 2
      %s19 = sadd.s32 1, %s12
      %p20 = scmp.ge.s32.totalorder %s19, 1
      %s21 = scalar_select %p20, 0, %s19
      %s22 = sadd.s32 1, %s11
      %s23 = scalar_select %p20, %s22, %s11
      %p24 = scmp.ge.s32.totalorder %s23, 1
      %s25 = scalar_select %p24, 0, %s23
      %s26 = sadd.s32 1, %s10
      %s27 = scalar_select %p24, %s26, %s10
      %p28 = scmp.ge.s32.totalorder %s27, 16
      %s29 = scalar_select %p28, 0, %s27
      %p30 = scmp.le.s32.totalorder 1, %s3
      %p31 = scmp.lt.s32.totalorder %s3, 17
      %p32 = pnand %p30, %p31
      %p33 = pneg %p32
      // Predicated region
      $region9: #{custom-call.55} parent=5 // pred_check
        _
      $region10: #{custom-call.55} parent=5 // pred_check_branch
        %35 = sbr.rel (%p32) target = $region12
      $region11: #{custom-call.55} parent=5 // pred_region
        %s36 = ssub.s32 %s3, 1
      $region12: #{custom-call.55} parent=5 // pred_fallthru
        _
      %p37 = scmp.lt.s32.totalorder %s3, 16
      // Predicated region
      $region13: #{custom-call.55} parent=5 // pred_check
        %p38 = pneg %p37
      $region14: #{custom-call.55} parent=5 // pred_check_branch
        %40 = sbr.rel (%p38) target = $region16
      $region15: #{custom-call.55} parent=5 // pred_region
        %s41 = sand.u32 %s3, 1
        %s42 = sand.u32 %s3, 1
        %s43 = smul.addr %s42, 4
        %s44 = scalar_lea.vmem [#allocation1], %s43
        %s45 = sadd.s32 %s12, %s11
        %s46 = sadd.s32 %s45, %s10
        %s47 = smul.addr %s46, 4
        %s48 = scalar_lea.vmem %s0, %s47
        // Predicated region
        $region17: #{custom-call.55} parent=15 // pred_check
          _
        $region18: #{custom-call.55} parent=15 // pred_check_branch
          %50 = sbr.rel (0) target = $region20
        $region19: #{custom-call.55} parent=15 // pred_region
          // Predicated region
          $region21: #{custom-call.55} parent=19 // pred_check
            _
          $region22: #{custom-call.55} parent=19 // pred_check_branch
            %52 = sbr.rel target = $region24
          $region23: #{custom-call.55} parent=19 // pred_region
            // Predicated region
            $region36: #{custom-call.55} parent=23 // pred_check
              _
            $region37: #{custom-call.55} parent=23 // pred_check_branch
              %67 = sbr.rel (0) target = $region39
            $region38: #{custom-call.55} parent=23 // pred_region
              loop: start=0, step=1, limit=1
              $region40: #{custom-call.55} parent=38 // loop_pre_header
                _
              $region41: #{custom-call.55} parent=38 // loop_header
                %s70 = sphi 0, %s74
                %p71 = scmp.ge.s32.totalorder %s70, 1
                %s75 = sphi %s48, %s48
                %s76 = sphi %s44, %s44
              $region42: #{custom-call.55} parent=38 // loop_header_branch
                %73 = sbr.rel (%p71) target = $region46
              $region43: #{custom-call.55} parent=38 // loop_body
                %v77 = vld [vmem:[%s75] sm:$0xf]
                %78 = vst [vmem:[%s76] sm:$0xf] %v77
              $region44: #{custom-call.55} parent=38 // loop_footer
                %s74 = sadd.s32 1, %s70
              $region45: #{custom-call.55} parent=38 // loop_footer_branch
                %69 = sbr.rel target = $region41
              $region46: #{custom-call.55} parent=38 // loop_exit
                _
            $region39: #{custom-call.55} parent=23 // pred_fallthru
              _
          $region24: #{custom-call.55} parent=19 // pred_fallthru
            _
          // Predicated region
          $region25: #{custom-call.55} parent=19 // pred_check
            _
          $region26: #{custom-call.55} parent=19 // pred_check_branch
            %54 = sbr.rel (0) target = $region28
          $region27: #{custom-call.55} parent=19 // pred_region
            loop: start=0, step=1, limit=1
            $region29: #{custom-call.55} parent=27 // loop_pre_header
              _
            $region30: #{custom-call.55} parent=27 // loop_header
              %s57 = sphi 0, %s61
              %p58 = scmp.ge.s32.totalorder %s57, 1
              %s62 = sphi %s48, %s48
              %s63 = sphi %s44, %s44
            $region31: #{custom-call.55} parent=27 // loop_header_branch
              %60 = sbr.rel (%p58) target = $region35
            $region32: #{custom-call.55} parent=27 // loop_body
              %v64 = vld [vmem:[%s62] sm:$0xf]
              %65 = vst [vmem:[%s63] sm:$0xf] %v64
            $region33: #{custom-call.55} parent=27 // loop_footer
              %s61 = sadd.s32 1, %s57
            $region34: #{custom-call.55} parent=27 // loop_footer_branch
              %56 = sbr.rel target = $region30
            $region35: #{custom-call.55} parent=27 // loop_exit
              _
          $region28: #{custom-call.55} parent=19 // pred_fallthru
            _
        $region20: #{custom-call.55} parent=15 // pred_fallthru
          _
        %79 = vnop
      $region16: #{custom-call.55} parent=5 // pred_fallthru
        _
      %p80 = scmp.le.s32.totalorder 1, %s3
      %p81 = scmp.lt.s32.totalorder %s3, 17
      %p82 = pnand %p80, %p81
      %p83 = pneg %p82
      // Predicated region
      $region47: #{custom-call.55} parent=5 // pred_check
        _
      $region48: #{custom-call.55} parent=5 // pred_check_branch
        %85 = sbr.rel (%p82) target = $region50
      $region49: #{custom-call.55} parent=5 // pred_region
        %s86 = ssub.s32 %s3, 1
        %s87 = sand.u32 %s8, 1
        %s88 = sand.u32 %s8, 1
        %s89 = smul.addr %s88, 4
        %s90 = scalar_lea.vmem [#allocation1], %s89
        %s91 = sand.u32 %s8, 1
        %s92 = sand.u32 %s8, 1
        %s93 = smul.addr %s92, 4
        %s94 = scalar_lea.vmem [#allocation1], %s93
        %s95 = sand.u32 %s8, 1
        %s96 = sand.u32 %s8, 1
        %s97 = smul.addr %s96, 4
        %s98 = scalar_lea.vmem [#allocation3], %s97
        %s100 = sshllo.u32 0, 4
        %v101 = vld [vmem:[%s94] sm:%s100]
        %102 = vst [vmem:[#allocation0] sm:%s100] %v101
        %103 = vst [vmem:[#allocation2] sm:$0xff] 0.0
        %vm104 = vcmask 7168
        %v105 = vld [vmem:[#allocation2] ss:$0 sm:$0xff]
        %v106 = vld [vmem:[#allocation0] ss:$0 sm:$0xff]
        %v107 = vmul.f32 %v105, %v105
        %108 = vadd.xlane.f32.xlu0 %v107
        %v109 = vpop.xlane.xlu0 %108
        %v110 = vsub.f32 %v106, %v109
        %v111 = vrsqrt.pop %v110
        %v112 = vld [vmem:[#allocation0] sm:$0xff]
        %v113 = vld [vmem:[#allocation2] sm:$0xff]
        %v114 = vmul.f32 %v113, %v105
        %115 = vadd.xlane.f32.xlu0 %v114
        %v116 = vpop.xlane.xlu0 %115
        %v117 = vsub.f32 %v112, %v116
        %v118 = vmul.f32 %v117, %v111
        %v119 = vsel %vm104, %v118, 0.0
        %v120 = vadd.f32 %v113, %v119
        %121 = vst [vmem:[#allocation2] sm:$0xff] %v120
        %vm122 = vcmask 15368
        %s123 = scalar_lea.vmem [#allocation2], 1
        %v124 = vld [vmem:[%s123] ss:$0 sm:$0xff]
        %s125 = scalar_lea.vmem [#allocation0], 1
        %v126 = vld [vmem:[%s125] ss:$0 sm:$0xff]
        %v127 = vmul.f32 %v124, %v124
        %128 = vadd.xlane.f32.xlu0 %v127
        %v129 = vpop.xlane.xlu0 %128
        %v130 = vsub.f32 %v126, %v129
        %v131 = vrsqrt.pop %v130
        %v132 = vld [vmem:[#allocation0] sm:$0xff]
        %v133 = vld [vmem:[#allocation2] sm:$0xff]
        %v134 = vmul.f32 %v133, %v124
        %135 = vadd.xlane.f32.xlu0 %v134
        %v136 = vpop.xlane.xlu0 %135
        %v137 = vsub.f32 %v132, %v136
        %v138 = vmul.f32 %v137, %v131
        %vm139 = vcmask 1047553
        %vm140 = vmand %vm122, %vm139
        %v141 = vsel %vm140, %v138, 0.0
        %v142 = vadd.f32 %v133, %v141
        %143 = vst [vmem:[#allocation2] sm:$0xff] %v142
        %vm144 = vcmask 23568
        %s145 = scalar_lea.vmem [#allocation2], 2
        %v146 = vld [vmem:[%s145] ss:$0 sm:$0xff]
        %s147 = scalar_lea.vmem [#allocation0], 2
        %v148 = vld [vmem:[%s147] ss:$0 sm:$0xff]
        %v149 = vmul.f32 %v146, %v146
        %150 = vadd.xlane.f32.xlu0 %v149
        %v151 = vpop.xlane.xlu0 %150
        %v152 = vsub.f32 %v148, %v151
        %v153 = vrsqrt.pop %v152
        %v154 = vld [vmem:[#allocation0] sm:$0xff]
        %v155 = vld [vmem:[#allocation2] sm:$0xff]
        %v156 = vmul.f32 %v155, %v146
        %157 = vadd.xlane.f32.xlu0 %v156
        %v158 = vpop.xlane.xlu0 %157
        %v159 = vsub.f32 %v154, %v158
        %v160 = vmul.f32 %v159, %v153
        %vm161 = vcmask 1047554
        %vm162 = vmand %vm144, %vm161
        %v163 = vsel %vm162, %v160, 0.0
        %v164 = vadd.f32 %v155, %v163
        %165 = vst [vmem:[#allocation2] sm:$0xff] %v164
        %s167 = sshllo.u32 0, 4
        %v169 = vld [vmem:[#allocation2] sm:%s167]
        %s170 = sshllo.u32 0, 4
        %171 = vst [vmem:[%s98] sm:%s170] %v169
        %s172 = sand.u32 %s8, 1
        %s173 = sand.u32 %s8, 1
        %s174 = smul.addr %s173, 4
        %s175 = scalar_lea.vmem [#allocation3], %s174
        %s176 = sadd.s32 %s15, %s14
        %s177 = sadd.s32 %s176, %s13
        %s178 = smul.addr %s177, 4
        %s179 = scalar_lea.vmem %s1, %s178
        // Predicated region
        $region51: #{custom-call.55} parent=49 // pred_check
          _
        $region52: #{custom-call.55} parent=49 // pred_check_branch
          %181 = sbr.rel (0) target = $region54
        $region53: #{custom-call.55} parent=49 // pred_region
          // Predicated region
          $region55: #{custom-call.55} parent=53 // pred_check
            _
          $region56: #{custom-call.55} parent=53 // pred_check_branch
            %183 = sbr.rel target = $region58
          $region57: #{custom-call.55} parent=53 // pred_region
            // Predicated region
            $region70: #{custom-call.55} parent=57 // pred_check
              _
            $region71: #{custom-call.55} parent=57 // pred_check_branch
              %198 = sbr.rel (0) target = $region73
            $region72: #{custom-call.55} parent=57 // pred_region
              loop: start=0, step=1, limit=1
              $region74: #{custom-call.55} parent=72 // loop_pre_header
                _
              $region75: #{custom-call.55} parent=72 // loop_header
                %s201 = sphi 0, %s205
                %p202 = scmp.ge.s32.totalorder %s201, 1
                %s206 = sphi %s175, %s175
                %s207 = sphi %s179, %s179
              $region76: #{custom-call.55} parent=72 // loop_header_branch
                %204 = sbr.rel (%p202) target = $region80
              $region77: #{custom-call.55} parent=72 // loop_body
                %v208 = vld [vmem:[%s206] sm:$0xf]
                %209 = vst [vmem:[%s207] sm:$0xf] %v208
              $region78: #{custom-call.55} parent=72 // loop_footer
                %s205 = sadd.s32 1, %s201
              $region79: #{custom-call.55} parent=72 // loop_footer_branch
                %200 = sbr.rel target = $region75
              $region80: #{custom-call.55} parent=72 // loop_exit
                _
            $region73: #{custom-call.55} parent=57 // pred_fallthru
              _
          $region58: #{custom-call.55} parent=53 // pred_fallthru
            _
          // Predicated region
          $region59: #{custom-call.55} parent=53 // pred_check
            _
          $region60: #{custom-call.55} parent=53 // pred_check_branch
            %185 = sbr.rel (0) target = $region62
          $region61: #{custom-call.55} parent=53 // pred_region
            loop: start=0, step=1, limit=1
            $region63: #{custom-call.55} parent=61 // loop_pre_header
              _
            $region64: #{custom-call.55} parent=61 // loop_header
              %s188 = sphi 0, %s192
              %p189 = scmp.ge.s32.totalorder %s188, 1
              %s193 = sphi %s175, %s175
              %s194 = sphi %s179, %s179
            $region65: #{custom-call.55} parent=61 // loop_header_branch
              %191 = sbr.rel (%p189) target = $region69
            $region66: #{custom-call.55} parent=61 // loop_body
              %v195 = vld [vmem:[%s193] sm:$0xf]
              %196 = vst [vmem:[%s194] sm:$0xf] %v195
            $region67: #{custom-call.55} parent=61 // loop_footer
              %s192 = sadd.s32 1, %s188
            $region68: #{custom-call.55} parent=61 // loop_footer_branch
              %187 = sbr.rel target = $region64
            $region69: #{custom-call.55} parent=61 // loop_exit
              _
          $region62: #{custom-call.55} parent=53 // pred_fallthru
            _
        $region54: #{custom-call.55} parent=49 // pred_fallthru
          _
        %210 = vnop
      $region50: #{custom-call.55} parent=5 // pred_fallthru
        _
      %p211 = scmp.le.s32.totalorder 2, %s3
      // Predicated region
      $region81: #{custom-call.55} parent=5 // pred_check
        %p212 = pneg %p211
      $region82: #{custom-call.55} parent=5 // pred_check_branch
        %214 = sbr.rel (%p212) target = $region84
      $region83: #{custom-call.55} parent=5 // pred_region
        %s215 = ssub.s32 %s3, 2
        %s216 = sand.u32 %s9, 1
        %s217 = sand.u32 %s9, 1
        %s218 = smul.addr %s217, 4
        %s219 = scalar_lea.vmem [#allocation3], %s218
      $region84: #{custom-call.55} parent=5 // pred_fallthru
        _
    $region6: #{custom-call.55} parent=1 // loop_footer
      %s7 = sadd.s32 1, %s3
    $region7: #{custom-call.55} parent=1 // loop_footer_branch
      %2 = sbr.rel target = $region3
    $region8: #{custom-call.55} parent=1 // loop_exit
      _

// kernel: custom-call.56
$region0: #{custom-call.56}
  %s0 = inlined_call_operand.vmem [shape: f32[16,1,3,3], index: 0, kind: input, shape index: {}]
  %s1 = inlined_call_operand.vmem [shape: f32[16,1,3,3], index: 1, kind: output, shape index: {}]
  $region1: #{custom-call.56} parent=0
    #allocation0 [shape = 'u8[4096]{0}', space=vmem, size = 0x1000, scoped, tag = 'operand span for operand 0']
    #allocation1 [shape = 'u8[4096]{0}', space=vmem, size = 0x1000, scoped, tag = 'packed  for operand 0']
    #allocation2 [shape = 'u8[4096]{0}', space=vmem, size = 0x1000, scoped, tag = 'operand span for operand 1']
    #allocation3 [shape = 'u8[4096]{0}', space=vmem, size = 0x1000, scoped, tag = 'packed  for operand 1']
    loop: start=0, step=1, limit=18
    $region2: #{custom-call.56} parent=1 // loop_pre_header
      _
    $region3: #{custom-call.56} parent=1 // loop_header
      %s3 = sphi 0, %s7
      %p4 = scmp.ge.s32.totalorder %s3, 18
      %s10 = sphi 0, %s36
      %s11 = sphi 0, %s32
      %s12 = sphi 0, %s28
      %s13 = sphi 0, %s24
      %s14 = sphi 0, %s10
      %s15 = sphi 0, %s11
      %s16 = sphi 0, %s12
      %s17 = sphi 0, %s13
      %s18 = sphi 0, %s14
      %s19 = sphi 0, %s15
      %s20 = sphi 0, %s16
      %s21 = sphi 0, %s17
    $region4: #{custom-call.56} parent=1 // loop_header_branch
      %6 = sbr.rel (%p4) target = $region8
    $region5: #{custom-call.56} parent=1 // loop_body
      %s8 = ssub.s32 %s3, 1
      %s9 = ssub.s32 %s3, 2
      %s22 = sadd.s32 1, %s13
      %p23 = scmp.ge.s32.totalorder %s22, 1
      %s24 = scalar_select %p23, 0, %s22
      %s25 = sadd.s32 1, %s12
      %s26 = scalar_select %p23, %s25, %s12
      %p27 = scmp.ge.s32.totalorder %s26, 1
      %s28 = scalar_select %p27, 0, %s26
      %s29 = sadd.s32 1, %s11
      %s30 = scalar_select %p27, %s29, %s11
      %p31 = scmp.ge.s32.totalorder %s30, 1
      %s32 = scalar_select %p31, 0, %s30
      %s33 = sadd.s32 1, %s10
      %s34 = scalar_select %p31, %s33, %s10
      %p35 = scmp.ge.s32.totalorder %s34, 16
      %s36 = scalar_select %p35, 0, %s34
      %p37 = scmp.le.s32.totalorder 1, %s3
      %p38 = scmp.lt.s32.totalorder %s3, 17
      %p39 = pnand %p37, %p38
      %p40 = pneg %p39
      // Predicated region
      $region9: #{custom-call.56} parent=5 // pred_check
        _
      $region10: #{custom-call.56} parent=5 // pred_check_branch
        %42 = sbr.rel (%p39) target = $region12
      $region11: #{custom-call.56} parent=5 // pred_region
        %s43 = ssub.s32 %s3, 1
      $region12: #{custom-call.56} parent=5 // pred_fallthru
        _
      %p44 = scmp.lt.s32.totalorder %s3, 16
      // Predicated region
      $region13: #{custom-call.56} parent=5 // pred_check
        %p45 = pneg %p44
      $region14: #{custom-call.56} parent=5 // pred_check_branch
        %47 = sbr.rel (%p45) target = $region16
      $region15: #{custom-call.56} parent=5 // pred_region
        %s48 = sand.u32 %s3, 1
        %s49 = sand.u32 %s3, 1
        %s50 = smul.addr %s49, 4
        %s51 = scalar_lea.vmem [#allocation1], %s50
        %s52 = sadd.s32 %s13, %s12
        %s53 = sadd.s32 %s52, %s11
        %s54 = sadd.s32 %s53, %s10
        %s55 = smul.addr %s54, 4
        %s56 = scalar_lea.vmem %s0, %s55
        // Predicated region
        $region17: #{custom-call.56} parent=15 // pred_check
          _
        $region18: #{custom-call.56} parent=15 // pred_check_branch
          %58 = sbr.rel (0) target = $region20
        $region19: #{custom-call.56} parent=15 // pred_region
          // Predicated region
          $region21: #{custom-call.56} parent=19 // pred_check
            _
          $region22: #{custom-call.56} parent=19 // pred_check_branch
            %60 = sbr.rel target = $region24
          $region23: #{custom-call.56} parent=19 // pred_region
            // Predicated region
            $region36: #{custom-call.56} parent=23 // pred_check
              _
            $region37: #{custom-call.56} parent=23 // pred_check_branch
              %75 = sbr.rel (0) target = $region39
            $region38: #{custom-call.56} parent=23 // pred_region
              loop: start=0, step=1, limit=1
              $region40: #{custom-call.56} parent=38 // loop_pre_header
                _
              $region41: #{custom-call.56} parent=38 // loop_header
                %s78 = sphi 0, %s82
                %p79 = scmp.ge.s32.totalorder %s78, 1
                %s83 = sphi %s56, %s56
                %s84 = sphi %s51, %s51
              $region42: #{custom-call.56} parent=38 // loop_header_branch
                %81 = sbr.rel (%p79) target = $region46
              $region43: #{custom-call.56} parent=38 // loop_body
                %v85 = vld [vmem:[%s83] sm:$0xf]
                %86 = vst [vmem:[%s84] sm:$0xf] %v85
              $region44: #{custom-call.56} parent=38 // loop_footer
                %s82 = sadd.s32 1, %s78
              $region45: #{custom-call.56} parent=38 // loop_footer_branch
                %77 = sbr.rel target = $region41
              $region46: #{custom-call.56} parent=38 // loop_exit
                _
            $region39: #{custom-call.56} parent=23 // pred_fallthru
              _
          $region24: #{custom-call.56} parent=19 // pred_fallthru
            _
          // Predicated region
          $region25: #{custom-call.56} parent=19 // pred_check
            _
          $region26: #{custom-call.56} parent=19 // pred_check_branch
            %62 = sbr.rel (0) target = $region28
          $region27: #{custom-call.56} parent=19 // pred_region
            loop: start=0, step=1, limit=1
            $region29: #{custom-call.56} parent=27 // loop_pre_header
              _
            $region30: #{custom-call.56} parent=27 // loop_header
              %s65 = sphi 0, %s69
              %p66 = scmp.ge.s32.totalorder %s65, 1
              %s70 = sphi %s56, %s56
              %s71 = sphi %s51, %s51
            $region31: #{custom-call.56} parent=27 // loop_header_branch
              %68 = sbr.rel (%p66) target = $region35
            $region32: #{custom-call.56} parent=27 // loop_body
              %v72 = vld [vmem:[%s70] sm:$0xf]
              %73 = vst [vmem:[%s71] sm:$0xf] %v72
            $region33: #{custom-call.56} parent=27 // loop_footer
              %s69 = sadd.s32 1, %s65
            $region34: #{custom-call.56} parent=27 // loop_footer_branch
              %64 = sbr.rel target = $region30
            $region35: #{custom-call.56} parent=27 // loop_exit
              _
          $region28: #{custom-call.56} parent=19 // pred_fallthru
            _
        $region20: #{custom-call.56} parent=15 // pred_fallthru
          _
        %87 = vnop
      $region16: #{custom-call.56} parent=5 // pred_fallthru
        _
      %p88 = scmp.le.s32.totalorder 1, %s3
      %p89 = scmp.lt.s32.totalorder %s3, 17
      %p90 = pnand %p88, %p89
      %p91 = pneg %p90
      // Predicated region
      $region47: #{custom-call.56} parent=5 // pred_check
        _
      $region48: #{custom-call.56} parent=5 // pred_check_branch
        %93 = sbr.rel (%p90) target = $region50
      $region49: #{custom-call.56} parent=5 // pred_region
        #allocation4 [shape = 'f32[3,3]{1,0}', space=vmem, size = 0x1000, scoped, tag = 'rescaled input a']
        %s94 = ssub.s32 %s3, 1
        %s95 = sand.u32 %s8, 1
        %s96 = sand.u32 %s8, 1
        %s97 = smul.addr %s96, 4
        %s98 = scalar_lea.vmem [#allocation1], %s97
        %s99 = sand.u32 %s8, 1
        %s100 = sand.u32 %s8, 1
        %s101 = smul.addr %s100, 4
        %s102 = scalar_lea.vmem [#allocation1], %s101
        %s103 = sand.u32 %s8, 1
        %s104 = sand.u32 %s8, 1
        %s105 = smul.addr %s104, 4
        %s106 = scalar_lea.vmem [#allocation3], %s105
        %s108 = sshllo.u32 0, 4
        %v109 = vld [vmem:[%s102] sm:%s108]
        %110 = vst [vmem:[#allocation0] sm:%s108] %v109
        %v111 = vlaneseq
        %v112 = vand.u32 %v111, 127
        %vm113 = vcmp.lt.s32.totalorder %v112, 3
        %v114 = vlaneseq
        %v115 = vshrl.u32 %v114, 7
        %vm117 = vcmp.eq.s32.totalorder %v115, %v112
        %v118 = vld [vmem:[#allocation0] sm:$0xff]
        %v119 = vsel %vm117, %v118, 0.0
        %120 = vadd.xlane.f32.xlu0 %v119
        %v121 = vpop.xlane.xlu0 %120
        %vm122 = vcmp.ge.s32.totalorder %v115, %v112
        %vm123 = vmand %vm122, %vm113
        %v124 = vsel %vm123, %v118, 0.0
        %v125 = vrcp.pop %v121
        %v126 = vmul.f32 %v124, %v125
        %127 = vst [vmem:[#allocation4] sm:$0xff] %v126
        %v128 = vlaneseq
        %v129 = vand.u32 %v128, 127
        %v130 = vlaneseq
        %v131 = vshrl.u32 %v130, 7
        %vm133 = vcmp.eq.s32.totalorder %v129, %v131
        %v134 = vlaneseq
        %v135 = vand.u32 %v134, 127
        %vm136 = vcmp.eq.s32.totalorder %v135, 0
        %v137 = vsel %vm136, 1.0, -1.0
        %v138 = vsel %vm133, %v137, 0.0
        %s139 = scalar_lea.vmem [#allocation4], 1
        %v140 = vld [vmem:[%s139] ss:$0 sm:$0xff]
        %v141 = vxor.u32 %v140, 2147483648
        %v142 = vlaneseq
        %v143 = vand.u32 %v142, 127
        %vm144 = vcmp.eq.s32.totalorder %v143, 1
        %v145 = vmul.f32 %v141, %v138
        %146 = vadd.xlane.f32.xlu0 %v145
        %v147 = vpop.xlane.xlu0 %146
        %v148 = vsel %vm144, %v147, %v138
        %s149 = scalar_lea.vmem [#allocation4], 2
        %v150 = vld [vmem:[%s149] ss:$0 sm:$0xff]
        %v151 = vxor.u32 %v150, 2147483648
        %v152 = vlaneseq
        %v153 = vand.u32 %v152, 127
        %vm154 = vcmp.eq.s32.totalorder %v153, 2
        %v155 = vmul.f32 %v151, %v148
        %156 = vadd.xlane.f32.xlu0 %v155
        %v157 = vpop.xlane.xlu0 %156
        %v158 = vsel %vm154, %v157, %v148
        %v159 = vrcp.pop %v121
        %v160 = vmul.f32 %v158, %v159
        %vm161 = vweird.f32 %v121
        %v162 = vsel %vm161, %v158, %v160
        %163 = vst [vmem:[#allocation2] sm:$0xff] %v162
        %s165 = sshllo.u32 0, 4
        %v167 = vld [vmem:[#allocation2] sm:%s165]
        %s168 = sshllo.u32 0, 4
        %169 = vst [vmem:[%s106] sm:%s168] %v167
        %s170 = sand.u32 %s8, 1
        %s171 = sand.u32 %s8, 1
        %s172 = smul.addr %s171, 4
        %s173 = scalar_lea.vmem [#allocation3], %s172
        %s174 = sadd.s32 %s17, %s16
        %s175 = sadd.s32 %s174, %s15
        %s176 = sadd.s32 %s175, %s14
        %s177 = smul.addr %s176, 4
        %s178 = scalar_lea.vmem %s1, %s177
        // Predicated region
        $region51: #{custom-call.56} parent=49 // pred_check
          _
        $region52: #{custom-call.56} parent=49 // pred_check_branch
          %180 = sbr.rel (0) target = $region54
        $region53: #{custom-call.56} parent=49 // pred_region
          // Predicated region
          $region55: #{custom-call.56} parent=53 // pred_check
            _
          $region56: #{custom-call.56} parent=53 // pred_check_branch
            %182 = sbr.rel target = $region58
          $region57: #{custom-call.56} parent=53 // pred_region
            // Predicated region
            $region70: #{custom-call.56} parent=57 // pred_check
              _
            $region71: #{custom-call.56} parent=57 // pred_check_branch
              %197 = sbr.rel (0) target = $region73
            $region72: #{custom-call.56} parent=57 // pred_region
              loop: start=0, step=1, limit=1
              $region74: #{custom-call.56} parent=72 // loop_pre_header
                _
              $region75: #{custom-call.56} parent=72 // loop_header
                %s200 = sphi 0, %s204
                %p201 = scmp.ge.s32.totalorder %s200, 1
                %s205 = sphi %s173, %s173
                %s206 = sphi %s178, %s178
              $region76: #{custom-call.56} parent=72 // loop_header_branch
                %203 = sbr.rel (%p201) target = $region80
              $region77: #{custom-call.56} parent=72 // loop_body
                %v207 = vld [vmem:[%s205] sm:$0xf]
                %208 = vst [vmem:[%s206] sm:$0xf] %v207
              $region78: #{custom-call.56} parent=72 // loop_footer
                %s204 = sadd.s32 1, %s200
              $region79: #{custom-call.56} parent=72 // loop_footer_branch
                %199 = sbr.rel target = $region75
              $region80: #{custom-call.56} parent=72 // loop_exit
                _
            $region73: #{custom-call.56} parent=57 // pred_fallthru
              _
          $region58: #{custom-call.56} parent=53 // pred_fallthru
            _
          // Predicated region
          $region59: #{custom-call.56} parent=53 // pred_check
            _
          $region60: #{custom-call.56} parent=53 // pred_check_branch
            %184 = sbr.rel (0) target = $region62
          $region61: #{custom-call.56} parent=53 // pred_region
            loop: start=0, step=1, limit=1
            $region63: #{custom-call.56} parent=61 // loop_pre_header
              _
            $region64: #{custom-call.56} parent=61 // loop_header
              %s187 = sphi 0, %s191
              %p188 = scmp.ge.s32.totalorder %s187, 1
              %s192 = sphi %s173, %s173
              %s193 = sphi %s178, %s178
            $region65: #{custom-call.56} parent=61 // loop_header_branch
              %190 = sbr.rel (%p188) target = $region69
            $region66: #{custom-call.56} parent=61 // loop_body
              %v194 = vld [vmem:[%s192] sm:$0xf]
              %195 = vst [vmem:[%s193] sm:$0xf] %v194
            $region67: #{custom-call.56} parent=61 // loop_footer
              %s191 = sadd.s32 1, %s187
            $region68: #{custom-call.56} parent=61 // loop_footer_branch
              %186 = sbr.rel target = $region64
            $region69: #{custom-call.56} parent=61 // loop_exit
              _
          $region62: #{custom-call.56} parent=53 // pred_fallthru
            _
        $region54: #{custom-call.56} parent=49 // pred_fallthru
          _
        %209 = vnop
      $region50: #{custom-call.56} parent=5 // pred_fallthru
        _
      %p210 = scmp.le.s32.totalorder 2, %s3
      // Predicated region
      $region81: #{custom-call.56} parent=5 // pred_check
        %p211 = pneg %p210
      $region82: #{custom-call.56} parent=5 // pred_check_branch
        %213 = sbr.rel (%p211) target = $region84
      $region83: #{custom-call.56} parent=5 // pred_region
        %s214 = ssub.s32 %s3, 2
        %s215 = sand.u32 %s9, 1
        %s216 = sand.u32 %s9, 1
        %s217 = smul.addr %s216, 4
        %s218 = scalar_lea.vmem [#allocation3], %s217
      $region84: #{custom-call.56} parent=5 // pred_fallthru
        _
    $region6: #{custom-call.56} parent=1 // loop_footer
      %s7 = sadd.s32 1, %s3
    $region7: #{custom-call.56} parent=1 // loop_footer_branch
      %2 = sbr.rel target = $region3
    $region8: #{custom-call.56} parent=1 // loop_exit
      _

// kernel: custom-call.22
$region0: #{custom-call.22}
  %s0 = inlined_call_operand.vmem [shape: f32[16,2,2], index: 0, kind: input, shape index: {}]
  %s1 = inlined_call_operand.vmem [shape: f32[16,2,2], index: 1, kind: input, shape index: {}]
  %s2 = inlined_call_operand.vmem [shape: f32[16,2,2], index: 2, kind: input, shape index: {}]
  %s3 = inlined_call_operand.vmem [shape: f32[16,2,2], index: 3, kind: input, shape index: {}]
  %s4 = inlined_call_operand.vmem [shape: f32[16,2], index: 4, kind: output, shape index: {0}]
  %s5 = inlined_call_operand.vmem [shape: f32[16,2], index: 5, kind: output, shape index: {1}]
  %s6 = inlined_call_operand.vmem [shape: f32[16,2,2], index: 6, kind: output, shape index: {2}]
  %s7 = inlined_call_operand.vmem [shape: f32[16,2,2], index: 7, kind: output, shape index: {3}]
  %s8 = inlined_call_operand.vmem [shape: f32[16,2,2], index: 8, kind: output, shape index: {4}]
  %s9 = inlined_call_operand.vmem [shape: f32[16,2,2], index: 9, kind: output, shape index: {5}]
  %10 = xla_tuple %s4, %s5, %s6, %s7, %s8, %s9
  $region1: #{custom-call.22} parent=0
    #allocation0 [shape = 'u8[4096]{0}', space=vmem, size = 0x1000, scoped, tag = 'operand span for operand 0']
    #allocation1 [shape = 'u8[2048]{0}', space=vmem, size = 0x800, scoped, tag = 'packed  for operand 0']
    #allocation2 [shape = 'u8[4096]{0}', space=vmem, size = 0x1000, scoped, tag = 'operand span for operand 1']
    #allocation3 [shape = 'u8[2048]{0}', space=vmem, size = 0x800, scoped, tag = 'packed  for operand 1']
    #allocation4 [shape = 'u8[4096]{0}', space=vmem, size = 0x1000, scoped, tag = 'operand span for operand 2']
    #allocation5 [shape = 'u8[2048]{0}', space=vmem, size = 0x800, scoped, tag = 'packed  for operand 2']
    #allocation6 [shape = 'u8[4096]{0}', space=vmem, size = 0x1000, scoped, tag = 'operand span for operand 3']
    #allocation7 [shape = 'u8[2048]{0}', space=vmem, size = 0x800, scoped, tag = 'packed  for operand 3']
    #allocation8 [shape = 'u8[8192]{0}', space=vmem, size = 0x2000, scoped, tag = 'operand span for operand 4']
    #allocation9 [shape = 'u8[8192]{0}', space=vmem, size = 0x2000, scoped, tag = 'operand span for operand 5']
    #allocation10 [shape = 'u8[4096]{0}', space=vmem, size = 0x1000, scoped, tag = 'operand span for operand 6']
    #allocation11 [shape = 'u8[2048]{0}', space=vmem, size = 0x800, scoped, tag = 'packed  for operand 6']
    #allocation12 [shape = 'u8[4096]{0}', space=vmem, size = 0x1000, scoped, tag = 'operand span for operand 7']
    #allocation13 [shape = 'u8[2048]{0}', space=vmem, size = 0x800, scoped, tag = 'packed  for operand 7']
    #allocation14 [shape = 'u8[4096]{0}', space=vmem, size = 0x1000, scoped, tag = 'operand span for operand 8']
    #allocation15 [shape = 'u8[2048]{0}', space=vmem, size = 0x800, scoped, tag = 'packed  for operand 8']
    #allocation16 [shape = 'u8[4096]{0}', space=vmem, size = 0x1000, scoped, tag = 'operand span for operand 9']
    #allocation17 [shape = 'u8[2048]{0}', space=vmem, size = 0x800, scoped, tag = 'packed  for operand 9']
    loop: start=0, step=1, limit=18
    $region2: #{custom-call.22} parent=1 // loop_pre_header
      _
    $region3: #{custom-call.22} parent=1 // loop_header
      %s12 = sphi 0, %s16
      %p13 = scmp.ge.s32.totalorder %s12, 18
      %s24 = sphi 0, %s26
      %s27 = sphi 0, %s24
      %s28 = sphi 0, %s27
      %s44 = sphi 0, %s28
      %s52 = sphi 0, %s54
      %s55 = sphi 0, %s52
      %s56 = sphi 0, %s55
      %s72 = sphi 0, %s56
    $region4: #{custom-call.22} parent=1 // loop_header_branch
      %15 = sbr.rel (%p13) target = $region8
    $region5: #{custom-call.22} parent=1 // loop_body
      %s17 = ssub.s32 %s12, 1
      %s18 = ssub.s32 %s12, 2
      %s19 = sadd.s32 %s12, 1
      %s20 = sshrl.u32 %s12, 3
      %s21 = sshrl.u32 %s19, 3
      %s22 = ssub.s32 %s20, %s21
      %p23 = scmp.eq.s32.totalorder %s22, 0
      %s25 = sadd.s32 %s24, 1
      %s26 = scalar_select %p23, %s24, %s25
      %p29 = pneg %p23
      %p30 = scmp.eq.s32.totalorder %s12, 15
      %p31 = por %p29, %p30
      %p32 = scmp.ne.s32.totalorder %s24, %s27
      %p33 = scmp.eq.s32.totalorder %s12, 0
      %p34 = por %p32, %p33
      %p35 = scmp.ne.s32.totalorder %s24, %s27
      %p36 = scmp.eq.s32.totalorder %s17, 15
      %p37 = por %p35, %p36
      %p38 = scmp.ne.s32.totalorder %s27, %s28
      %p39 = scmp.eq.s32.totalorder %s17, 0
      %p40 = por %p38, %p39
      %p41 = scmp.ne.s32.totalorder %s27, %s28
      %p42 = scmp.eq.s32.totalorder %s18, 15
      %p43 = por %p41, %p42
      %p45 = scmp.ne.s32.totalorder %s28, %s44
      %p46 = scmp.eq.s32.totalorder %s18, 0
      %p47 = por %p45, %p46
      %s48 = sshrl.u32 %s12, 3
      %s49 = sshrl.u32 %s19, 3
      %s50 = ssub.s32 %s48, %s49
      %p51 = scmp.eq.s32.totalorder %s50, 0
      %s53 = sadd.s32 %s52, 1
      %s54 = scalar_select %p51, %s52, %s53
      %p57 = pneg %p51
      %p58 = scmp.eq.s32.totalorder %s12, 15
      %p59 = por %p57, %p58
      %p60 = scmp.ne.s32.totalorder %s52, %s55
      %p61 = scmp.eq.s32.totalorder %s12, 0
      %p62 = por %p60, %p61
      %p63 = scmp.ne.s32.totalorder %s52, %s55
      %p64 = scmp.eq.s32.totalorder %s17, 15
      %p65 = por %p63, %p64
      %p66 = scmp.ne.s32.totalorder %s55, %s56
      %p67 = scmp.eq.s32.totalorder %s17, 0
      %p68 = por %p66, %p67
      %p69 = scmp.ne.s32.totalorder %s55, %s56
      %p70 = scmp.eq.s32.totalorder %s18, 15
      %p71 = por %p69, %p70
      %p73 = scmp.ne.s32.totalorder %s56, %s72
      %p74 = scmp.eq.s32.totalorder %s18, 0
      %p75 = por %p73, %p74
      %p76 = scmp.le.s32.totalorder 1, %s12
      %p77 = scmp.lt.s32.totalorder %s12, 17
      %p78 = pnand %p76, %p77
      %p79 = pneg %p78
      // Predicated region
      $region9: #{custom-call.22} parent=5 // pred_check
        _
      $region10: #{custom-call.22} parent=5 // pred_check_branch
        %81 = sbr.rel (%p78) target = $region12
      $region11: #{custom-call.22} parent=5 // pred_region
        %s82 = ssub.s32 %s12, 1
      $region12: #{custom-call.22} parent=5 // pred_fallthru
        _
      %p83 = scmp.lt.s32.totalorder %s12, 16
      // Predicated region
      $region13: #{custom-call.22} parent=5 // pred_check
        %p84 = pneg %p83
      $region14: #{custom-call.22} parent=5 // pred_check_branch
        %86 = sbr.rel (%p84) target = $region16
      $region15: #{custom-call.22} parent=5 // pred_region
        %s87 = sand.u32 %s12, 1
        %s88 = sand.u32 %s12, 1
        %s89 = smul.addr %s88, 2
        %s90 = scalar_lea.vmem [#allocation1], %s89
        %s91 = smul.addr %s12, 2
        %s92 = scalar_lea.vmem %s0, %s91
        // Predicated region
        $region17: #{custom-call.22} parent=15 // pred_check
          _
        $region18: #{custom-call.22} parent=15 // pred_check_branch
          %94 = sbr.rel (0) target = $region20
        $region19: #{custom-call.22} parent=15 // pred_region
          // Predicated region
          $region21: #{custom-call.22} parent=19 // pred_check
            _
          $region22: #{custom-call.22} parent=19 // pred_check_branch
            %96 = sbr.rel target = $region24
          $region23: #{custom-call.22} parent=19 // pred_region
            // Predicated region
            $region36: #{custom-call.22} parent=23 // pred_check
              _
            $region37: #{custom-call.22} parent=23 // pred_check_branch
              %111 = sbr.rel (0) target = $region39
            $region38: #{custom-call.22} parent=23 // pred_region
              loop: start=0, step=1, limit=1
              $region40: #{custom-call.22} parent=38 // loop_pre_header
                _
              $region41: #{custom-call.22} parent=38 // loop_header
                %s114 = sphi 0, %s118
                %p115 = scmp.ge.s32.totalorder %s114, 1
                %s119 = sphi %s92, %s92
                %s120 = sphi %s90, %s90
              $region42: #{custom-call.22} parent=38 // loop_header_branch
                %117 = sbr.rel (%p115) target = $region46
              $region43: #{custom-call.22} parent=38 // loop_body
                %v121 = vld [vmem:[%s119] sm:$0x3]
                %122 = vst [vmem:[%s120] sm:$0x3] %v121
              $region44: #{custom-call.22} parent=38 // loop_footer
                %s118 = sadd.s32 1, %s114
              $region45: #{custom-call.22} parent=38 // loop_footer_branch
                %113 = sbr.rel target = $region41
              $region46: #{custom-call.22} parent=38 // loop_exit
                _
            $region39: #{custom-call.22} parent=23 // pred_fallthru
              _
          $region24: #{custom-call.22} parent=19 // pred_fallthru
            _
          // Predicated region
          $region25: #{custom-call.22} parent=19 // pred_check
            _
          $region26: #{custom-call.22} parent=19 // pred_check_branch
            %98 = sbr.rel (0) target = $region28
          $region27: #{custom-call.22} parent=19 // pred_region
            loop: start=0, step=1, limit=1
            $region29: #{custom-call.22} parent=27 // loop_pre_header
              _
            $region30: #{custom-call.22} parent=27 // loop_header
              %s101 = sphi 0, %s105
              %p102 = scmp.ge.s32.totalorder %s101, 1
              %s106 = sphi %s92, %s92
              %s107 = sphi %s90, %s90
            $region31: #{custom-call.22} parent=27 // loop_header_branch
              %104 = sbr.rel (%p102) target = $region35
            $region32: #{custom-call.22} parent=27 // loop_body
              %v108 = vld [vmem:[%s106] sm:$0x3]
              %109 = vst [vmem:[%s107] sm:$0x3] %v108
            $region33: #{custom-call.22} parent=27 // loop_footer
              %s105 = sadd.s32 1, %s101
            $region34: #{custom-call.22} parent=27 // loop_footer_branch
              %100 = sbr.rel target = $region30
            $region35: #{custom-call.22} parent=27 // loop_exit
              _
          $region28: #{custom-call.22} parent=19 // pred_fallthru
            _
        $region20: #{custom-call.22} parent=15 // pred_fallthru
          _
        %123 = vnop
        %s124 = sand.u32 %s12, 1
        %s125 = sand.u32 %s12, 1
        %s126 = smul.addr %s125, 2
        %s127 = scalar_lea.vmem [#allocation3], %s126
        %s128 = smul.addr %s12, 2
        %s129 = scalar_lea.vmem %s1, %s128
        // Predicated region
        $region47: #{custom-call.22} parent=15 // pred_check
          _
        $region48: #{custom-call.22} parent=15 // pred_check_branch
          %131 = sbr.rel (0) target = $region50
        $region49: #{custom-call.22} parent=15 // pred_region
          // Predicated region
          $region51: #{custom-call.22} parent=49 // pred_check
            _
          $region52: #{custom-call.22} parent=49 // pred_check_branch
            %133 = sbr.rel target = $region54
          $region53: #{custom-call.22} parent=49 // pred_region
            // Predicated region
            $region66: #{custom-call.22} parent=53 // pred_check
              _
            $region67: #{custom-call.22} parent=53 // pred_check_branch
              %148 = sbr.rel (0) target = $region69
            $region68: #{custom-call.22} parent=53 // pred_region
              loop: start=0, step=1, limit=1
              $region70: #{custom-call.22} parent=68 // loop_pre_header
                _
              $region71: #{custom-call.22} parent=68 // loop_header
                %s151 = sphi 0, %s155
                %p152 = scmp.ge.s32.totalorder %s151, 1
                %s156 = sphi %s129, %s129
                %s157 = sphi %s127, %s127
              $region72: #{custom-call.22} parent=68 // loop_header_branch
                %154 = sbr.rel (%p152) target = $region76
              $region73: #{custom-call.22} parent=68 // loop_body
                %v158 = vld [vmem:[%s156] sm:$0x3]
                %159 = vst [vmem:[%s157] sm:$0x3] %v158
              $region74: #{custom-call.22} parent=68 // loop_footer
                %s155 = sadd.s32 1, %s151
              $region75: #{custom-call.22} parent=68 // loop_footer_branch
                %150 = sbr.rel target = $region71
              $region76: #{custom-call.22} parent=68 // loop_exit
                _
            $region69: #{custom-call.22} parent=53 // pred_fallthru
              _
          $region54: #{custom-call.22} parent=49 // pred_fallthru
            _
          // Predicated region
          $region55: #{custom-call.22} parent=49 // pred_check
            _
          $region56: #{custom-call.22} parent=49 // pred_check_branch
            %135 = sbr.rel (0) target = $region58
          $region57: #{custom-call.22} parent=49 // pred_region
            loop: start=0, step=1, limit=1
            $region59: #{custom-call.22} parent=57 // loop_pre_header
              _
            $region60: #{custom-call.22} parent=57 // loop_header
              %s138 = sphi 0, %s142
              %p139 = scmp.ge.s32.totalorder %s138, 1
              %s143 = sphi %s129, %s129
              %s144 = sphi %s127, %s127
            $region61: #{custom-call.22} parent=57 // loop_header_branch
              %141 = sbr.rel (%p139) target = $region65
            $region62: #{custom-call.22} parent=57 // loop_body
              %v145 = vld [vmem:[%s143] sm:$0x3]
              %146 = vst [vmem:[%s144] sm:$0x3] %v145
            $region63: #{custom-call.22} parent=57 // loop_footer
              %s142 = sadd.s32 1, %s138
            $region64: #{custom-call.22} parent=57 // loop_footer_branch
              %137 = sbr.rel target = $region60
            $region65: #{custom-call.22} parent=57 // loop_exit
              _
          $region58: #{custom-call.22} parent=49 // pred_fallthru
            _
        $region50: #{custom-call.22} parent=15 // pred_fallthru
          _
        %160 = vnop
        %s161 = sand.u32 %s12, 1
        %s162 = sand.u32 %s12, 1
        %s163 = smul.addr %s162, 2
        %s164 = scalar_lea.vmem [#allocation5], %s163
        %s165 = smul.addr %s12, 2
        %s166 = scalar_lea.vmem %s2, %s165
        // Predicated region
        $region77: #{custom-call.22} parent=15 // pred_check
          _
        $region78: #{custom-call.22} parent=15 // pred_check_branch
          %168 = sbr.rel (0) target = $region80
        $region79: #{custom-call.22} parent=15 // pred_region
          // Predicated region
          $region81: #{custom-call.22} parent=79 // pred_check
            _
          $region82: #{custom-call.22} parent=79 // pred_check_branch
            %170 = sbr.rel target = $region84
          $region83: #{custom-call.22} parent=79 // pred_region
            // Predicated region
            $region96: #{custom-call.22} parent=83 // pred_check
              _
            $region97: #{custom-call.22} parent=83 // pred_check_branch
              %185 = sbr.rel (0) target = $region99
            $region98: #{custom-call.22} parent=83 // pred_region
              loop: start=0, step=1, limit=1
              $region100: #{custom-call.22} parent=98 // loop_pre_header
                _
              $region101: #{custom-call.22} parent=98 // loop_header
                %s188 = sphi 0, %s192
                %p189 = scmp.ge.s32.totalorder %s188, 1
                %s193 = sphi %s166, %s166
                %s194 = sphi %s164, %s164
              $region102: #{custom-call.22} parent=98 // loop_header_branch
                %191 = sbr.rel (%p189) target = $region106
              $region103: #{custom-call.22} parent=98 // loop_body
                %v195 = vld [vmem:[%s193] sm:$0x3]
                %196 = vst [vmem:[%s194] sm:$0x3] %v195
              $region104: #{custom-call.22} parent=98 // loop_footer
                %s192 = sadd.s32 1, %s188
              $region105: #{custom-call.22} parent=98 // loop_footer_branch
                %187 = sbr.rel target = $region101
              $region106: #{custom-call.22} parent=98 // loop_exit
                _
            $region99: #{custom-call.22} parent=83 // pred_fallthru
              _
          $region84: #{custom-call.22} parent=79 // pred_fallthru
            _
          // Predicated region
          $region85: #{custom-call.22} parent=79 // pred_check
            _
          $region86: #{custom-call.22} parent=79 // pred_check_branch
            %172 = sbr.rel (0) target = $region88
          $region87: #{custom-call.22} parent=79 // pred_region
            loop: start=0, step=1, limit=1
            $region89: #{custom-call.22} parent=87 // loop_pre_header
              _
            $region90: #{custom-call.22} parent=87 // loop_header
              %s175 = sphi 0, %s179
              %p176 = scmp.ge.s32.totalorder %s175, 1
              %s180 = sphi %s166, %s166
              %s181 = sphi %s164, %s164
            $region91: #{custom-call.22} parent=87 // loop_header_branch
              %178 = sbr.rel (%p176) target = $region95
            $region92: #{custom-call.22} parent=87 // loop_body
              %v182 = vld [vmem:[%s180] sm:$0x3]
              %183 = vst [vmem:[%s181] sm:$0x3] %v182
            $region93: #{custom-call.22} parent=87 // loop_footer
              %s179 = sadd.s32 1, %s175
            $region94: #{custom-call.22} parent=87 // loop_footer_branch
              %174 = sbr.rel target = $region90
            $region95: #{custom-call.22} parent=87 // loop_exit
              _
          $region88: #{custom-call.22} parent=79 // pred_fallthru
            _
        $region80: #{custom-call.22} parent=15 // pred_fallthru
          _
        %197 = vnop
        %s198 = sand.u32 %s12, 1
        %s199 = sand.u32 %s12, 1
        %s200 = smul.addr %s199, 2
        %s201 = scalar_lea.vmem [#allocation7], %s200
        %s202 = smul.addr %s12, 2
        %s203 = scalar_lea.vmem %s3, %s202
        // Predicated region
        $region107: #{custom-call.22} parent=15 // pred_check
          _
        $region108: #{custom-call.22} parent=15 // pred_check_branch
          %205 = sbr.rel (0) target = $region110
        $region109: #{custom-call.22} parent=15 // pred_region
          // Predicated region
          $region111: #{custom-call.22} parent=109 // pred_check
            _
          $region112: #{custom-call.22} parent=109 // pred_check_branch
            %207 = sbr.rel target = $region114
          $region113: #{custom-call.22} parent=109 // pred_region
            // Predicated region
            $region126: #{custom-call.22} parent=113 // pred_check
              _
            $region127: #{custom-call.22} parent=113 // pred_check_branch
              %222 = sbr.rel (0) target = $region129
            $region128: #{custom-call.22} parent=113 // pred_region
              loop: start=0, step=1, limit=1
              $region130: #{custom-call.22} parent=128 // loop_pre_header
                _
              $region131: #{custom-call.22} parent=128 // loop_header
                %s225 = sphi 0, %s229
                %p226 = scmp.ge.s32.totalorder %s225, 1
                %s230 = sphi %s203, %s203
                %s231 = sphi %s201, %s201
              $region132: #{custom-call.22} parent=128 // loop_header_branch
                %228 = sbr.rel (%p226) target = $region136
              $region133: #{custom-call.22} parent=128 // loop_body
                %v232 = vld [vmem:[%s230] sm:$0x3]
                %233 = vst [vmem:[%s231] sm:$0x3] %v232
              $region134: #{custom-call.22} parent=128 // loop_footer
                %s229 = sadd.s32 1, %s225
              $region135: #{custom-call.22} parent=128 // loop_footer_branch
                %224 = sbr.rel target = $region131
              $region136: #{custom-call.22} parent=128 // loop_exit
                _
            $region129: #{custom-call.22} parent=113 // pred_fallthru
              _
          $region114: #{custom-call.22} parent=109 // pred_fallthru
            _
          // Predicated region
          $region115: #{custom-call.22} parent=109 // pred_check
            _
          $region116: #{custom-call.22} parent=109 // pred_check_branch
            %209 = sbr.rel (0) target = $region118
          $region117: #{custom-call.22} parent=109 // pred_region
            loop: start=0, step=1, limit=1
            $region119: #{custom-call.22} parent=117 // loop_pre_header
              _
            $region120: #{custom-call.22} parent=117 // loop_header
              %s212 = sphi 0, %s216
              %p213 = scmp.ge.s32.totalorder %s212, 1
              %s217 = sphi %s203, %s203
              %s218 = sphi %s201, %s201
            $region121: #{custom-call.22} parent=117 // loop_header_branch
              %215 = sbr.rel (%p213) target = $region125
            $region122: #{custom-call.22} parent=117 // loop_body
              %v219 = vld [vmem:[%s217] sm:$0x3]
              %220 = vst [vmem:[%s218] sm:$0x3] %v219
            $region123: #{custom-call.22} parent=117 // loop_footer
              %s216 = sadd.s32 1, %s212
            $region124: #{custom-call.22} parent=117 // loop_footer_branch
              %211 = sbr.rel target = $region120
            $region125: #{custom-call.22} parent=117 // loop_exit
              _
          $region118: #{custom-call.22} parent=109 // pred_fallthru
            _
        $region110: #{custom-call.22} parent=15 // pred_fallthru
          _
        %234 = vnop
      $region16: #{custom-call.22} parent=5 // pred_fallthru
        _
      %p235 = scmp.le.s32.totalorder 1, %s12
      %p236 = scmp.lt.s32.totalorder %s12, 17
      %p237 = pnand %p235, %p236
      %p238 = pneg %p237
      // Predicated region
      $region137: #{custom-call.22} parent=5 // pred_check
        _
      $region138: #{custom-call.22} parent=5 // pred_check_branch
        %240 = sbr.rel (%p237) target = $region140
      $region139: #{custom-call.22} parent=5 // pred_region
        #allocation18 [shape = 'f32[2,2]{1,0}', space=vmem, size = 0x1000, scoped, tag = 'a top-left matrix']
        #allocation19 [shape = 'f32[2,2]{1,0}', space=vmem, size = 0x1000, scoped, tag = 'a top-right matrix']
        #allocation20 [shape = 'f32[2,2]{1,0}', space=vmem, size = 0x1000, scoped, tag = 'a bottom-left matrix']
        #allocation21 [shape = 'f32[2,2]{1,0}', space=vmem, size = 0x1000, scoped, tag = 'a bottom-right matrix']
        %s241 = ssub.s32 %s12, 1
        %s242 = sand.u32 %s17, 1
        %s243 = sand.u32 %s17, 1
        %s244 = smul.addr %s243, 2
        %s245 = scalar_lea.vmem [#allocation1], %s244
        %s246 = sand.u32 %s17, 1
        %s247 = sand.u32 %s17, 1
        %s248 = smul.addr %s247, 2
        %s249 = scalar_lea.vmem [#allocation3], %s248
        %s250 = sand.u32 %s17, 1
        %s251 = sand.u32 %s17, 1
        %s252 = smul.addr %s251, 2
        %s253 = scalar_lea.vmem [#allocation5], %s252
        %s254 = sand.u32 %s17, 1
        %s255 = sand.u32 %s17, 1
        %s256 = smul.addr %s255, 2
        %s257 = scalar_lea.vmem [#allocation7], %s256
        %s258 = sand.u32 %s17, 1
        %s259 = sand.u32 %s17, 1
        %s260 = smul.addr %s259, 2
        %s261 = scalar_lea.vmem [#allocation1], %s260
        %s262 = sand.u32 %s17, 1
        %s263 = sand.u32 %s17, 1
        %s264 = smul.addr %s263, 2
        %s265 = scalar_lea.vmem [#allocation3], %s264
        %s266 = sand.u32 %s17, 1
        %s267 = sand.u32 %s17, 1
        %s268 = smul.addr %s267, 2
        %s269 = scalar_lea.vmem [#allocation5], %s268
        %s270 = sand.u32 %s17, 1
        %s271 = sand.u32 %s17, 1
        %s272 = smul.addr %s271, 2
        %s273 = scalar_lea.vmem [#allocation7], %s272
        %p274 = pneg %p40
        %p275 = pneg %p37
        %s276 = sand.u32 %s27, 1
        %s277 = sand.u32 %s27, 1
        %s278 = smul.addr %s277, 8
        %s279 = scalar_lea.vmem [#allocation8], %s278
        %p280 = pneg %p68
        %p281 = pneg %p65
        %s282 = sand.u32 %s55, 1
        %s283 = sand.u32 %s55, 1
        %s284 = smul.addr %s283, 8
        %s285 = scalar_lea.vmem [#allocation9], %s284
        %s286 = sand.u32 %s17, 1
        %s287 = sand.u32 %s17, 1
        %s288 = smul.addr %s287, 2
        %s289 = scalar_lea.vmem [#allocation11], %s288
        %s290 = sand.u32 %s17, 1
        %s291 = sand.u32 %s17, 1
        %s292 = smul.addr %s291, 2
        %s293 = scalar_lea.vmem [#allocation13], %s292
        %s294 = sand.u32 %s17, 1
        %s295 = sand.u32 %s17, 1
        %s296 = smul.addr %s295, 2
        %s297 = scalar_lea.vmem [#allocation15], %s296
        %s298 = sand.u32 %s17, 1
        %s299 = sand.u32 %s17, 1
        %s300 = smul.addr %s299, 2
        %s301 = scalar_lea.vmem [#allocation17], %s300
        %s303 = sshllo.u32 0, 2
        %v304 = vld [vmem:[%s261] sm:%s303]
        %305 = vst [vmem:[#allocation0] sm:%s303] %v304
        %s307 = sshllo.u32 0, 2
        %v308 = vld [vmem:[%s265] sm:%s307]
        %309 = vst [vmem:[#allocation2] sm:%s307] %v308
        %s311 = sshllo.u32 0, 2
        %v312 = vld [vmem:[%s269] sm:%s311]
        %313 = vst [vmem:[#allocation4] sm:%s311] %v312
        %s315 = sshllo.u32 0, 2
        %v316 = vld [vmem:[%s273] sm:%s315]
        %317 = vst [vmem:[#allocation6] sm:%s315] %v316
        %s318 = sshrl.u32 %s17, 3
        %s319 = sshrl.u32 %s17, 3
        %s320 = smov [#allocation18]
        %v321 = vld [vmem:[#allocation0] sm:$0xff]
        %322 = vst [vmem:[%s320] sm:$0xff] %v321
        %s323 = smov [#allocation19]
        %v324 = vld [vmem:[#allocation2] sm:$0xff]
        %325 = vst [vmem:[%s323] sm:$0xff] %v324
        %s326 = smov [#allocation20]
        %v327 = vld [vmem:[#allocation4] sm:$0xff]
        %328 = vst [vmem:[%s326] sm:$0xff] %v327
        %s329 = smov [#allocation21]
        %v330 = vld [vmem:[#allocation6] sm:$0xff]
        %331 = vst [vmem:[%s329] sm:$0xff] %v330
        %332 = vst [vmem:[#allocation10] sm:$0xff] 0.0
        %333 = vst [vmem:[#allocation12] sm:$0xff] 0.0
        %334 = vst [vmem:[#allocation14] sm:$0xff] 0.0
        %335 = vst [vmem:[#allocation16] sm:$0xff] 0.0
        %s336 = smov [#allocation10]
        %v337 = vlaneseq
        %v338 = vand.u32 %v337, 127
        %v339 = vmov %v338
        %v340 = vlaneseq
        %v341 = vshrl.u32 %v340, 7
        %v342 = vmov %v341
        %v343 = vld [vmem:[%s336] sm:$0x3]
        %vm346 = vcmp.eq.s32.totalorder %v342, %v339
        %v347 = vsel %vm346, 1.0, %v343
        %348 = vst [vmem:[%s336] sm:$0x3] %v347
        %s349 = smov [#allocation16]
        %v350 = vlaneseq
        %v351 = vand.u32 %v350, 127
        %v352 = vmov %v351
        %v353 = vlaneseq
        %v354 = vshrl.u32 %v353, 7
        %v355 = vmov %v354
        %v356 = vld [vmem:[%s349] sm:$0x3]
        %vm359 = vcmp.eq.s32.totalorder %v355, %v352
        %v360 = vsel %vm359, 1.0, %v356
        %361 = vst [vmem:[%s349] sm:$0x3] %v360
        // While loop
        $region141: #{custom-call.22} parent=139 // loop_pre_header
          _
        $region142: #{custom-call.22} parent=139 // loop_header
          %s363 = sphi 0, %s905
          %v364 = vlaneseq
          %v365 = vand.u32 %v364, 127
          %v366 = vmov %v365
          %v367 = vlaneseq
          %v368 = vshrl.u32 %v367, 7
          %v369 = vmov %v368
          %s370 = smov [#allocation18]
          %v371 = vlaneseq
          %v372 = vand.u32 %v371, 127
          %vm373 = vcmp.ge.s32.totalorder %v372, 0
          %vm374 = vcmp.lt.s32.totalorder %v372, 2
          %vm375 = vmand %vm373, %vm374
          %v376 = vld [vmem:[%s370] sm:$0x3]
          %v377 = vsel %vm375, %v376, 0.0
          %v378 = vmul.f32 %v377, %v377
          %vm381 = vcmp.eq.s32.totalorder %v369, %v366
          %v382 = vsel %vm381, 0.0, %v378
          %v383 = vlaneseq
          %v384 = vand.u32 %v383, 127
          %v385 = vmov %v384
          %v386 = vlaneseq
          %v387 = vshrl.u32 %v386, 7
          %v388 = vmov %v387
          %s389 = smov [#allocation19]
          %v390 = vlaneseq
          %v391 = vand.u32 %v390, 127
          %vm392 = vcmp.ge.s32.totalorder %v391, 0
          %vm393 = vcmp.lt.s32.totalorder %v391, 2
          %vm394 = vmand %vm392, %vm393
          %v395 = vld [vmem:[%s389] sm:$0x3]
          %v396 = vsel %vm394, %v395, 0.0
          %v397 = vmul.f32 %v396, %v396
          %v398 = vadd.f32 %v382, %v397
          %v399 = vadd.f32 %v378, %v397
          %v400 = vlaneseq
          %v401 = vand.u32 %v400, 127
          %v402 = vmov %v401
          %v403 = vlaneseq
          %v404 = vshrl.u32 %v403, 7
          %v405 = vmov %v404
          %s406 = smov [#allocation20]
          %v407 = vlaneseq
          %v408 = vand.u32 %v407, 127
          %vm409 = vcmp.ge.s32.totalorder %v408, 0
          %vm410 = vcmp.lt.s32.totalorder %v408, 2
          %vm411 = vmand %vm409, %vm410
          %v412 = vld [vmem:[%s406] sm:$0x3]
          %v413 = vsel %vm411, %v412, 0.0
          %v414 = vmul.f32 %v413, %v413
          %v415 = vadd.f32 %v398, %v414
          %v416 = vadd.f32 %v399, %v414
          %v417 = vlaneseq
          %v418 = vand.u32 %v417, 127
          %v419 = vmov %v418
          %v420 = vlaneseq
          %v421 = vshrl.u32 %v420, 7
          %v422 = vmov %v421
          %s423 = smov [#allocation21]
          %v424 = vlaneseq
          %v425 = vand.u32 %v424, 127
          %vm426 = vcmp.ge.s32.totalorder %v425, 0
          %vm427 = vcmp.lt.s32.totalorder %v425, 2
          %vm428 = vmand %vm426, %vm427
          %v429 = vld [vmem:[%s423] sm:$0x3]
          %v430 = vsel %vm428, %v429, 0.0
          %v431 = vmul.f32 %v430, %v430
          %vm434 = vcmp.eq.s32.totalorder %v422, %v419
          %v435 = vsel %vm434, 0.0, %v431
          %v436 = vadd.f32 %v415, %v435
          %v437 = vadd.f32 %v416, %v431
          %438 = vadd.xlane.f32.xlu0 %v437
          %v439 = vpop.xlane.xlu0 %438
          %v440 = vrot.slane %v439, 4
          %v441 = vadd.f32 %v439, %v440
          %v442 = vrot.slane %v441, 2
          %v443 = vadd.f32 %v441, %v442
          %v444 = vrot.slane %v443, 1
          %v445 = vadd.f32 %v443, %v444
          %446 = vadd.xlane.f32.xlu0 %v436
          %v447 = vpop.xlane.xlu0 %446
          %v448 = vrot.slane %v447, 4
          %v449 = vadd.f32 %v447, %v448
          %v450 = vrot.slane %v449, 2
          %v451 = vadd.f32 %v449, %v450
          %v452 = vrot.slane %v451, 1
          %v453 = vadd.f32 %v451, %v452
          %s454 = vtos %v453
          %s455 = vtos %v445
          %s456 = smul.f32 1e-10, %s455
          %p457 = scmp.le.f32.partialorder %s454, %s456
          %p458 = scmp.ge.s32.totalorder %s363, 15
          %p459 = por %p457, %p458
        $region143: #{custom-call.22} parent=139 // loop_header_branch
          %907 = sbr.rel (%p459) target = $region147
        $region144: #{custom-call.22} parent=139 // loop_body
          loop: start=0, step=1, limit=3
          $region148: #{custom-call.22} parent=144 // loop_pre_header
            _
          $region149: #{custom-call.22} parent=144 // loop_header
            %s461 = sphi 0, %s465
            %p462 = scmp.ge.s32.totalorder %s461, 3
          $region150: #{custom-call.22} parent=144 // loop_header_branch
            %464 = sbr.rel (%p462) target = $region154
          $region151: #{custom-call.22} parent=144 // loop_body
            #allocation22 [shape = 'f32[1024]{0}', space=vmem, size = 0x1000, scoped, tag = 'a_tl_diag vmem']
            #allocation23 [shape = 'f32[1024]{0}', space=vmem, size = 0x1000, scoped, tag = 'a_tr_diag vmem']
            #allocation24 [shape = 'f32[1024]{0}', space=vmem, size = 0x1000, scoped, tag = 'a_br_diag vmem']
            #allocation25 [shape = 'f32[1024]{0}', space=vmem, size = 0x1000, scoped, tag = 'rt1 vmem']
            #allocation26 [shape = 'f32[1024]{0}', space=vmem, size = 0x1000, scoped, tag = 'rt2 vmem']
            #allocation27 [shape = 'f32[1024]{0}', space=vmem, size = 0x1000, scoped, tag = 'c vmem']
            #allocation28 [shape = 'f32[1024]{0}', space=vmem, size = 0x1000, scoped, tag = 's vmem']
            #allocation29 [shape = 'f32[4096]{0}', space=vmem, size = 0x4000, scoped, tag = 'c broadcast']
            #allocation30 [shape = 'f32[4096]{0}', space=vmem, size = 0x4000, scoped, tag = 's broadcast']
            %s466 = smov [#allocation18]
            %s467 = smov [#allocation22]
            %v468 = vlaneseq
            %v469 = vand.u32 %v468, 127
            %v470 = vmov %v469
            %v471 = vlaneseq
            %v472 = vshrl.u32 %v471, 7
            %v473 = vmov %v472
            %v474 = vld [vmem:[%s466] sm:$0x3]
            %vm477 = vcmp.eq.s32.totalorder %v473, %v470
            %v478 = vsel %vm477, %v474, 0.0
            %v479 = vrot.slane %v478, 4
            %v480 = vadd.f32 %v478, %v479
            %v481 = vrot.slane %v480, 2
            %v482 = vadd.f32 %v480, %v481
            %v483 = vrot.slane %v482, 1
            %v484 = vadd.f32 %v482, %v483
            %485 = vst [vmem:[%s467] sm:$0x1] %v484
            %s486 = smov [#allocation19]
            %s487 = smov [#allocation23]
            %v488 = vlaneseq
            %v489 = vand.u32 %v488, 127
            %v490 = vmov %v489
            %v491 = vlaneseq
            %v492 = vshrl.u32 %v491, 7
            %v493 = vmov %v492
            %v494 = vld [vmem:[%s486] sm:$0x3]
            %vm497 = vcmp.eq.s32.totalorder %v493, %v490
            %v498 = vsel %vm497, %v494, 0.0
            %v499 = vrot.slane %v498, 4
            %v500 = vadd.f32 %v498, %v499
            %v501 = vrot.slane %v500, 2
            %v502 = vadd.f32 %v500, %v501
            %v503 = vrot.slane %v502, 1
            %v504 = vadd.f32 %v502, %v503
            %505 = vst [vmem:[%s487] sm:$0x1] %v504
            %s506 = smov [#allocation21]
            %s507 = smov [#allocation24]
            %v508 = vlaneseq
            %v509 = vand.u32 %v508, 127
            %v510 = vmov %v509
            %v511 = vlaneseq
            %v512 = vshrl.u32 %v511, 7
            %v513 = vmov %v512
            %v514 = vld [vmem:[%s506] sm:$0x3]
            %vm517 = vcmp.eq.s32.totalorder %v513, %v510
            %v518 = vsel %vm517, %v514, 0.0
            %v519 = vrot.slane %v518, 4
            %v520 = vadd.f32 %v518, %v519
            %v521 = vrot.slane %v520, 2
            %v522 = vadd.f32 %v520, %v521
            %v523 = vrot.slane %v522, 1
            %v524 = vadd.f32 %v522, %v523
            %525 = vst [vmem:[%s507] sm:$0x1] %v524
            %s526 = smov [#allocation27]
            %s527 = smov [#allocation28]
            %s528 = smov [#allocation22]
            %v529 = vld [vmem:[%s528] sm:$0xff]
            %s530 = smov [#allocation23]
            %v531 = vld [vmem:[%s530] sm:$0xff]
            %s532 = smov [#allocation24]
            %v533 = vld [vmem:[%s532] sm:$0xff]
            %v534 = vsub.f32 %v533, %v529
            %v535 = vmul.f32 2.0, %v531
            %v536 = vrcp.pop %v535
            %v537 = vmul.f32 %v534, %v536
            %vm538 = vcmp.ge.f32.partialorder %v537, 0.0
            %v539 = vmul.f32 %v537, %v537
            %v540 = vadd.f32 1.0, %v539
            %v541 = vrsqrt.pop %v540
            %v542 = vmul.f32 %v540, %v541
            %vm543 = vcmp.eq.f32.partialorder %v540, inf
            %v544 = vsel %vm543, %v540, %v542
            %vm545 = vcmp.eq.f32.partialorder %v540, 0.0
            %v546 = vand.u32 %v540, 2147483648
            %v547 = vsel %vm545, %v546, %v544
            %v548 = vxor.u32 %v547, 2147483648
            %v549 = vsel %vm538, %v547, %v548
            %v550 = vadd.f32 %v537, %v549
            %v551 = vrcp.pop %v550
            %v552 = vand.u32 2147483647, %v529
            %v553 = vand.u32 2147483647, %v531
            %v554 = vand.u32 2147483647, %v533
            %v555 = vmin.f32 %v552, %v554
            %v556 = vmul.f32 1.1920929e-08, %v555
            %vm557 = vcmp.le.f32.partialorder %v553, %v556
            %v558 = vsel %vm557, 0.0, %v551
            %v559 = vmul.f32 %v558, %v558
            %v560 = vadd.f32 1.0, %v559
            %v561 = vrsqrt.pop %v560
            %v562 = vmul.f32 %v558, %v561
            %v563 = vmul.f32 %v558, %v531
            %v564 = vsub.f32 %v529, %v563
            %v565 = vmul.f32 %v558, %v531
            %v566 = vadd.f32 %v533, %v565
            %s567 = smov [#allocation25]
            %568 = vst [vmem:[%s567] sm:$0xff] %v564
            %s569 = smov [#allocation26]
            %570 = vst [vmem:[%s569] sm:$0xff] %v566
            %s571 = smov %s526
            %572 = vst [vmem:[%s571] sm:$0xff] %v561
            %s573 = smov %s527
            %574 = vst [vmem:[%s573] sm:$0xff] %v562
            %s575 = smov [#allocation27]
            %v576 = vld [vmem:[%s575] ss:$0 sm:$0xff]
            %v577 = vlaneseq
            %v578 = vand.u32 %v577, 127
            %v579 = vmov %v578
            %v580 = vlaneseq
            %v581 = vshrl.u32 %v580, 7
            %v582 = vmov %v581
            %vm584 = vcmp.eq.s32.totalorder %v582, %v579
            %v585 = vsel %vm584, %v576, 0.0
            %586 = vadd.xlane.f32.xlu0 %v585
            %v587 = vpop.xlane.xlu0 %586
            %s588 = smov [#allocation29]
            %589 = vst [vmem:[%s588] sm:$0xff] %v587
            %s590 = smov [#allocation28]
            %v591 = vld [vmem:[%s590] ss:$0 sm:$0xff]
            %v592 = vlaneseq
            %v593 = vand.u32 %v592, 127
            %v594 = vmov %v593
            %v595 = vlaneseq
            %v596 = vshrl.u32 %v595, 7
            %v597 = vmov %v596
            %vm599 = vcmp.eq.s32.totalorder %v597, %v594
            %v600 = vsel %vm599, %v591, 0.0
            %601 = vadd.xlane.f32.xlu0 %v600
            %v602 = vpop.xlane.xlu0 %601
            %s603 = smov [#allocation30]
            %604 = vst [vmem:[%s603] sm:$0xff] %v602
            %s605 = smov [#allocation29]
            %v606 = vld [vmem:[%s605] sm:$0xff]
            %s607 = smov [#allocation30]
            %v608 = vld [vmem:[%s607] sm:$0xff]
            %s609 = smov [#allocation18]
            %s610 = smov [#allocation19]
            %s611 = smov [#allocation20]
            %s612 = smov [#allocation21]
            %v613 = vld [vmem:[%s609] sm:$0x3]
            %v614 = vld [vmem:[%s610] sm:$0x3]
            %v615 = vld [vmem:[%s611] sm:$0x3]
            %v616 = vld [vmem:[%s612] sm:$0x3]
            %v617 = vmul.f32 %v606, %v613
            %v618 = vmul.f32 %v608, %v615
            %v619 = vsub.f32 %v617, %v618
            %v620 = vmul.f32 %v606, %v614
            %v621 = vmul.f32 %v608, %v616
            %v622 = vsub.f32 %v620, %v621
            %v623 = vmul.f32 %v608, %v613
            %v624 = vmul.f32 %v606, %v615
            %v625 = vadd.f32 %v623, %v624
            %v626 = vmul.f32 %v608, %v614
            %v627 = vmul.f32 %v606, %v616
            %v628 = vadd.f32 %v626, %v627
            %629 = vst [vmem:[%s609] sm:$0x3] %v619
            %630 = vst [vmem:[%s610] sm:$0x3] %v622
            %631 = vst [vmem:[%s611] sm:$0x3] %v625
            %632 = vst [vmem:[%s612] sm:$0x3] %v628
            %s633 = smov [#allocation27]
            %v634 = vld [vmem:[%s633] ss:$0 sm:$0xff]
            %s635 = smov [#allocation28]
            %v636 = vld [vmem:[%s635] ss:$0 sm:$0xff]
            %s637 = smov [#allocation18]
            %s638 = smov [#allocation19]
            %s639 = smov [#allocation20]
            %s640 = smov [#allocation21]
            %v641 = vld [vmem:[%s637] sm:$0x3]
            %v642 = vld [vmem:[%s638] sm:$0x3]
            %v643 = vld [vmem:[%s639] sm:$0x3]
            %v644 = vld [vmem:[%s640] sm:$0x3]
            %v645 = vmul.f32 %v634, %v641
            %v646 = vmul.f32 %v636, %v642
            %v647 = vsub.f32 %v645, %v646
            %v648 = vmul.f32 %v636, %v641
            %v649 = vmul.f32 %v634, %v642
            %v650 = vadd.f32 %v648, %v649
            %v651 = vmul.f32 %v634, %v643
            %v652 = vmul.f32 %v636, %v644
            %v653 = vsub.f32 %v651, %v652
            %v654 = vmul.f32 %v636, %v643
            %v655 = vmul.f32 %v634, %v644
            %v656 = vadd.f32 %v654, %v655
            %657 = vst [vmem:[%s637] sm:$0x3] %v647
            %658 = vst [vmem:[%s638] sm:$0x3] %v650
            %659 = vst [vmem:[%s639] sm:$0x3] %v653
            %660 = vst [vmem:[%s640] sm:$0x3] %v656
            %s661 = smov [#allocation18]
            %s662 = smov [#allocation25]
            %v663 = vlaneseq
            %v664 = vand.u32 %v663, 127
            %v665 = vmov %v664
            %v666 = vlaneseq
            %v667 = vshrl.u32 %v666, 7
            %v668 = vmov %v667
            %v669 = vld [vmem:[%s662] ss:$0 sm:$0xff]
            %v670 = vld [vmem:[%s661] sm:$0x3]
            %vm673 = vcmp.eq.s32.totalorder %v668, %v665
            %v674 = vsel %vm673, %v669, %v670
            %675 = vst [vmem:[%s661] sm:$0x3] %v674
            %s676 = smov [#allocation19]
            %v677 = vlaneseq
            %v678 = vand.u32 %v677, 127
            %v679 = vmov %v678
            %v680 = vlaneseq
            %v681 = vshrl.u32 %v680, 7
            %v682 = vmov %v681
            %v683 = vld [vmem:[%s676] sm:$0x3]
            %vm686 = vcmp.eq.s32.totalorder %v682, %v679
            %v687 = vsel %vm686, 0.0, %v683
            %688 = vst [vmem:[%s676] sm:$0x3] %v687
            %s689 = smov [#allocation20]
            %v690 = vlaneseq
            %v691 = vand.u32 %v690, 127
            %v692 = vmov %v691
            %v693 = vlaneseq
            %v694 = vshrl.u32 %v693, 7
            %v695 = vmov %v694
            %v696 = vld [vmem:[%s689] sm:$0x3]
            %vm699 = vcmp.eq.s32.totalorder %v695, %v692
            %v700 = vsel %vm699, 0.0, %v696
            %701 = vst [vmem:[%s689] sm:$0x3] %v700
            %s702 = smov [#allocation21]
            %s703 = smov [#allocation26]
            %v704 = vlaneseq
            %v705 = vand.u32 %v704, 127
            %v706 = vmov %v705
            %v707 = vlaneseq
            %v708 = vshrl.u32 %v707, 7
            %v709 = vmov %v708
            %v710 = vld [vmem:[%s703] ss:$0 sm:$0xff]
            %v711 = vld [vmem:[%s702] sm:$0x3]
            %vm714 = vcmp.eq.s32.totalorder %v709, %v706
            %v715 = vsel %vm714, %v710, %v711
            %716 = vst [vmem:[%s702] sm:$0x3] %v715
            %s717 = smov [#allocation18]
            %s718 = smov [#allocation19]
            %v719 = vld [vmem:[%s718] sm:$0x3]
            %720 = vrot.lane.b32.xlu0 %v719, 1
            %v721 = vpop.permute.xlu0 %720
            %v722 = vld [vmem:[%s717] sm:$0x3]
            %v723 = vld [vmem:[%s717] sm:$0x3]
            %724 = vrot.lane.b32.xlu0 %v723, 1
            %v725 = vpop.permute.xlu0 %724
            %v726 = vlaneseq
            %v727 = vand.u32 %v726, 127
            %vm728 = vcmp.eq.s32.totalorder %v727, 0
            %v729 = vsel %vm728, %v723, %v725
            %v730 = vlaneseq
            %v731 = vand.u32 %v730, 127
            %vm732 = vcmp.eq.s32.totalorder %v731, 1
            %v733 = vsel %vm732, %v721, %v729
            %v734 = vlaneseq
            %v735 = vand.u32 %v734, 127
            %vm736 = vcmp.ge.s32.totalorder %v735, 0
            %vm737 = vcmp.lt.s32.totalorder %v735, 2
            %vm738 = vmand %vm736, %vm737
            %v739 = vsel %vm738, %v733, 0.0
            %v740 = vld [vmem:[%s718] sm:$0x3]
            %741 = vrot.lane.b32.xlu0 %v740, 127
            %v742 = vpop.permute.xlu0 %741
            %v743 = vlaneseq
            %v744 = vand.u32 %v743, 127
            %vm745 = vcmp.eq.s32.totalorder %v744, 1
            %v746 = vsel %vm745, %v722, %v742
            %747 = vst [vmem:[%s717] sm:$0x3] %v739
            %748 = vst [vmem:[%s718] sm:$0x3] %v746
            %s749 = smov [#allocation20]
            %s750 = smov [#allocation21]
            %v751 = vld [vmem:[%s750] sm:$0x3]
            %752 = vrot.lane.b32.xlu0 %v751, 1
            %v753 = vpop.permute.xlu0 %752
            %v754 = vld [vmem:[%s749] sm:$0x3]
            %v755 = vld [vmem:[%s749] sm:$0x3]
            %756 = vrot.lane.b32.xlu0 %v755, 1
            %v757 = vpop.permute.xlu0 %756
            %v758 = vlaneseq
            %v759 = vand.u32 %v758, 127
            %vm760 = vcmp.eq.s32.totalorder %v759, 0
            %v761 = vsel %vm760, %v755, %v757
            %v762 = vlaneseq
            %v763 = vand.u32 %v762, 127
            %vm764 = vcmp.eq.s32.totalorder %v763, 1
            %v765 = vsel %vm764, %v753, %v761
            %v766 = vlaneseq
            %v767 = vand.u32 %v766, 127
            %vm768 = vcmp.ge.s32.totalorder %v767, 0
            %vm769 = vcmp.lt.s32.totalorder %v767, 2
            %vm770 = vmand %vm768, %vm769
            %v771 = vsel %vm770, %v765, 0.0
            %v772 = vld [vmem:[%s750] sm:$0x3]
            %773 = vrot.lane.b32.xlu0 %v772, 127
            %v774 = vpop.permute.xlu0 %773
            %v775 = vlaneseq
            %v776 = vand.u32 %v775, 127
            %vm777 = vcmp.eq.s32.totalorder %v776, 1
            %v778 = vsel %vm777, %v754, %v774
            %779 = vst [vmem:[%s749] sm:$0x3] %v771
            %780 = vst [vmem:[%s750] sm:$0x3] %v778
            %s781 = smov [#allocation18]
            %s782 = smov [#allocation20]
            %v783 = vld [vmem:[%s781] ss:$0 sm:$0xff]
            %s785 = scalar_lea.vmem %s781, 4294967295
            %v786 = vld [vmem:[%s785] sm:$0x2]
            %v787 = vlaneseq
            %v788 = vshrl.u32 %v787, 7
            %vm789 = vcmp.eq.s32.totalorder %v788, 0
            %v790 = vsel %vm789, %v783, %v786
            %s791 = scalar_lea.vmem %s781, 1
            %v792 = vld [vmem:[%s791] ss:$0 sm:$0xff]
            %793 = vst [vmem:[%s781] sm:$0x3] %v790
            %v794 = vld [vmem:[%s782] ss:$0 sm:$0xff]
            %s795 = scalar_lea.vmem %s781, 1
            %796 = vst [vmem:[%s795] sm:$0x1] %v794
            %s797 = scalar_lea.vmem %s782, 1
            %v798 = vld [vmem:[%s797] sm:$0x1]
            %v799 = vlaneseq
            %v800 = vshrl.u32 %v799, 7
            %vm801 = vcmp.eq.s32.totalorder %v800, 1
            %v802 = vsel %vm801, %v792, %v798
            %v803 = vld [vmem:[%s782] ss:$0 sm:$0xff]
            %804 = vst [vmem:[%s782] sm:$0x3] %v802
            %s805 = smov [#allocation19]
            %s806 = smov [#allocation21]
            %v807 = vld [vmem:[%s805] ss:$0 sm:$0xff]
            %s809 = scalar_lea.vmem %s805, 4294967295
            %v810 = vld [vmem:[%s809] sm:$0x2]
            %v811 = vlaneseq
            %v812 = vshrl.u32 %v811, 7
            %vm813 = vcmp.eq.s32.totalorder %v812, 0
            %v814 = vsel %vm813, %v807, %v810
            %s815 = scalar_lea.vmem %s805, 1
            %v816 = vld [vmem:[%s815] ss:$0 sm:$0xff]
            %817 = vst [vmem:[%s805] sm:$0x3] %v814
            %v818 = vld [vmem:[%s806] ss:$0 sm:$0xff]
            %s819 = scalar_lea.vmem %s805, 1
            %820 = vst [vmem:[%s819] sm:$0x1] %v818
            %s821 = scalar_lea.vmem %s806, 1
            %v822 = vld [vmem:[%s821] sm:$0x1]
            %v823 = vlaneseq
            %v824 = vshrl.u32 %v823, 7
            %vm825 = vcmp.eq.s32.totalorder %v824, 1
            %v826 = vsel %vm825, %v816, %v822
            %v827 = vld [vmem:[%s806] ss:$0 sm:$0xff]
            %828 = vst [vmem:[%s806] sm:$0x3] %v826
            %s829 = smov [#allocation29]
            %v830 = vld [vmem:[%s829] sm:$0xff]
            %s831 = smov [#allocation30]
            %v832 = vld [vmem:[%s831] sm:$0xff]
            %s833 = smov [#allocation10]
            %s834 = smov [#allocation12]
            %s835 = smov [#allocation14]
            %s836 = smov [#allocation16]
            %v837 = vld [vmem:[%s833] sm:$0x3]
            %v838 = vld [vmem:[%s834] sm:$0x3]
            %v839 = vld [vmem:[%s835] sm:$0x3]
            %v840 = vld [vmem:[%s836] sm:$0x3]
            %v841 = vmul.f32 %v830, %v837
            %v842 = vmul.f32 %v832, %v839
            %v843 = vsub.f32 %v841, %v842
            %v844 = vmul.f32 %v830, %v838
            %v845 = vmul.f32 %v832, %v840
            %v846 = vsub.f32 %v844, %v845
            %v847 = vmul.f32 %v832, %v837
            %v848 = vmul.f32 %v830, %v839
            %v849 = vadd.f32 %v847, %v848
            %v850 = vmul.f32 %v832, %v838
            %v851 = vmul.f32 %v830, %v840
            %v852 = vadd.f32 %v850, %v851
            %853 = vst [vmem:[%s833] sm:$0x3] %v843
            %854 = vst [vmem:[%s834] sm:$0x3] %v846
            %855 = vst [vmem:[%s835] sm:$0x3] %v849
            %856 = vst [vmem:[%s836] sm:$0x3] %v852
            %s857 = smov [#allocation10]
            %s858 = smov [#allocation14]
            %v859 = vld [vmem:[%s857] ss:$0 sm:$0xff]
            %s861 = scalar_lea.vmem %s857, 4294967295
            %v862 = vld [vmem:[%s861] sm:$0x2]
            %v863 = vlaneseq
            %v864 = vshrl.u32 %v863, 7
            %vm865 = vcmp.eq.s32.totalorder %v864, 0
            %v866 = vsel %vm865, %v859, %v862
            %s867 = scalar_lea.vmem %s857, 1
            %v868 = vld [vmem:[%s867] ss:$0 sm:$0xff]
            %869 = vst [vmem:[%s857] sm:$0x3] %v866
            %v870 = vld [vmem:[%s858] ss:$0 sm:$0xff]
            %s871 = scalar_lea.vmem %s857, 1
            %872 = vst [vmem:[%s871] sm:$0x1] %v870
            %s873 = scalar_lea.vmem %s858, 1
            %v874 = vld [vmem:[%s873] sm:$0x1]
            %v875 = vlaneseq
            %v876 = vshrl.u32 %v875, 7
            %vm877 = vcmp.eq.s32.totalorder %v876, 1
            %v878 = vsel %vm877, %v868, %v874
            %v879 = vld [vmem:[%s858] ss:$0 sm:$0xff]
            %880 = vst [vmem:[%s858] sm:$0x3] %v878
            %s881 = smov [#allocation12]
            %s882 = smov [#allocation16]
            %v883 = vld [vmem:[%s881] ss:$0 sm:$0xff]
            %s885 = scalar_lea.vmem %s881, 4294967295
            %v886 = vld [vmem:[%s885] sm:$0x2]
            %v887 = vlaneseq
            %v888 = vshrl.u32 %v887, 7
            %vm889 = vcmp.eq.s32.totalorder %v888, 0
            %v890 = vsel %vm889, %v883, %v886
            %s891 = scalar_lea.vmem %s881, 1
            %v892 = vld [vmem:[%s891] ss:$0 sm:$0xff]
            %893 = vst [vmem:[%s881] sm:$0x3] %v890
            %v894 = vld [vmem:[%s882] ss:$0 sm:$0xff]
            %s895 = scalar_lea.vmem %s881, 1
            %896 = vst [vmem:[%s895] sm:$0x1] %v894
            %s897 = scalar_lea.vmem %s882, 1
            %v898 = vld [vmem:[%s897] sm:$0x1]
            %v899 = vlaneseq
            %v900 = vshrl.u32 %v899, 7
            %vm901 = vcmp.eq.s32.totalorder %v900, 1
            %v902 = vsel %vm901, %v892, %v898
            %v903 = vld [vmem:[%s882] ss:$0 sm:$0xff]
            %904 = vst [vmem:[%s882] sm:$0x3] %v902
          $region152: #{custom-call.22} parent=144 // loop_footer
            %s465 = sadd.s32 1, %s461
          $region153: #{custom-call.22} parent=144 // loop_footer_branch
            %460 = sbr.rel target = $region149
          $region154: #{custom-call.22} parent=144 // loop_exit
            _
          %s905 = sadd.s32 %s363, 1
        $region145: #{custom-call.22} parent=139 // loop_footer
          _
        $region146: #{custom-call.22} parent=139 // loop_footer_branch
          %362 = sbr.rel target = $region142
        $region147: #{custom-call.22} parent=139 // loop_exit
          _
        %s908 = sand.u32 %s17, 7
        %s909 = scalar_lea.vmem %s279, %s908 [#allocation8]
        %s910 = sand.u32 %s17, 7
        %s911 = scalar_lea.vmem %s285, %s910 [#allocation9]
        %s912 = smov [#allocation18]
        %s913 = smov %s909
        %v914 = vlaneseq
        %v915 = vand.u32 %v914, 127
        %v916 = vmov %v915
        %v917 = vlaneseq
        %v918 = vshrl.u32 %v917, 7
        %v919 = vmov %v918
        %v920 = vld [vmem:[%s912] sm:$0x3]
        %vm923 = vcmp.eq.s32.totalorder %v919, %v916
        %v924 = vsel %vm923, %v920, 0.0
        %v925 = vrot.slane %v924, 4
        %v926 = vadd.f32 %v924, %v925
        %v927 = vrot.slane %v926, 2
        %v928 = vadd.f32 %v926, %v927
        %v929 = vrot.slane %v928, 1
        %v930 = vadd.f32 %v928, %v929
        %931 = vst [vmem:[%s913] sm:$0x1] %v930
        %s932 = smov [#allocation21]
        %s933 = smov %s911
        %v934 = vlaneseq
        %v935 = vand.u32 %v934, 127
        %v936 = vmov %v935
        %v937 = vlaneseq
        %v938 = vshrl.u32 %v937, 7
        %v939 = vmov %v938
        %v940 = vld [vmem:[%s932] sm:$0x3]
        %vm943 = vcmp.eq.s32.totalorder %v939, %v936
        %v944 = vsel %vm943, %v940, 0.0
        %v945 = vrot.slane %v944, 4
        %v946 = vadd.f32 %v944, %v945
        %v947 = vrot.slane %v946, 2
        %v948 = vadd.f32 %v946, %v947
        %v949 = vrot.slane %v948, 1
        %v950 = vadd.f32 %v948, %v949
        %951 = vst [vmem:[%s933] sm:$0x1] %v950
        %s953 = sshllo.u32 0, 2
        %v955 = vld [vmem:[#allocation10] sm:%s953]
        %s956 = sshllo.u32 0, 2
        %957 = vst [vmem:[%s289] sm:%s956] %v955
        %s959 = sshllo.u32 0, 2
        %v961 = vld [vmem:[#allocation12] sm:%s959]
        %s962 = sshllo.u32 0, 2
        %963 = vst [vmem:[%s293] sm:%s962] %v961
        %s965 = sshllo.u32 0, 2
        %v967 = vld [vmem:[#allocation14] sm:%s965]
        %s968 = sshllo.u32 0, 2
        %969 = vst [vmem:[%s297] sm:%s968] %v967
        %s971 = sshllo.u32 0, 2
        %v973 = vld [vmem:[#allocation16] sm:%s971]
        %s974 = sshllo.u32 0, 2
        %975 = vst [vmem:[%s301] sm:%s974] %v973
        %s976 = sand.u32 %s27, 1
        %s977 = sand.u32 %s27, 1
        %s978 = smul.addr %s977, 8
        %s979 = scalar_lea.vmem [#allocation8], %s978
        %s980 = sand.u32 %s55, 1
        %s981 = sand.u32 %s55, 1
        %s982 = smul.addr %s981, 8
        %s983 = scalar_lea.vmem [#allocation9], %s982
        %s984 = sand.u32 %s17, 1
        %s985 = sand.u32 %s17, 1
        %s986 = smul.addr %s985, 2
        %s987 = scalar_lea.vmem [#allocation11], %s986
        %s988 = sand.u32 %s17, 1
        %s989 = sand.u32 %s17, 1
        %s990 = smul.addr %s989, 2
        %s991 = scalar_lea.vmem [#allocation13], %s990
        %s992 = sand.u32 %s17, 1
        %s993 = sand.u32 %s17, 1
        %s994 = smul.addr %s993, 2
        %s995 = scalar_lea.vmem [#allocation15], %s994
        %s996 = sand.u32 %s17, 1
        %s997 = sand.u32 %s17, 1
        %s998 = smul.addr %s997, 2
        %s999 = scalar_lea.vmem [#allocation17], %s998
        // Predicated region
        $region155: #{custom-call.22} parent=139 // pred_check
          %p1000 = pneg %p37
        $region156: #{custom-call.22} parent=139 // pred_check_branch
          %1002 = sbr.rel (%p1000) target = $region158
        $region157: #{custom-call.22} parent=139 // pred_region
          %s1003 = sshrl.u32 %s17, 3
          %s1004 = smul.addr %s1003, 8
          %s1005 = scalar_lea.vmem %s4, %s1004
          // Predicated region
          $region159: #{custom-call.22} parent=157 // pred_check
            _
          $region160: #{custom-call.22} parent=157 // pred_check_branch
            %1007 = sbr.rel (0) target = $region162
          $region161: #{custom-call.22} parent=157 // pred_region
            // Predicated region
            $region163: #{custom-call.22} parent=161 // pred_check
              _
            $region164: #{custom-call.22} parent=161 // pred_check_branch
              %1009 = sbr.rel (0) target = $region166
            $region165: #{custom-call.22} parent=161 // pred_region
              // Predicated region
              $region178: #{custom-call.22} parent=165 // pred_check
                _
              $region179: #{custom-call.22} parent=165 // pred_check_branch
                %1024 = sbr.rel (0) target = $region181
              $region180: #{custom-call.22} parent=165 // pred_region
                loop: start=0, step=1, limit=1
                $region182: #{custom-call.22} parent=180 // loop_pre_header
                  _
                $region183: #{custom-call.22} parent=180 // loop_header
                  %s1026 = sphi 0, %s1030
                  %p1027 = scmp.ge.s32.totalorder %s1026, 1
                  %s1031 = sphi %s979, %s979
                  %s1032 = sphi %s1005, %s1005
                $region184: #{custom-call.22} parent=180 // loop_header_branch
                  %1029 = sbr.rel (%p1027) target = $region188
                $region185: #{custom-call.22} parent=180 // loop_body
                  %v1033 = vld [vmem:[%s1031] sm:$0xff]
                  %1034 = vst [vmem:[%s1032] sm:$0xff] %v1033
                $region186: #{custom-call.22} parent=180 // loop_footer
                  %s1030 = sadd.s32 1, %s1026
                $region187: #{custom-call.22} parent=180 // loop_footer_branch
                  %1025 = sbr.rel target = $region183
                $region188: #{custom-call.22} parent=180 // loop_exit
                  _
              $region181: #{custom-call.22} parent=165 // pred_fallthru
                _
              // Predicated region
              $region189: #{custom-call.22} parent=165 // pred_check
                _
              $region190: #{custom-call.22} parent=165 // pred_check_branch
                %1036 = sbr.rel target = $region192
              $region191: #{custom-call.22} parent=165 // pred_region
                _
              $region192: #{custom-call.22} parent=165 // pred_fallthru
                _
            $region166: #{custom-call.22} parent=161 // pred_fallthru
              _
            // Predicated region
            $region167: #{custom-call.22} parent=161 // pred_check
              _
            $region168: #{custom-call.22} parent=161 // pred_check_branch
              %1011 = sbr.rel target = $region170
            $region169: #{custom-call.22} parent=161 // pred_region
              loop: start=0, step=1, limit=1
              $region171: #{custom-call.22} parent=169 // loop_pre_header
                _
              $region172: #{custom-call.22} parent=169 // loop_header
                %s1014 = sphi 0, %s1018
                %p1015 = scmp.ge.s32.totalorder %s1014, 1
                %s1019 = sphi %s979, %s979
                %s1020 = sphi %s1005, %s1005
              $region173: #{custom-call.22} parent=169 // loop_header_branch
                %1017 = sbr.rel (%p1015) target = $region177
              $region174: #{custom-call.22} parent=169 // loop_body
                %v1021 = vld [vmem:[%s1019] sm:$0xff]
                %1022 = vst [vmem:[%s1020] sm:$0xff] %v1021
              $region175: #{custom-call.22} parent=169 // loop_footer
                %s1018 = sadd.s32 1, %s1014
              $region176: #{custom-call.22} parent=169 // loop_footer_branch
                %1013 = sbr.rel target = $region172
              $region177: #{custom-call.22} parent=169 // loop_exit
                _
            $region170: #{custom-call.22} parent=161 // pred_fallthru
              _
          $region162: #{custom-call.22} parent=157 // pred_fallthru
            _
          %1037 = vnop
        $region158: #{custom-call.22} parent=139 // pred_fallthru
          _
        // Predicated region
        $region193: #{custom-call.22} parent=139 // pred_check
          %p1038 = pneg %p65
        $region194: #{custom-call.22} parent=139 // pred_check_branch
          %1040 = sbr.rel (%p1038) target = $region196
        $region195: #{custom-call.22} parent=139 // pred_region
          %s1041 = sshrl.u32 %s17, 3
          %s1042 = smul.addr %s1041, 8
          %s1043 = scalar_lea.vmem %s5, %s1042
          // Predicated region
          $region197: #{custom-call.22} parent=195 // pred_check
            _
          $region198: #{custom-call.22} parent=195 // pred_check_branch
            %1045 = sbr.rel (0) target = $region200
          $region199: #{custom-call.22} parent=195 // pred_region
            // Predicated region
            $region201: #{custom-call.22} parent=199 // pred_check
              _
            $region202: #{custom-call.22} parent=199 // pred_check_branch
              %1047 = sbr.rel (0) target = $region204
            $region203: #{custom-call.22} parent=199 // pred_region
              // Predicated region
              $region216: #{custom-call.22} parent=203 // pred_check
                _
              $region217: #{custom-call.22} parent=203 // pred_check_branch
                %1062 = sbr.rel (0) target = $region219
              $region218: #{custom-call.22} parent=203 // pred_region
                loop: start=0, step=1, limit=1
                $region220: #{custom-call.22} parent=218 // loop_pre_header
                  _
                $region221: #{custom-call.22} parent=218 // loop_header
                  %s1064 = sphi 0, %s1068
                  %p1065 = scmp.ge.s32.totalorder %s1064, 1
                  %s1069 = sphi %s983, %s983
                  %s1070 = sphi %s1043, %s1043
                $region222: #{custom-call.22} parent=218 // loop_header_branch
                  %1067 = sbr.rel (%p1065) target = $region226
                $region223: #{custom-call.22} parent=218 // loop_body
                  %v1071 = vld [vmem:[%s1069] sm:$0xff]
                  %1072 = vst [vmem:[%s1070] sm:$0xff] %v1071
                $region224: #{custom-call.22} parent=218 // loop_footer
                  %s1068 = sadd.s32 1, %s1064
                $region225: #{custom-call.22} parent=218 // loop_footer_branch
                  %1063 = sbr.rel target = $region221
                $region226: #{custom-call.22} parent=218 // loop_exit
                  _
              $region219: #{custom-call.22} parent=203 // pred_fallthru
                _
              // Predicated region
              $region227: #{custom-call.22} parent=203 // pred_check
                _
              $region228: #{custom-call.22} parent=203 // pred_check_branch
                %1074 = sbr.rel target = $region230
              $region229: #{custom-call.22} parent=203 // pred_region
                _
              $region230: #{custom-call.22} parent=203 // pred_fallthru
                _
            $region204: #{custom-call.22} parent=199 // pred_fallthru
              _
            // Predicated region
            $region205: #{custom-call.22} parent=199 // pred_check
              _
            $region206: #{custom-call.22} parent=199 // pred_check_branch
              %1049 = sbr.rel target = $region208
            $region207: #{custom-call.22} parent=199 // pred_region
              loop: start=0, step=1, limit=1
              $region209: #{custom-call.22} parent=207 // loop_pre_header
                _
              $region210: #{custom-call.22} parent=207 // loop_header
                %s1052 = sphi 0, %s1056
                %p1053 = scmp.ge.s32.totalorder %s1052, 1
                %s1057 = sphi %s983, %s983
                %s1058 = sphi %s1043, %s1043
              $region211: #{custom-call.22} parent=207 // loop_header_branch
                %1055 = sbr.rel (%p1053) target = $region215
              $region212: #{custom-call.22} parent=207 // loop_body
                %v1059 = vld [vmem:[%s1057] sm:$0xff]
                %1060 = vst [vmem:[%s1058] sm:$0xff] %v1059
              $region213: #{custom-call.22} parent=207 // loop_footer
                %s1056 = sadd.s32 1, %s1052
              $region214: #{custom-call.22} parent=207 // loop_footer_branch
                %1051 = sbr.rel target = $region210
              $region215: #{custom-call.22} parent=207 // loop_exit
                _
            $region208: #{custom-call.22} parent=199 // pred_fallthru
              _
          $region200: #{custom-call.22} parent=195 // pred_fallthru
            _
          %1075 = vnop
        $region196: #{custom-call.22} parent=139 // pred_fallthru
          _
        %s1076 = smul.addr %s17, 2
        %s1077 = scalar_lea.vmem %s6, %s1076
        // Predicated region
        $region231: #{custom-call.22} parent=139 // pred_check
          _
        $region232: #{custom-call.22} parent=139 // pred_check_branch
          %1079 = sbr.rel (0) target = $region234
        $region233: #{custom-call.22} parent=139 // pred_region
          // Predicated region
          $region235: #{custom-call.22} parent=233 // pred_check
            _
          $region236: #{custom-call.22} parent=233 // pred_check_branch
            %1081 = sbr.rel target = $region238
          $region237: #{custom-call.22} parent=233 // pred_region
            // Predicated region
            $region250: #{custom-call.22} parent=237 // pred_check
              _
            $region251: #{custom-call.22} parent=237 // pred_check_branch
              %1096 = sbr.rel (0) target = $region253
            $region252: #{custom-call.22} parent=237 // pred_region
              loop: start=0, step=1, limit=1
              $region254: #{custom-call.22} parent=252 // loop_pre_header
                _
              $region255: #{custom-call.22} parent=252 // loop_header
                %s1099 = sphi 0, %s1103
                %p1100 = scmp.ge.s32.totalorder %s1099, 1
                %s1104 = sphi %s987, %s987
                %s1105 = sphi %s1077, %s1077
              $region256: #{custom-call.22} parent=252 // loop_header_branch
                %1102 = sbr.rel (%p1100) target = $region260
              $region257: #{custom-call.22} parent=252 // loop_body
                %v1106 = vld [vmem:[%s1104] sm:$0x3]
                %1107 = vst [vmem:[%s1105] sm:$0x3] %v1106
              $region258: #{custom-call.22} parent=252 // loop_footer
                %s1103 = sadd.s32 1, %s1099
              $region259: #{custom-call.22} parent=252 // loop_footer_branch
                %1098 = sbr.rel target = $region255
              $region260: #{custom-call.22} parent=252 // loop_exit
                _
            $region253: #{custom-call.22} parent=237 // pred_fallthru
              _
          $region238: #{custom-call.22} parent=233 // pred_fallthru
            _
          // Predicated region
          $region239: #{custom-call.22} parent=233 // pred_check
            _
          $region240: #{custom-call.22} parent=233 // pred_check_branch
            %1083 = sbr.rel (0) target = $region242
          $region241: #{custom-call.22} parent=233 // pred_region
            loop: start=0, step=1, limit=1
            $region243: #{custom-call.22} parent=241 // loop_pre_header
              _
            $region244: #{custom-call.22} parent=241 // loop_header
              %s1086 = sphi 0, %s1090
              %p1087 = scmp.ge.s32.totalorder %s1086, 1
              %s1091 = sphi %s987, %s987
              %s1092 = sphi %s1077, %s1077
            $region245: #{custom-call.22} parent=241 // loop_header_branch
              %1089 = sbr.rel (%p1087) target = $region249
            $region246: #{custom-call.22} parent=241 // loop_body
              %v1093 = vld [vmem:[%s1091] sm:$0x3]
              %1094 = vst [vmem:[%s1092] sm:$0x3] %v1093
            $region247: #{custom-call.22} parent=241 // loop_footer
              %s1090 = sadd.s32 1, %s1086
            $region248: #{custom-call.22} parent=241 // loop_footer_branch
              %1085 = sbr.rel target = $region244
            $region249: #{custom-call.22} parent=241 // loop_exit
              _
          $region242: #{custom-call.22} parent=233 // pred_fallthru
            _
        $region234: #{custom-call.22} parent=139 // pred_fallthru
          _
        %1108 = vnop
        %s1109 = smul.addr %s17, 2
        %s1110 = scalar_lea.vmem %s7, %s1109
        // Predicated region
        $region261: #{custom-call.22} parent=139 // pred_check
          _
        $region262: #{custom-call.22} parent=139 // pred_check_branch
          %1112 = sbr.rel (0) target = $region264
        $region263: #{custom-call.22} parent=139 // pred_region
          // Predicated region
          $region265: #{custom-call.22} parent=263 // pred_check
            _
          $region266: #{custom-call.22} parent=263 // pred_check_branch
            %1114 = sbr.rel target = $region268
          $region267: #{custom-call.22} parent=263 // pred_region
            // Predicated region
            $region280: #{custom-call.22} parent=267 // pred_check
              _
            $region281: #{custom-call.22} parent=267 // pred_check_branch
              %1129 = sbr.rel (0) target = $region283
            $region282: #{custom-call.22} parent=267 // pred_region
              loop: start=0, step=1, limit=1
              $region284: #{custom-call.22} parent=282 // loop_pre_header
                _
              $region285: #{custom-call.22} parent=282 // loop_header
                %s1132 = sphi 0, %s1136
                %p1133 = scmp.ge.s32.totalorder %s1132, 1
                %s1137 = sphi %s991, %s991
                %s1138 = sphi %s1110, %s1110
              $region286: #{custom-call.22} parent=282 // loop_header_branch
                %1135 = sbr.rel (%p1133) target = $region290
              $region287: #{custom-call.22} parent=282 // loop_body
                %v1139 = vld [vmem:[%s1137] sm:$0x3]
                %1140 = vst [vmem:[%s1138] sm:$0x3] %v1139
              $region288: #{custom-call.22} parent=282 // loop_footer
                %s1136 = sadd.s32 1, %s1132
              $region289: #{custom-call.22} parent=282 // loop_footer_branch
                %1131 = sbr.rel target = $region285
              $region290: #{custom-call.22} parent=282 // loop_exit
                _
            $region283: #{custom-call.22} parent=267 // pred_fallthru
              _
          $region268: #{custom-call.22} parent=263 // pred_fallthru
            _
          // Predicated region
          $region269: #{custom-call.22} parent=263 // pred_check
            _
          $region270: #{custom-call.22} parent=263 // pred_check_branch
            %1116 = sbr.rel (0) target = $region272
          $region271: #{custom-call.22} parent=263 // pred_region
            loop: start=0, step=1, limit=1
            $region273: #{custom-call.22} parent=271 // loop_pre_header
              _
            $region274: #{custom-call.22} parent=271 // loop_header
              %s1119 = sphi 0, %s1123
              %p1120 = scmp.ge.s32.totalorder %s1119, 1
              %s1124 = sphi %s991, %s991
              %s1125 = sphi %s1110, %s1110
            $region275: #{custom-call.22} parent=271 // loop_header_branch
              %1122 = sbr.rel (%p1120) target = $region279
            $region276: #{custom-call.22} parent=271 // loop_body
              %v1126 = vld [vmem:[%s1124] sm:$0x3]
              %1127 = vst [vmem:[%s1125] sm:$0x3] %v1126
            $region277: #{custom-call.22} parent=271 // loop_footer
              %s1123 = sadd.s32 1, %s1119
            $region278: #{custom-call.22} parent=271 // loop_footer_branch
              %1118 = sbr.rel target = $region274
            $region279: #{custom-call.22} parent=271 // loop_exit
              _
          $region272: #{custom-call.22} parent=263 // pred_fallthru
            _
        $region264: #{custom-call.22} parent=139 // pred_fallthru
          _
        %1141 = vnop
        %s1142 = smul.addr %s17, 2
        %s1143 = scalar_lea.vmem %s8, %s1142
        // Predicated region
        $region291: #{custom-call.22} parent=139 // pred_check
          _
        $region292: #{custom-call.22} parent=139 // pred_check_branch
          %1145 = sbr.rel (0) target = $region294
        $region293: #{custom-call.22} parent=139 // pred_region
          // Predicated region
          $region295: #{custom-call.22} parent=293 // pred_check
            _
          $region296: #{custom-call.22} parent=293 // pred_check_branch
            %1147 = sbr.rel target = $region298
          $region297: #{custom-call.22} parent=293 // pred_region
            // Predicated region
            $region310: #{custom-call.22} parent=297 // pred_check
              _
            $region311: #{custom-call.22} parent=297 // pred_check_branch
              %1162 = sbr.rel (0) target = $region313
            $region312: #{custom-call.22} parent=297 // pred_region
              loop: start=0, step=1, limit=1
              $region314: #{custom-call.22} parent=312 // loop_pre_header
                _
              $region315: #{custom-call.22} parent=312 // loop_header
                %s1165 = sphi 0, %s1169
                %p1166 = scmp.ge.s32.totalorder %s1165, 1
                %s1170 = sphi %s995, %s995
                %s1171 = sphi %s1143, %s1143
              $region316: #{custom-call.22} parent=312 // loop_header_branch
                %1168 = sbr.rel (%p1166) target = $region320
              $region317: #{custom-call.22} parent=312 // loop_body
                %v1172 = vld [vmem:[%s1170] sm:$0x3]
                %1173 = vst [vmem:[%s1171] sm:$0x3] %v1172
              $region318: #{custom-call.22} parent=312 // loop_footer
                %s1169 = sadd.s32 1, %s1165
              $region319: #{custom-call.22} parent=312 // loop_footer_branch
                %1164 = sbr.rel target = $region315
              $region320: #{custom-call.22} parent=312 // loop_exit
                _
            $region313: #{custom-call.22} parent=297 // pred_fallthru
              _
          $region298: #{custom-call.22} parent=293 // pred_fallthru
            _
          // Predicated region
          $region299: #{custom-call.22} parent=293 // pred_check
            _
          $region300: #{custom-call.22} parent=293 // pred_check_branch
            %1149 = sbr.rel (0) target = $region302
          $region301: #{custom-call.22} parent=293 // pred_region
            loop: start=0, step=1, limit=1
            $region303: #{custom-call.22} parent=301 // loop_pre_header
              _
            $region304: #{custom-call.22} parent=301 // loop_header
              %s1152 = sphi 0, %s1156
              %p1153 = scmp.ge.s32.totalorder %s1152, 1
              %s1157 = sphi %s995, %s995
              %s1158 = sphi %s1143, %s1143
            $region305: #{custom-call.22} parent=301 // loop_header_branch
              %1155 = sbr.rel (%p1153) target = $region309
            $region306: #{custom-call.22} parent=301 // loop_body
              %v1159 = vld [vmem:[%s1157] sm:$0x3]
              %1160 = vst [vmem:[%s1158] sm:$0x3] %v1159
            $region307: #{custom-call.22} parent=301 // loop_footer
              %s1156 = sadd.s32 1, %s1152
            $region308: #{custom-call.22} parent=301 // loop_footer_branch
              %1151 = sbr.rel target = $region304
            $region309: #{custom-call.22} parent=301 // loop_exit
              _
          $region302: #{custom-call.22} parent=293 // pred_fallthru
            _
        $region294: #{custom-call.22} parent=139 // pred_fallthru
          _
        %1174 = vnop
        %s1175 = smul.addr %s17, 2
        %s1176 = scalar_lea.vmem %s9, %s1175
        // Predicated region
        $region321: #{custom-call.22} parent=139 // pred_check
          _
        $region322: #{custom-call.22} parent=139 // pred_check_branch
          %1178 = sbr.rel (0) target = $region324
        $region323: #{custom-call.22} parent=139 // pred_region
          // Predicated region
          $region325: #{custom-call.22} parent=323 // pred_check
            _
          $region326: #{custom-call.22} parent=323 // pred_check_branch
            %1180 = sbr.rel target = $region328
          $region327: #{custom-call.22} parent=323 // pred_region
            // Predicated region
            $region340: #{custom-call.22} parent=327 // pred_check
              _
            $region341: #{custom-call.22} parent=327 // pred_check_branch
              %1195 = sbr.rel (0) target = $region343
            $region342: #{custom-call.22} parent=327 // pred_region
              loop: start=0, step=1, limit=1
              $region344: #{custom-call.22} parent=342 // loop_pre_header
                _
              $region345: #{custom-call.22} parent=342 // loop_header
                %s1198 = sphi 0, %s1202
                %p1199 = scmp.ge.s32.totalorder %s1198, 1
                %s1203 = sphi %s999, %s999
                %s1204 = sphi %s1176, %s1176
              $region346: #{custom-call.22} parent=342 // loop_header_branch
                %1201 = sbr.rel (%p1199) target = $region350
              $region347: #{custom-call.22} parent=342 // loop_body
                %v1205 = vld [vmem:[%s1203] sm:$0x3]
                %1206 = vst [vmem:[%s1204] sm:$0x3] %v1205
              $region348: #{custom-call.22} parent=342 // loop_footer
                %s1202 = sadd.s32 1, %s1198
              $region349: #{custom-call.22} parent=342 // loop_footer_branch
                %1197 = sbr.rel target = $region345
              $region350: #{custom-call.22} parent=342 // loop_exit
                _
            $region343: #{custom-call.22} parent=327 // pred_fallthru
              _
          $region328: #{custom-call.22} parent=323 // pred_fallthru
            _
          // Predicated region
          $region329: #{custom-call.22} parent=323 // pred_check
            _
          $region330: #{custom-call.22} parent=323 // pred_check_branch
            %1182 = sbr.rel (0) target = $region332
          $region331: #{custom-call.22} parent=323 // pred_region
            loop: start=0, step=1, limit=1
            $region333: #{custom-call.22} parent=331 // loop_pre_header
              _
            $region334: #{custom-call.22} parent=331 // loop_header
              %s1185 = sphi 0, %s1189
              %p1186 = scmp.ge.s32.totalorder %s1185, 1
              %s1190 = sphi %s999, %s999
              %s1191 = sphi %s1176, %s1176
            $region335: #{custom-call.22} parent=331 // loop_header_branch
              %1188 = sbr.rel (%p1186) target = $region339
            $region336: #{custom-call.22} parent=331 // loop_body
              %v1192 = vld [vmem:[%s1190] sm:$0x3]
              %1193 = vst [vmem:[%s1191] sm:$0x3] %v1192
            $region337: #{custom-call.22} parent=331 // loop_footer
              %s1189 = sadd.s32 1, %s1185
            $region338: #{custom-call.22} parent=331 // loop_footer_branch
              %1184 = sbr.rel target = $region334
            $region339: #{custom-call.22} parent=331 // loop_exit
              _
          $region332: #{custom-call.22} parent=323 // pred_fallthru
            _
        $region324: #{custom-call.22} parent=139 // pred_fallthru
          _
        %1207 = vnop
      $region140: #{custom-call.22} parent=5 // pred_fallthru
        _
      %p1208 = scmp.le.s32.totalorder 2, %s12
      // Predicated region
      $region351: #{custom-call.22} parent=5 // pred_check
        %p1209 = pneg %p1208
      $region352: #{custom-call.22} parent=5 // pred_check_branch
        %1211 = sbr.rel (%p1209) target = $region354
      $region353: #{custom-call.22} parent=5 // pred_region
        %s1212 = ssub.s32 %s12, 2
        // Predicated region
        $region355: #{custom-call.22} parent=353 // pred_check
          %p1213 = pneg %p43
        $region356: #{custom-call.22} parent=353 // pred_check_branch
          %1215 = sbr.rel (%p1213) target = $region358
        $region357: #{custom-call.22} parent=353 // pred_region
          %s1216 = sand.u32 %s28, 1
          %s1217 = sand.u32 %s28, 1
          %s1218 = smul.addr %s1217, 8
          %s1219 = scalar_lea.vmem [#allocation8], %s1218
        $region358: #{custom-call.22} parent=353 // pred_fallthru
          _
        // Predicated region
        $region359: #{custom-call.22} parent=353 // pred_check
          %p1220 = pneg %p71
        $region360: #{custom-call.22} parent=353 // pred_check_branch
          %1222 = sbr.rel (%p1220) target = $region362
        $region361: #{custom-call.22} parent=353 // pred_region
          %s1223 = sand.u32 %s56, 1
          %s1224 = sand.u32 %s56, 1
          %s1225 = smul.addr %s1224, 8
          %s1226 = scalar_lea.vmem [#allocation9], %s1225
        $region362: #{custom-call.22} parent=353 // pred_fallthru
          _
        %s1227 = sand.u32 %s18, 1
        %s1228 = sand.u32 %s18, 1
        %s1229 = smul.addr %s1228, 2
        %s1230 = scalar_lea.vmem [#allocation11], %s1229
        %s1231 = sand.u32 %s18, 1
        %s1232 = sand.u32 %s18, 1
        %s1233 = smul.addr %s1232, 2
        %s1234 = scalar_lea.vmem [#allocation13], %s1233
        %s1235 = sand.u32 %s18, 1
        %s1236 = sand.u32 %s18, 1
        %s1237 = smul.addr %s1236, 2
        %s1238 = scalar_lea.vmem [#allocation15], %s1237
        %s1239 = sand.u32 %s18, 1
        %s1240 = sand.u32 %s18, 1
        %s1241 = smul.addr %s1240, 2
        %s1242 = scalar_lea.vmem [#allocation17], %s1241
      $region354: #{custom-call.22} parent=5 // pred_fallthru
        _
    $region6: #{custom-call.22} parent=1 // loop_footer
      %s16 = sadd.s32 1, %s12
    $region7: #{custom-call.22} parent=1 // loop_footer_branch
      %11 = sbr.rel target = $region3
    $region8: #{custom-call.22} parent=1 // loop_exit
      _

// kernel: reverse
$region0: #{reverse}
  %s0 = inlined_call_operand.vmem [shape: f32[16,3], index: 0, kind: input, shape index: {}]
  %s1 = inlined_call_operand.vmem [shape: f32[16,3], index: 1, kind: output, shape index: {}]
  %v2 = vlaneseq
  %v3 = vsub.s32 2, %v2
  %4 = vset.pattern.permute.xlu0 %v3
  $region1: #{reverse} parent=0
    #allocation0 [shape = 'u8[8192]{0}', space=vmem, size = 0x2000, scoped, tag = 'operand span for operand 0']
    #allocation1 [shape = 'u8[8192]{0}', space=vmem, size = 0x2000, scoped, tag = 'operand span for operand 1']
    // Predicated region
    $region2: #{reverse} parent=1 // pred_check
      _
    $region3: #{reverse} parent=1 // pred_check_branch
      %6 = sbr.rel (0) target = $region5
    $region4: #{reverse} parent=1 // pred_region
      // Predicated region
      $region6: #{reverse} parent=4 // pred_check
        _
      $region7: #{reverse} parent=4 // pred_check_branch
        %8 = sbr.rel (0) target = $region9
      $region8: #{reverse} parent=4 // pred_region
        // Predicated region
        $region21: #{reverse} parent=8 // pred_check
          _
        $region22: #{reverse} parent=8 // pred_check_branch
          %25 = sbr.rel (0) target = $region24
        $region23: #{reverse} parent=8 // pred_region
          loop: start=0, step=1, limit=1
          $region25: #{reverse} parent=23 // loop_pre_header
            _
          $region26: #{reverse} parent=23 // loop_header
            %s27 = sphi 0, %s31
            %p28 = scmp.ge.s32.totalorder %s27, 1
            %s32 = sphi %s0, %s0
            %s33 = sphi [#allocation0], [#allocation0]
          $region27: #{reverse} parent=23 // loop_header_branch
            %30 = sbr.rel (%p28) target = $region31
          $region28: #{reverse} parent=23 // loop_body
            %v34 = vld [vmem:[%s32] sm:$0xff]
            %35 = vst [vmem:[%s33] sm:$0xff] %v34
            %v36 = vld [vmem:[%s32 + $0x8] sm:$0xff]
            %37 = vst [vmem:[%s33 + $0x8] sm:$0xff] %v36
          $region29: #{reverse} parent=23 // loop_footer
            %s31 = sadd.s32 1, %s27
          $region30: #{reverse} parent=23 // loop_footer_branch
            %26 = sbr.rel target = $region26
          $region31: #{reverse} parent=23 // loop_exit
            _
        $region24: #{reverse} parent=8 // pred_fallthru
          _
        // Predicated region
        $region32: #{reverse} parent=8 // pred_check
          _
        $region33: #{reverse} parent=8 // pred_check_branch
          %39 = sbr.rel target = $region35
        $region34: #{reverse} parent=8 // pred_region
          _
        $region35: #{reverse} parent=8 // pred_fallthru
          _
      $region9: #{reverse} parent=4 // pred_fallthru
        _
      // Predicated region
      $region10: #{reverse} parent=4 // pred_check
        _
      $region11: #{reverse} parent=4 // pred_check_branch
        %10 = sbr.rel target = $region13
      $region12: #{reverse} parent=4 // pred_region
        loop: start=0, step=1, limit=1
        $region14: #{reverse} parent=12 // loop_pre_header
          _
        $region15: #{reverse} parent=12 // loop_header
          %s13 = sphi 0, %s17
          %p14 = scmp.ge.s32.totalorder %s13, 1
          %s18 = sphi %s0, %s0
          %s19 = sphi [#allocation0], [#allocation0]
        $region16: #{reverse} parent=12 // loop_header_branch
          %16 = sbr.rel (%p14) target = $region20
        $region17: #{reverse} parent=12 // loop_body
          %v20 = vld [vmem:[%s18] sm:$0xff]
          %21 = vst [vmem:[%s19] sm:$0xff] %v20
          %v22 = vld [vmem:[%s18 + $0x8] sm:$0xff]
          %23 = vst [vmem:[%s19 + $0x8] sm:$0xff] %v22
        $region18: #{reverse} parent=12 // loop_footer
          %s17 = sadd.s32 1, %s13
        $region19: #{reverse} parent=12 // loop_footer_branch
          %12 = sbr.rel target = $region15
        $region20: #{reverse} parent=12 // loop_exit
          _
      $region13: #{reverse} parent=4 // pred_fallthru
        _
    $region5: #{reverse} parent=1 // pred_fallthru
      _
    %40 = vnop
    %v41 = vld [vmem:[#allocation0] sm:$0xff]
    %42 = vperm.xlu0 %4, %v41
    %v43 = vpop.permute.xlu0 %42
    %44 = vst [vmem:[#allocation1] sm:$0xff] %v43
    %s45 = scalar_lea.vmem [#allocation1], 8
    %s46 = scalar_lea.vmem [#allocation0], 8
    %v47 = vld [vmem:[%s46] sm:$0xff]
    %48 = vperm.xlu0 %4, %v47
    %v49 = vpop.permute.xlu0 %48
    %50 = vst [vmem:[%s45] sm:$0xff] %v49
    // Predicated region
    $region36: #{reverse} parent=1 // pred_check
      _
    $region37: #{reverse} parent=1 // pred_check_branch
      %52 = sbr.rel (0) target = $region39
    $region38: #{reverse} parent=1 // pred_region
      // Predicated region
      $region40: #{reverse} parent=38 // pred_check
        _
      $region41: #{reverse} parent=38 // pred_check_branch
        %54 = sbr.rel (0) target = $region43
      $region42: #{reverse} parent=38 // pred_region
        // Predicated region
        $region55: #{reverse} parent=42 // pred_check
          _
        $region56: #{reverse} parent=42 // pred_check_branch
          %71 = sbr.rel (0) target = $region58
        $region57: #{reverse} parent=42 // pred_region
          loop: start=0, step=1, limit=1
          $region59: #{reverse} parent=57 // loop_pre_header
            _
          $region60: #{reverse} parent=57 // loop_header
            %s73 = sphi 0, %s77
            %p74 = scmp.ge.s32.totalorder %s73, 1
            %s78 = sphi [#allocation1], [#allocation1]
            %s79 = sphi %s1, %s1
          $region61: #{reverse} parent=57 // loop_header_branch
            %76 = sbr.rel (%p74) target = $region65
          $region62: #{reverse} parent=57 // loop_body
            %v80 = vld [vmem:[%s78] sm:$0xff]
            %81 = vst [vmem:[%s79] sm:$0xff] %v80
            %v82 = vld [vmem:[%s78 + $0x8] sm:$0xff]
            %83 = vst [vmem:[%s79 + $0x8] sm:$0xff] %v82
          $region63: #{reverse} parent=57 // loop_footer
            %s77 = sadd.s32 1, %s73
          $region64: #{reverse} parent=57 // loop_footer_branch
            %72 = sbr.rel target = $region60
          $region65: #{reverse} parent=57 // loop_exit
            _
        $region58: #{reverse} parent=42 // pred_fallthru
          _
        // Predicated region
        $region66: #{reverse} parent=42 // pred_check
          _
        $region67: #{reverse} parent=42 // pred_check_branch
          %85 = sbr.rel target = $region69
        $region68: #{reverse} parent=42 // pred_region
          _
        $region69: #{reverse} parent=42 // pred_fallthru
          _
      $region43: #{reverse} parent=38 // pred_fallthru
        _
      // Predicated region
      $region44: #{reverse} parent=38 // pred_check
        _
      $region45: #{reverse} parent=38 // pred_check_branch
        %56 = sbr.rel target = $region47
      $region46: #{reverse} parent=38 // pred_region
        loop: start=0, step=1, limit=1
        $region48: #{reverse} parent=46 // loop_pre_header
          _
        $region49: #{reverse} parent=46 // loop_header
          %s59 = sphi 0, %s63
          %p60 = scmp.ge.s32.totalorder %s59, 1
          %s64 = sphi [#allocation1], [#allocation1]
          %s65 = sphi %s1, %s1
        $region50: #{reverse} parent=46 // loop_header_branch
          %62 = sbr.rel (%p60) target = $region54
        $region51: #{reverse} parent=46 // loop_body
          %v66 = vld [vmem:[%s64] sm:$0xff]
          %67 = vst [vmem:[%s65] sm:$0xff] %v66
          %v68 = vld [vmem:[%s64 + $0x8] sm:$0xff]
          %69 = vst [vmem:[%s65 + $0x8] sm:$0xff] %v68
        $region52: #{reverse} parent=46 // loop_footer
          %s63 = sadd.s32 1, %s59
        $region53: #{reverse} parent=46 // loop_footer_branch
          %58 = sbr.rel target = $region49
        $region54: #{reverse} parent=46 // loop_exit
          _
      $region47: #{reverse} parent=38 // pred_fallthru
        _
    $region39: #{reverse} parent=1 // pred_fallthru
      _
    %86 = vnop

// kernel: custom-call.16
$region0: #{custom-call.16}
  %s0 = inlined_call_operand.vmem [shape: f32[16,3,3], index: 0, kind: input, shape index: {}]
  %s1 = inlined_call_operand.vmem [shape: f32[16,3,3], index: 1, kind: output, shape index: {0}]
  %s2 = inlined_call_operand.vmem [shape: f32[16,3], index: 2, kind: output, shape index: {1}]
  %3 = xla_tuple %s1, %s2
  $region1: #{custom-call.16} parent=0
    #allocation0 [shape = 'u8[4096]{0}', space=vmem, size = 0x1000, scoped, tag = 'operand span for operand 0']
    #allocation1 [shape = 'u8[4096]{0}', space=vmem, size = 0x1000, scoped, tag = 'packed  for operand 0']
    #allocation2 [shape = 'u8[4096]{0}', space=vmem, size = 0x1000, scoped, tag = 'operand span for operand 1']
    #allocation3 [shape = 'u8[4096]{0}', space=vmem, size = 0x1000, scoped, tag = 'packed  for operand 1']
    #allocation4 [shape = 'u8[8192]{0}', space=vmem, size = 0x2000, scoped, tag = 'operand span for operand 2']
    loop: start=0, step=1, limit=18
    $region2: #{custom-call.16} parent=1 // loop_pre_header
      _
    $region3: #{custom-call.16} parent=1 // loop_header
      %s5 = sphi 0, %s9
      %p6 = scmp.ge.s32.totalorder %s5, 18
      %s12 = sphi 0, %s31
      %s13 = sphi 0, %s27
      %s14 = sphi 0, %s23
      %s15 = sphi 0, %s12
      %s16 = sphi 0, %s13
      %s17 = sphi 0, %s14
      %s18 = sphi 0, %s15
      %s19 = sphi 0, %s16
      %s20 = sphi 0, %s17
      %s46 = sphi 0, %s48
      %s49 = sphi 0, %s46
      %s50 = sphi 0, %s49
      %s66 = sphi 0, %s50
    $region4: #{custom-call.16} parent=1 // loop_header_branch
      %8 = sbr.rel (%p6) target = $region8
    $region5: #{custom-call.16} parent=1 // loop_body
      %s10 = ssub.s32 %s5, 1
      %s11 = ssub.s32 %s5, 2
      %s21 = sadd.s32 1, %s14
      %p22 = scmp.ge.s32.totalorder %s21, 1
      %s23 = scalar_select %p22, 0, %s21
      %s24 = sadd.s32 1, %s13
      %s25 = scalar_select %p22, %s24, %s13
      %p26 = scmp.ge.s32.totalorder %s25, 1
      %s27 = scalar_select %p26, 0, %s25
      %s28 = sadd.s32 1, %s12
      %s29 = scalar_select %p26, %s28, %s12
      %p30 = scmp.ge.s32.totalorder %s29, 16
      %s31 = scalar_select %p30, 0, %s29
      %p32 = scmp.lt.s32.totalorder %s12, 0
      %s33 = ssub.s32 0, %s12
      %s34 = scalar_select %p32, %s33, %s12
      %s35 = sshrl.u32 %s34, 3
      %s36 = ssub.s32 0, %s35
      %s37 = scalar_select %p32, %s36, %s35
      %p38 = scmp.lt.s32.totalorder %s31, 0
      %s39 = ssub.s32 0, %s31
      %s40 = scalar_select %p38, %s39, %s31
      %s41 = sshrl.u32 %s40, 3
      %s42 = ssub.s32 0, %s41
      %s43 = scalar_select %p38, %s42, %s41
      %s44 = ssub.s32 %s37, %s43
      %p45 = scmp.eq.s32.totalorder %s44, 0
      %s47 = sadd.s32 %s46, 1
      %s48 = scalar_select %p45, %s46, %s47
      %p51 = pneg %p45
      %p52 = scmp.eq.s32.totalorder %s5, 15
      %p53 = por %p51, %p52
      %p54 = scmp.ne.s32.totalorder %s46, %s49
      %p55 = scmp.eq.s32.totalorder %s5, 0
      %p56 = por %p54, %p55
      %p57 = scmp.ne.s32.totalorder %s46, %s49
      %p58 = scmp.eq.s32.totalorder %s10, 15
      %p59 = por %p57, %p58
      %p60 = scmp.ne.s32.totalorder %s49, %s50
      %p61 = scmp.eq.s32.totalorder %s10, 0
      %p62 = por %p60, %p61
      %p63 = scmp.ne.s32.totalorder %s49, %s50
      %p64 = scmp.eq.s32.totalorder %s11, 15
      %p65 = por %p63, %p64
      %p67 = scmp.ne.s32.totalorder %s50, %s66
      %p68 = scmp.eq.s32.totalorder %s11, 0
      %p69 = por %p67, %p68
      %p70 = scmp.le.s32.totalorder 1, %s5
      %p71 = scmp.lt.s32.totalorder %s5, 17
      %p72 = pnand %p70, %p71
      %p73 = pneg %p72
      // Predicated region
      $region9: #{custom-call.16} parent=5 // pred_check
        _
      $region10: #{custom-call.16} parent=5 // pred_check_branch
        %75 = sbr.rel (%p72) target = $region12
      $region11: #{custom-call.16} parent=5 // pred_region
        %s76 = ssub.s32 %s5, 1
      $region12: #{custom-call.16} parent=5 // pred_fallthru
        _
      %p77 = scmp.lt.s32.totalorder %s5, 16
      // Predicated region
      $region13: #{custom-call.16} parent=5 // pred_check
        %p78 = pneg %p77
      $region14: #{custom-call.16} parent=5 // pred_check_branch
        %80 = sbr.rel (%p78) target = $region16
      $region15: #{custom-call.16} parent=5 // pred_region
        %s81 = sand.u32 %s5, 1
        %s82 = sand.u32 %s5, 1
        %s83 = smul.addr %s82, 4
        %s84 = scalar_lea.vmem [#allocation1], %s83
        %s85 = sadd.s32 %s14, %s13
        %s86 = sadd.s32 %s85, %s12
        %s87 = smul.addr %s86, 4
        %s88 = scalar_lea.vmem %s0, %s87
        // Predicated region
        $region17: #{custom-call.16} parent=15 // pred_check
          _
        $region18: #{custom-call.16} parent=15 // pred_check_branch
          %90 = sbr.rel (0) target = $region20
        $region19: #{custom-call.16} parent=15 // pred_region
          // Predicated region
          $region21: #{custom-call.16} parent=19 // pred_check
            _
          $region22: #{custom-call.16} parent=19 // pred_check_branch
            %92 = sbr.rel target = $region24
          $region23: #{custom-call.16} parent=19 // pred_region
            // Predicated region
            $region36: #{custom-call.16} parent=23 // pred_check
              _
            $region37: #{custom-call.16} parent=23 // pred_check_branch
              %107 = sbr.rel (0) target = $region39
            $region38: #{custom-call.16} parent=23 // pred_region
              loop: start=0, step=1, limit=1
              $region40: #{custom-call.16} parent=38 // loop_pre_header
                _
              $region41: #{custom-call.16} parent=38 // loop_header
                %s110 = sphi 0, %s114
                %p111 = scmp.ge.s32.totalorder %s110, 1
                %s115 = sphi %s88, %s88
                %s116 = sphi %s84, %s84
              $region42: #{custom-call.16} parent=38 // loop_header_branch
                %113 = sbr.rel (%p111) target = $region46
              $region43: #{custom-call.16} parent=38 // loop_body
                %v117 = vld [vmem:[%s115] sm:$0xf]
                %118 = vst [vmem:[%s116] sm:$0xf] %v117
              $region44: #{custom-call.16} parent=38 // loop_footer
                %s114 = sadd.s32 1, %s110
              $region45: #{custom-call.16} parent=38 // loop_footer_branch
                %109 = sbr.rel target = $region41
              $region46: #{custom-call.16} parent=38 // loop_exit
                _
            $region39: #{custom-call.16} parent=23 // pred_fallthru
              _
          $region24: #{custom-call.16} parent=19 // pred_fallthru
            _
          // Predicated region
          $region25: #{custom-call.16} parent=19 // pred_check
            _
          $region26: #{custom-call.16} parent=19 // pred_check_branch
            %94 = sbr.rel (0) target = $region28
          $region27: #{custom-call.16} parent=19 // pred_region
            loop: start=0, step=1, limit=1
            $region29: #{custom-call.16} parent=27 // loop_pre_header
              _
            $region30: #{custom-call.16} parent=27 // loop_header
              %s97 = sphi 0, %s101
              %p98 = scmp.ge.s32.totalorder %s97, 1
              %s102 = sphi %s88, %s88
              %s103 = sphi %s84, %s84
            $region31: #{custom-call.16} parent=27 // loop_header_branch
              %100 = sbr.rel (%p98) target = $region35
            $region32: #{custom-call.16} parent=27 // loop_body
              %v104 = vld [vmem:[%s102] sm:$0xf]
              %105 = vst [vmem:[%s103] sm:$0xf] %v104
            $region33: #{custom-call.16} parent=27 // loop_footer
              %s101 = sadd.s32 1, %s97
            $region34: #{custom-call.16} parent=27 // loop_footer_branch
              %96 = sbr.rel target = $region30
            $region35: #{custom-call.16} parent=27 // loop_exit
              _
          $region28: #{custom-call.16} parent=19 // pred_fallthru
            _
        $region20: #{custom-call.16} parent=15 // pred_fallthru
          _
        %119 = vnop
      $region16: #{custom-call.16} parent=5 // pred_fallthru
        _
      %p120 = scmp.le.s32.totalorder 1, %s5
      %p121 = scmp.lt.s32.totalorder %s5, 17
      %p122 = pnand %p120, %p121
      %p123 = pneg %p122
      // Predicated region
      $region47: #{custom-call.16} parent=5 // pred_check
        _
      $region48: #{custom-call.16} parent=5 // pred_check_branch
        %125 = sbr.rel (%p122) target = $region50
      $region49: #{custom-call.16} parent=5 // pred_region
        #allocation5 [shape = 'f32[3,128]{1,0}', space=vmem, size = 0x1000, scoped, tag = 'scratch for Householder reflectors']
        %s126 = ssub.s32 %s5, 1
        %s127 = sand.u32 %s10, 1
        %s128 = sand.u32 %s10, 1
        %s129 = smul.addr %s128, 4
        %s130 = scalar_lea.vmem [#allocation1], %s129
        %s131 = sand.u32 %s10, 1
        %s132 = sand.u32 %s10, 1
        %s133 = smul.addr %s132, 4
        %s134 = scalar_lea.vmem [#allocation1], %s133
        %s135 = sand.u32 %s10, 1
        %s136 = sand.u32 %s10, 1
        %s137 = smul.addr %s136, 4
        %s138 = scalar_lea.vmem [#allocation3], %s137
        %p139 = pneg %p62
        %p140 = pneg %p59
        %s141 = sand.u32 %s49, 1
        %s142 = sand.u32 %s49, 1
        %s143 = smul.addr %s142, 8
        %s144 = scalar_lea.vmem [#allocation4], %s143
        %s146 = sshllo.u32 0, 4
        %v147 = vld [vmem:[%s134] sm:%s146]
        %148 = vst [vmem:[#allocation0] sm:%s146] %v147
        %p149 = scmp.lt.s32.totalorder %s15, 0
        %s150 = ssub.s32 0, %s15
        %s151 = scalar_select %p149, %s150, %s15
        %s152 = sshrl.u32 %s151, 3
        %s153 = ssub.s32 0, %s152
        %s154 = scalar_select %p149, %s153, %s152
        %s155 = sand.u32 %s15, 7
        %s156 = scalar_lea.vmem %s144, %s155 [#allocation4]
        %v157 = vld [vmem:[#allocation0] sm:$0xff]
        %158 = vst [vmem:[#allocation2] sm:$0xff] %v157
        %159 = vst [vmem:[%s156] sm:$0x1] 0.0
        loop: start=0, step=1, limit=3
        $region51: #{custom-call.16} parent=49 // loop_pre_header
          _
        $region52: #{custom-call.16} parent=49 // loop_header
          %s161 = sphi 0, %s165
          %p162 = scmp.ge.s32.totalorder %s161, 3
        $region53: #{custom-call.16} parent=49 // loop_header_branch
          %164 = sbr.rel (%p162) target = $region57
        $region54: #{custom-call.16} parent=49 // loop_body
          %v166 = vld [vmem:[#allocation2] sm:$0xff]
          %v167 = vlaneseq
          %v168 = vshrl.u32 %v167, 7
          %v170 = vstv %s161
          %vm171 = vcmp.gt.s32.totalorder %v168, %v170
          %vm172 = vcmp.lt.s32.totalorder %v168, 3
          %vm173 = vmand %vm171, %vm172
          %v174 = vsel %vm173, %v166, 0.0
          %v175 = vmul.f32 %v174, %v174
          %v176 = vrot.slane %v175, 4
          %v177 = vadd.f32 %v175, %v176
          %v178 = vrot.slane %v177, 2
          %v179 = vadd.f32 %v177, %v178
          %v180 = vrot.slane %v179, 1
          %v181 = vadd.f32 %v179, %v180
          %v182 = vrsqrt.pop %v181
          %v183 = vmul.f32 %v181, %v182
          %vm184 = vcmp.eq.f32.partialorder %v181, inf
          %v185 = vsel %vm184, %v181, %v183
          %vm186 = vcmp.eq.f32.partialorder %v181, 0.0
          %v187 = vand.u32 %v181, 2147483648
          %v188 = vsel %vm186, %v187, %v185
          %vm189 = vcmp.eq.f32.partialorder %v181, 0.0
          %s190 = sshrl.u32 %s161, 3
          %s191 = sand.u32 %s161, 7
          %s192 = smul.addr %s190, 8
          %s193 = sadd.s32 %s191, %s192
          %s194 = scalar_lea.vmem [#allocation2], %s193
          %v195 = vld [vmem:[%s194] ss:$0 sm:$0xff]
          %v196 = vand.u32 2147483647, %v195
          %v197 = vmax.f32 %v196, 0.0
          %v198 = vand.u32 2147483647, %v188
          %v199 = vmax.f32 %v197, %v198
          %v200 = vrcp.pop %v199
          %v201 = vmul.f32 %v196, %v200
          %v202 = vmul.f32 %v201, %v201
          %v203 = vrcp.pop %v199
          %v204 = vmul.f32 0.0, %v203
          %v205 = vmul.f32 %v204, %v204
          %v206 = vadd.f32 %v202, %v205
          %v207 = vrcp.pop %v199
          %v208 = vmul.f32 %v198, %v207
          %v209 = vmul.f32 %v208, %v208
          %v210 = vadd.f32 %v206, %v209
          %vm211 = vcmp.eq.f32.partialorder %v199, 0.0
          %v212 = vrsqrt.pop %v210
          %v213 = vmul.f32 %v210, %v212
          %vm214 = vcmp.eq.f32.partialorder %v210, inf
          %v215 = vsel %vm214, %v210, %v213
          %vm216 = vcmp.eq.f32.partialorder %v210, 0.0
          %v217 = vand.u32 %v210, 2147483648
          %v218 = vsel %vm216, %v217, %v215
          %v219 = vmul.f32 %v199, %v218
          %v220 = vsel %vm211, 0.0, %v219
          %vm221 = vcmp.lt.f32.partialorder %v195, 0.0
          %v222 = vxor.u32 %v220, 2147483648
          %v223 = vsel %vm221, %v220, %v222
          %v224 = vsub.f32 %v223, %v195
          %v225 = vrcp.pop %v223
          %v226 = vmul.f32 %v224, %v225
          %v227 = vsel %vm189, %v195, %v223
          %v228 = vsel %vm189, 0.0, %v226
          %v229 = vsub.f32 %v195, %v227
          %s230 = smov [#allocation2]
          %v231 = vlaneseq
          %v232 = vshrl.u32 %v231, 7
          %v233 = vmov %v232
          %v234 = vld [vmem:[%s230] sm:$0xff]
          %v236 = vstv %s161
          %vm237 = vcmp.gt.s32.totalorder %v233, %v236
          %vm238 = vcmp.lt.s32.totalorder %v233, 3
          %vm239 = vmand %vm237, %vm238
          %v240 = vsel %vm239, %v234, 0.0
          %v241 = vrcp.pop %v229
          %v242 = vmul.f32 %v240, %v241
          %v243 = vsel %vm189, 0.0, %v242
          %v244 = vstv %s161
          %v245 = vlaneseq
          %v246 = vand.u32 %v245, 127
          %vm247 = vcmp.eq.s32.totalorder %v246, %v244
          %v248 = vsel %vm247, %v243, 0.0
          %249 = vadd.xlane.f32.xlu0 %v248
          %v250 = vpop.xlane.xlu0 %249
          %251 = vst [vmem:[#allocation5] sm:$0xff] %v250
          %s252 = scalar_lea.vmem [#allocation5], %s161
          %253 = vst [vmem:[%s252] sm:$0x1] 1.0
          %v254 = vstv %s161
          %v255 = vlaneseq
          %v256 = vand.u32 %v255, 127
          %vm257 = vcmp.eq.s32.totalorder %v256, %v254
          %v258 = vsel %vm257, %v228, 0.0
          %259 = vadd.xlane.f32.xlu0 %v258
          %v260 = vpop.xlane.xlu0 %259
          %v261 = vstv %s161
          %v262 = vlaneseq
          %v263 = vand.u32 %v262, 127
          %vm264 = vcmp.eq.s32.totalorder %v263, %v261
          %v265 = vld [vmem:[%s156] ss:$0 sm:$0xff]
          %v266 = vsel %vm264, %v260, %v265
          %267 = vst [vmem:[%s156] sm:$0x1] %v266
          %s268 = smov [#allocation2]
          %s269 = smov [#allocation5]
          %v270 = vlaneseq
          %v271 = vshrl.u32 %v270, 7
          %v272 = vmov %v271
          %v274 = vld [vmem:[%s269] sm:$0xff]
          %v275 = vld [vmem:[%s268] sm:$0xff]
          %v276 = vmul.f32 %v274, %v275
          %vm277 = vcmp.lt.s32.totalorder %v272, 3
          %v278 = vsel %vm277, %v276, 0.0
          %v279 = vrot.slane %v278, 4
          %v280 = vadd.f32 %v278, %v279
          %v281 = vrot.slane %v280, 2
          %v282 = vadd.f32 %v280, %v281
          %v283 = vrot.slane %v282, 1
          %v284 = vadd.f32 %v282, %v283
          %s285 = smov %s268
          %s286 = smov %s269
          %v287 = vlaneseq
          %v288 = vshrl.u32 %v287, 7
          %v289 = vmov %v288
          %v290 = vmul.f32 %v284, %v260
          %v292 = vlaneseq
          %v293 = vand.u32 %v292, 127
          %v294 = vld [vmem:[%s286] sm:$0xff]
          %v295 = vmul.f32 %v294, %v290
          %v296 = vld [vmem:[%s285] sm:$0xff]
          %v297 = vstv %s161
          %vm298 = vcmp.gt.s32.totalorder %v293, %v297
          %v299 = vsub.f32 %v296, %v295
          %v300 = vsel %vm298, %v299, %v296
          %v301 = vstv %s161
          %v302 = vlaneseq
          %v303 = vand.u32 %v302, 127
          %vm304 = vcmp.eq.s32.totalorder %v303, %v301
          %v305 = vstv %s161
          %vm306 = vcmp.ge.s32.totalorder %v289, %v305
          %vm307 = vmand %vm304, %vm306
          %v308 = vsel %vm307, %v294, %v300
          %309 = vst [vmem:[%s285] sm:$0xff] %v308
          %s310 = scalar_lea.vmem %s285, %s161
          %v311 = vld [vmem:[%s310] ss:$0 sm:$0xff]
          %v312 = vstv %s161
          %v313 = vlaneseq
          %v314 = vand.u32 %v313, 127
          %vm315 = vcmp.eq.s32.totalorder %v314, %v312
          %v316 = vsel %vm315, %v227, %v311
          %317 = vst [vmem:[%s310] sm:$0x1] %v316
        $region55: #{custom-call.16} parent=49 // loop_footer
          %s165 = sadd.s32 1, %s161
        $region56: #{custom-call.16} parent=49 // loop_footer_branch
          %160 = sbr.rel target = $region52
        $region57: #{custom-call.16} parent=49 // loop_exit
          _
        %s319 = sshllo.u32 0, 4
        %v321 = vld [vmem:[#allocation2] sm:%s319]
        %s322 = sshllo.u32 0, 4
        %323 = vst [vmem:[%s138] sm:%s322] %v321
        %s324 = sand.u32 %s10, 1
        %s325 = sand.u32 %s10, 1
        %s326 = smul.addr %s325, 4
        %s327 = scalar_lea.vmem [#allocation3], %s326
        %s328 = sand.u32 %s49, 1
        %s329 = sand.u32 %s49, 1
        %s330 = smul.addr %s329, 8
        %s331 = scalar_lea.vmem [#allocation4], %s330
        %s332 = sadd.s32 %s17, %s16
        %s333 = sadd.s32 %s332, %s15
        %s334 = smul.addr %s333, 4
        %s335 = scalar_lea.vmem %s1, %s334
        // Predicated region
        $region58: #{custom-call.16} parent=49 // pred_check
          _
        $region59: #{custom-call.16} parent=49 // pred_check_branch
          %337 = sbr.rel (0) target = $region61
        $region60: #{custom-call.16} parent=49 // pred_region
          // Predicated region
          $region62: #{custom-call.16} parent=60 // pred_check
            _
          $region63: #{custom-call.16} parent=60 // pred_check_branch
            %339 = sbr.rel target = $region65
          $region64: #{custom-call.16} parent=60 // pred_region
            // Predicated region
            $region77: #{custom-call.16} parent=64 // pred_check
              _
            $region78: #{custom-call.16} parent=64 // pred_check_branch
              %354 = sbr.rel (0) target = $region80
            $region79: #{custom-call.16} parent=64 // pred_region
              loop: start=0, step=1, limit=1
              $region81: #{custom-call.16} parent=79 // loop_pre_header
                _
              $region82: #{custom-call.16} parent=79 // loop_header
                %s357 = sphi 0, %s361
                %p358 = scmp.ge.s32.totalorder %s357, 1
                %s362 = sphi %s327, %s327
                %s363 = sphi %s335, %s335
              $region83: #{custom-call.16} parent=79 // loop_header_branch
                %360 = sbr.rel (%p358) target = $region87
              $region84: #{custom-call.16} parent=79 // loop_body
                %v364 = vld [vmem:[%s362] sm:$0xf]
                %365 = vst [vmem:[%s363] sm:$0xf] %v364
              $region85: #{custom-call.16} parent=79 // loop_footer
                %s361 = sadd.s32 1, %s357
              $region86: #{custom-call.16} parent=79 // loop_footer_branch
                %356 = sbr.rel target = $region82
              $region87: #{custom-call.16} parent=79 // loop_exit
                _
            $region80: #{custom-call.16} parent=64 // pred_fallthru
              _
          $region65: #{custom-call.16} parent=60 // pred_fallthru
            _
          // Predicated region
          $region66: #{custom-call.16} parent=60 // pred_check
            _
          $region67: #{custom-call.16} parent=60 // pred_check_branch
            %341 = sbr.rel (0) target = $region69
          $region68: #{custom-call.16} parent=60 // pred_region
            loop: start=0, step=1, limit=1
            $region70: #{custom-call.16} parent=68 // loop_pre_header
              _
            $region71: #{custom-call.16} parent=68 // loop_header
              %s344 = sphi 0, %s348
              %p345 = scmp.ge.s32.totalorder %s344, 1
              %s349 = sphi %s327, %s327
              %s350 = sphi %s335, %s335
            $region72: #{custom-call.16} parent=68 // loop_header_branch
              %347 = sbr.rel (%p345) target = $region76
            $region73: #{custom-call.16} parent=68 // loop_body
              %v351 = vld [vmem:[%s349] sm:$0xf]
              %352 = vst [vmem:[%s350] sm:$0xf] %v351
            $region74: #{custom-call.16} parent=68 // loop_footer
              %s348 = sadd.s32 1, %s344
            $region75: #{custom-call.16} parent=68 // loop_footer_branch
              %343 = sbr.rel target = $region71
            $region76: #{custom-call.16} parent=68 // loop_exit
              _
          $region69: #{custom-call.16} parent=60 // pred_fallthru
            _
        $region61: #{custom-call.16} parent=49 // pred_fallthru
          _
        %366 = vnop
        // Predicated region
        $region88: #{custom-call.16} parent=49 // pred_check
          %p367 = pneg %p59
        $region89: #{custom-call.16} parent=49 // pred_check_branch
          %369 = sbr.rel (%p367) target = $region91
        $region90: #{custom-call.16} parent=49 // pred_region
          %p370 = scmp.lt.s32.totalorder %s15, 0
          %s371 = ssub.s32 0, %s15
          %s372 = scalar_select %p370, %s371, %s15
          %s373 = sshrl.u32 %s372, 3
          %s374 = ssub.s32 0, %s373
          %s375 = scalar_select %p370, %s374, %s373
          %s376 = smul.addr %s375, 8
          %s377 = scalar_lea.vmem %s2, %s376
          // Predicated region
          $region92: #{custom-call.16} parent=90 // pred_check
            _
          $region93: #{custom-call.16} parent=90 // pred_check_branch
            %379 = sbr.rel (0) target = $region95
          $region94: #{custom-call.16} parent=90 // pred_region
            // Predicated region
            $region96: #{custom-call.16} parent=94 // pred_check
              _
            $region97: #{custom-call.16} parent=94 // pred_check_branch
              %381 = sbr.rel (0) target = $region99
            $region98: #{custom-call.16} parent=94 // pred_region
              // Predicated region
              $region111: #{custom-call.16} parent=98 // pred_check
                _
              $region112: #{custom-call.16} parent=98 // pred_check_branch
                %396 = sbr.rel (0) target = $region114
              $region113: #{custom-call.16} parent=98 // pred_region
                loop: start=0, step=1, limit=1
                $region115: #{custom-call.16} parent=113 // loop_pre_header
                  _
                $region116: #{custom-call.16} parent=113 // loop_header
                  %s398 = sphi 0, %s402
                  %p399 = scmp.ge.s32.totalorder %s398, 1
                  %s403 = sphi %s331, %s331
                  %s404 = sphi %s377, %s377
                $region117: #{custom-call.16} parent=113 // loop_header_branch
                  %401 = sbr.rel (%p399) target = $region121
                $region118: #{custom-call.16} parent=113 // loop_body
                  %v405 = vld [vmem:[%s403] sm:$0xff]
                  %406 = vst [vmem:[%s404] sm:$0xff] %v405
                $region119: #{custom-call.16} parent=113 // loop_footer
                  %s402 = sadd.s32 1, %s398
                $region120: #{custom-call.16} parent=113 // loop_footer_branch
                  %397 = sbr.rel target = $region116
                $region121: #{custom-call.16} parent=113 // loop_exit
                  _
              $region114: #{custom-call.16} parent=98 // pred_fallthru
                _
              // Predicated region
              $region122: #{custom-call.16} parent=98 // pred_check
                _
              $region123: #{custom-call.16} parent=98 // pred_check_branch
                %408 = sbr.rel target = $region125
              $region124: #{custom-call.16} parent=98 // pred_region
                _
              $region125: #{custom-call.16} parent=98 // pred_fallthru
                _
            $region99: #{custom-call.16} parent=94 // pred_fallthru
              _
            // Predicated region
            $region100: #{custom-call.16} parent=94 // pred_check
              _
            $region101: #{custom-call.16} parent=94 // pred_check_branch
              %383 = sbr.rel target = $region103
            $region102: #{custom-call.16} parent=94 // pred_region
              loop: start=0, step=1, limit=1
              $region104: #{custom-call.16} parent=102 // loop_pre_header
                _
              $region105: #{custom-call.16} parent=102 // loop_header
                %s386 = sphi 0, %s390
                %p387 = scmp.ge.s32.totalorder %s386, 1
                %s391 = sphi %s331, %s331
                %s392 = sphi %s377, %s377
              $region106: #{custom-call.16} parent=102 // loop_header_branch
                %389 = sbr.rel (%p387) target = $region110
              $region107: #{custom-call.16} parent=102 // loop_body
                %v393 = vld [vmem:[%s391] sm:$0xff]
                %394 = vst [vmem:[%s392] sm:$0xff] %v393
              $region108: #{custom-call.16} parent=102 // loop_footer
                %s390 = sadd.s32 1, %s386
              $region109: #{custom-call.16} parent=102 // loop_footer_branch
                %385 = sbr.rel target = $region105
              $region110: #{custom-call.16} parent=102 // loop_exit
                _
            $region103: #{custom-call.16} parent=94 // pred_fallthru
              _
          $region95: #{custom-call.16} parent=90 // pred_fallthru
            _
          %409 = vnop
        $region91: #{custom-call.16} parent=49 // pred_fallthru
          _
      $region50: #{custom-call.16} parent=5 // pred_fallthru
        _
      %p410 = scmp.le.s32.totalorder 2, %s5
      // Predicated region
      $region126: #{custom-call.16} parent=5 // pred_check
        %p411 = pneg %p410
      $region127: #{custom-call.16} parent=5 // pred_check_branch
        %413 = sbr.rel (%p411) target = $region129
      $region128: #{custom-call.16} parent=5 // pred_region
        %s414 = ssub.s32 %s5, 2
        %s415 = sand.u32 %s11, 1
        %s416 = sand.u32 %s11, 1
        %s417 = smul.addr %s416, 4
        %s418 = scalar_lea.vmem [#allocation3], %s417
        // Predicated region
        $region130: #{custom-call.16} parent=128 // pred_check
          %p419 = pneg %p65
        $region131: #{custom-call.16} parent=128 // pred_check_branch
          %421 = sbr.rel (%p419) target = $region133
        $region132: #{custom-call.16} parent=128 // pred_region
          %s422 = sand.u32 %s50, 1
          %s423 = sand.u32 %s50, 1
          %s424 = smul.addr %s423, 8
          %s425 = scalar_lea.vmem [#allocation4], %s424
        $region133: #{custom-call.16} parent=128 // pred_fallthru
          _
      $region129: #{custom-call.16} parent=5 // pred_fallthru
        _
    $region6: #{custom-call.16} parent=1 // loop_footer
      %s9 = sadd.s32 1, %s5
    $region7: #{custom-call.16} parent=1 // loop_footer_branch
      %4 = sbr.rel target = $region3
    $region8: #{custom-call.16} parent=1 // loop_exit
      _

// kernel: sigma_elasticity.1
$region0: #{sigma_elasticity.1}
  #allocation0 [shape = 'u32[]', space=smem, size = 0x4, offset = 0x4, fixed_abs, tag = 'smem constant byte address 0x4 - core index']
  #allocation1 [shape = 'u32[144,128]{1,0:T(1,128)}', space=vmem, size = 0x12000, scoped, tag = 'internal scratch']
  %s0 = inlined_call_operand.vmem [shape: f32[2], index: 0, kind: input, shape index: {}]
  %s1 = inlined_call_operand.vmem [shape: f32[3,8,128], index: 1, kind: input, shape index: {}]
  %s2 = inlined_call_operand.vmem [shape: f32[9,8,128], index: 2, kind: input, shape index: {}]
  %s3 = inlined_call_operand.vmem [shape: f32[9,8,128], index: 3, kind: output, shape index: {}]
  %s4 = sld [smem:[#allocation0]]
  $region26: #{sigma_elasticity.1} parent=0
    _
  %s6 = ssub.s32 1, %s4
  %s7 = scalar_select 0, %s6, %s4
  $region1: #{sigma_elasticity.1} parent=0
    #allocation2 [shape = 'u8[512]{0}', space=smem, size = 0x200, scoped, tag = 'input window, operand 0, single buffered']
    #allocation3 [shape = 's32[1]{0}', space=sflag, size = 0x4, scoped, tag = 'scoped memory for sigma_elasticity.1']
    %8 = vsyncpa [#allocation3], 0
    // Predicated region
    $region2: #{sigma_elasticity.1} parent=1 // pred_check
      _
    $region3: #{sigma_elasticity.1} parent=1 // pred_check_branch
      %10 = sbr.rel (0) target = $region5
    $region4: #{sigma_elasticity.1} parent=1 // pred_region
      %s12 = ssub.s32 16, 16
      %13 = vsyncadd [#allocation3], %s12
      %s15 = sshll.u32 %s0, 4
      %s16 = int_to_ptr.vmem [resolvable:$true] %s15
      %18 = dma.vmem_to_smem %s16, 16, [#allocation2], [#allocation3]
    $region5: #{sigma_elasticity.1} parent=1 // pred_fallthru
      _
    // Predicated region
    $region6: #{sigma_elasticity.1} parent=1 // pred_check
      _
    $region7: #{sigma_elasticity.1} parent=1 // pred_check_branch
      %20 = sbr.rel (0) target = $region9
    $region8: #{sigma_elasticity.1} parent=1 // pred_region
      _
    $region9: #{sigma_elasticity.1} parent=1 // pred_fallthru
      _
    // Predicated region
    $region10: #{sigma_elasticity.1} parent=1 // pred_check
      _
    $region11: #{sigma_elasticity.1} parent=1 // pred_check_branch
      %22 = sbr.rel (0) target = $region13
    $region12: #{sigma_elasticity.1} parent=1 // pred_region
      _
    $region13: #{sigma_elasticity.1} parent=1 // pred_fallthru
      _
    // Predicated region
    $region14: #{sigma_elasticity.1} parent=1 // pred_check
      _
    $region15: #{sigma_elasticity.1} parent=1 // pred_check_branch
      %24 = sbr.rel (0) target = $region17
    $region16: #{sigma_elasticity.1} parent=1 // pred_region
      %25 = dma.done [#allocation3], 16
    $region17: #{sigma_elasticity.1} parent=1 // pred_fallthru
      _
    %26 = sfence
    %s27 = sld [smem:[#allocation2]]
    %s28 = sld [smem:[#allocation2 + $0x1]]
    %s29 = smul.f32 %s27, 2.0
    %v30 = vld [vmem:[%s1] sm:$0xff]
    %v31 = vmax.f32 %v30, 1e-05
    %v32 = vlog2.pop %v31
    %v33 = vmul.f32 %v32, 0.6931472
    %s34 = scalar_lea.vmem %s1, 8
    %v35 = vld [vmem:[%s34] sm:$0xff]
    %v36 = vmax.f32 %v35, 1e-05
    %v37 = vlog2.pop %v36
    %v38 = vmul.f32 %v37, 0.6931472
    %s39 = scalar_lea.vmem %s1, 16
    %v40 = vld [vmem:[%s39] sm:$0xff]
    %v41 = vmax.f32 %v40, 1e-05
    %v42 = vlog2.pop %v41
    %v43 = vmul.f32 %v42, 0.6931472
    %v44 = vadd.f32 %v33, %v38
    %v45 = vadd.f32 %v44, %v43
    %v46 = vstv %s28
    %v47 = vmul.f32 %v46, %v45
    %v48 = vstv %s29
    %v49 = vmul.f32 %v48, %v33
    %v50 = vadd.f32 %v49, %v47
    %v51 = vmul.f32 %v48, %v38
    %v52 = vadd.f32 %v51, %v47
    %v53 = vmul.f32 %v48, %v43
    %v54 = vadd.f32 %v53, %v47
    %v55 = vld [vmem:[%s2] sm:$0xff]
    %s56 = scalar_lea.vmem %s2, 8
    %v57 = vld [vmem:[%s56] sm:$0xff]
    %s58 = scalar_lea.vmem %s2, 16
    %v59 = vld [vmem:[%s58] sm:$0xff]
    %s60 = scalar_lea.vmem %s2, 24
    %v61 = vld [vmem:[%s60] sm:$0xff]
    %s62 = scalar_lea.vmem %s2, 32
    %v63 = vld [vmem:[%s62] sm:$0xff]
    %s64 = scalar_lea.vmem %s2, 40
    %v65 = vld [vmem:[%s64] sm:$0xff]
    %s66 = scalar_lea.vmem %s2, 48
    %v67 = vld [vmem:[%s66] sm:$0xff]
    %s68 = scalar_lea.vmem %s2, 56
    %v69 = vld [vmem:[%s68] sm:$0xff]
    %s70 = scalar_lea.vmem %s2, 64
    %v71 = vld [vmem:[%s70] sm:$0xff]
    %v72 = vmul.f32 %v50, %v55
    %v73 = vmul.f32 %v52, %v57
    %v74 = vmul.f32 %v54, %v59
    %v75 = vmul.f32 %v50, %v61
    %v76 = vmul.f32 %v52, %v63
    %v77 = vmul.f32 %v54, %v65
    %v78 = vmul.f32 %v50, %v67
    %v79 = vmul.f32 %v52, %v69
    %v80 = vmul.f32 %v54, %v71
    %v81 = vmul.f32 %v72, %v55
    %v82 = vmul.f32 %v73, %v57
    %v83 = vadd.f32 %v81, %v82
    %v84 = vmul.f32 %v74, %v59
    %v85 = vadd.f32 %v83, %v84
    %86 = vst [vmem:[%s3] sm:$0xff] %v85
    %v87 = vmul.f32 %v72, %v61
    %v88 = vmul.f32 %v73, %v63
    %v89 = vadd.f32 %v87, %v88
    %v90 = vmul.f32 %v74, %v65
    %v91 = vadd.f32 %v89, %v90
    %s92 = scalar_lea.vmem %s3, 8
    %93 = vst [vmem:[%s92] sm:$0xff] %v91
    %s94 = scalar_lea.vmem %s3, 24
    %95 = vst [vmem:[%s94] sm:$0xff] %v91
    %v96 = vmul.f32 %v72, %v67
    %v97 = vmul.f32 %v73, %v69
    %v98 = vadd.f32 %v96, %v97
    %v99 = vmul.f32 %v74, %v71
    %v100 = vadd.f32 %v98, %v99
    %s101 = scalar_lea.vmem %s3, 16
    %102 = vst [vmem:[%s101] sm:$0xff] %v100
    %s103 = scalar_lea.vmem %s3, 48
    %104 = vst [vmem:[%s103] sm:$0xff] %v100
    %v105 = vmul.f32 %v75, %v61
    %v106 = vmul.f32 %v76, %v63
    %v107 = vadd.f32 %v105, %v106
    %v108 = vmul.f32 %v77, %v65
    %v109 = vadd.f32 %v107, %v108
    %s110 = scalar_lea.vmem %s3, 32
    %111 = vst [vmem:[%s110] sm:$0xff] %v109
    %v112 = vmul.f32 %v75, %v67
    %v113 = vmul.f32 %v76, %v69
    %v114 = vadd.f32 %v112, %v113
    %v115 = vmul.f32 %v77, %v71
    %v116 = vadd.f32 %v114, %v115
    %s117 = scalar_lea.vmem %s3, 40
    %118 = vst [vmem:[%s117] sm:$0xff] %v116
    %s119 = scalar_lea.vmem %s3, 56
    %120 = vst [vmem:[%s119] sm:$0xff] %v116
    %v121 = vmul.f32 %v78, %v67
    %v122 = vmul.f32 %v79, %v69
    %v123 = vadd.f32 %v121, %v122
    %v124 = vmul.f32 %v80, %v71
    %v125 = vadd.f32 %v123, %v124
    %s126 = scalar_lea.vmem %s3, 64
    %127 = vst [vmem:[%s126] sm:$0xff] %v125
    // Predicated region
    $region18: #{sigma_elasticity.1} parent=1 // pred_check
      _
    $region19: #{sigma_elasticity.1} parent=1 // pred_check_branch
      %129 = sbr.rel (0) target = $region21
    $region20: #{sigma_elasticity.1} parent=1 // pred_region
      _
    $region21: #{sigma_elasticity.1} parent=1 // pred_fallthru
      _
    // Predicated region
    $region22: #{sigma_elasticity.1} parent=1 // pred_check
      _
    $region23: #{sigma_elasticity.1} parent=1 // pred_check_branch
      %131 = sbr.rel (0) target = $region25
    $region24: #{sigma_elasticity.1} parent=1 // pred_region
      _
    $region25: #{sigma_elasticity.1} parent=1 // pred_fallthru
      _
    %132 = vsyncpa [#allocation3], 1

</llo_original>
